<compile_context>
chip_gen: v7x
topology: tpu7x:2x2x1
jax: 0.10.0
libtpu: 0.0.40
codegen_flags: <defaults>
</compile_context>

<pallas_src>
import functools

import jax
import jax.numpy as jnp
from jax import lax
from jax.experimental import pallas as pl
from jax.experimental.pallas import tpu as pltpu

MATMUL_DTYPE = jnp.bfloat16   # MXU input dtype (accumulation is always f32)
LANE = 128
SUBLANE = 8


def _round_up(x, m):
    return (x + m - 1) // m * m


# ---------------------------------------------------------------------------
# Fused kernel: 2-layer LSTM recurrence + MLP head, single invocation (no grid)
# ---------------------------------------------------------------------------
def _network_kernel(gx0_ref,        # (T, Bp, 4Hp) f32  hoisted x @ W_ih0^T + b0
                    whh0_ref,       # (Hp, 4Hp)    bf16
                    wih1_ref,       # (Hp, 4Hp)    bf16
                    whh1_ref,       # (Hp, 4Hp)    bf16
                    b1_ref,         # (1, 4Hp)     f32
                    wfc1_ref,       # (Hp, 256)    bf16
                    bfc1_ref,       # (1, 256)     f32
                    wfc2_ref,       # (256, Dp)    bf16
                    bfc2_ref,       # (1, Dp)      f32
                    wfc3_ref,       # (Dp, 128)    bf16
                    bfc3_ref,       # (1, 128)     f32
                    out_ref):       # (Bp, 128)    f32
    T = gx0_ref.shape[0]
    Bp = gx0_ref.shape[1]
    Hp = whh0_ref.shape[0]

    def mm(a_f32, w_ref):
        # bf16 MXU inputs, f32 accumulation.
        return jnp.dot(a_f32.astype(w_ref.dtype), w_ref[...],
                       preferred_element_type=jnp.float32)

    def cell(gates, c_prev):
        # Gate order [i, f, g, o]; each slice is a whole 128-lane group.
        i_g = jax.nn.sigmoid(gates[:, 0 * Hp:1 * Hp])
        f_g = jax.nn.sigmoid(gates[:, 1 * Hp:2 * Hp])
        g_g = jnp.tanh(gates[:, 2 * Hp:3 * Hp])
        o_g = jax.nn.sigmoid(gates[:, 3 * Hp:4 * Hp])
        c_new = f_g * c_prev + i_g * g_g
        h_new = o_g * jnp.tanh(c_new)
        return h_new, c_new

    def step(t, carry):
        h0, c0, h1, c1 = carry
        # Layer 0: input projection was hoisted; only the recurrent matmul here.
        g0 = gx0_ref[t] + mm(h0, whh0_ref)
        h0, c0 = cell(g0, c0)
        # Layer 1: its input is layer-0's h at the same t (stays in vregs).
        g1 = b1_ref[...] + mm(h0, wih1_ref) + mm(h1, whh1_ref)
        h1, c1 = cell(g1, c1)
        return h0, c0, h1, c1

    zeros = jnp.zeros((Bp, Hp), jnp.float32)
    _, _, h1, _ = lax.fori_loop(0, T, step, (zeros, zeros, zeros, zeros),
                                unroll=True)

    # MLP head: relu(fc1) -> relu(fc2) -> sigmoid(fc3); only h1 (=hidden[1])
    # of the encoder is consumed, so no sequence / state outputs are emitted.
    x = jnp.maximum(mm(h1, wfc1_ref) + bfc1_ref[...], 0.0)
    x = jnp.maximum(mm(x, wfc2_ref) + bfc2_ref[...], 0.0)
    out_ref[...] = jax.nn.sigmoid(mm(x, wfc3_ref) + bfc3_ref[...])


# ---------------------------------------------------------------------------
# Parameter construction (PyTorch layouts) and TPU-friendly preparation
# ---------------------------------------------------------------------------
def init_network_params(key, features, enc_hid_dim, hid_dim):
    """Raw f32 parameters mirroring nn.LSTM(2 layers) + fc1/fc2/fc3 shapes."""
    H, D = enc_hid_dim, hid_dim

    def uniform(k, shape, fan_in):
        s = 1.0 / jnp.sqrt(jnp.float32(fan_in))
        return jax.random.uniform(k, shape, jnp.float32, -s, s)

    ks = jax.random.split(key, 14)
    return {
        # LSTM layer 0 (features -> H), gate order [i, f, g, o]
        "w_ih0": uniform(ks[0], (4 * H, features), H),
        "w_hh0": uniform(ks[1], (4 * H, H), H),
        "b_ih0": uniform(ks[2], (4 * H,), H),
        "b_hh0": uniform(ks[3], (4 * H,), H),
        # LSTM layer 1 (H -> H)
        "w_ih1": uniform(ks[4], (4 * H, H), H),
        "w_hh1": uniform(ks[5], (4 * H, H), H),
        "b_ih1": uniform(ks[6], (4 * H,), H),
        "b_hh1": uniform(ks[7], (4 * H,), H),
        # Head
        "w_fc1": uniform(ks[8], (256, H), H),
        "b_fc1": uniform(ks[9], (256,), H),
        "w_fc2": uniform(ks[10], (D, 256), 256),
        "b_fc2": uniform(ks[11], (D,), 256),
        "w_fc3": uniform(ks[12], (1, D), D),
        "b_fc3": uniform(ks[13], (1,), D),
    }


def _pad_gate_rows(w, H, Hp):
    """(4H, in) -> (4Hp, in), padding each of the 4 gate blocks independently."""
    in_dim = w.shape[1]
    w4 = w.reshape(4, H, in_dim)
    w4 = jnp.pad(w4, ((0, 0), (0, Hp - H), (0, 0)))
    return w4.reshape(4 * Hp, in_dim)


def _pad_gate_vec(b, H, Hp):
    return jnp.pad(b.reshape(4, H), ((0, 0), (0, Hp - H))).reshape(4 * Hp)


def prepare_params(p, enc_hid_dim, hid_dim):
    """Pad to lane-dense shapes, transpose for x @ W layout, cast MXU weights."""
    H, D = enc_hid_dim, hid_dim
    Hp = _round_up(H, LANE)
    Dp = _round_up(D, LANE)
    mx = MATMUL_DTYPE

    def pad_cols(w, n, n_pad):
        return jnp.pad(w, ((0, 0), (0, n_pad - n)))

    whh0 = pad_cols(_pad_gate_rows(p["w_hh0"], H, Hp), H, Hp)   # (4Hp, Hp)
    wih1 = pad_cols(_pad_gate_rows(p["w_ih1"], H, Hp), H, Hp)
    whh1 = pad_cols(_pad_gate_rows(p["w_hh1"], H, Hp), H, Hp)
    b1 = _pad_gate_vec(p["b_ih1"] + p["b_hh1"], H, Hp)

    wfc1 = pad_cols(p["w_fc1"], H, Hp)                          # (256, Hp)
    wfc2 = jnp.pad(p["w_fc2"], ((0, Dp - D), (0, 0)))           # (Dp, 256)
    bfc2 = jnp.pad(p["b_fc2"], (0, Dp - D))
    wfc3 = jnp.pad(p["w_fc3"], ((0, LANE - 1), (0, Dp - D)))    # (128, Dp)
    bfc3 = jnp.pad(p["b_fc3"], (0, LANE - 1))

    return {
        # Layer-0 input projection stays f32 (done once in XLA, off the
        # recurrence's critical path).
        "w_ih0": p["w_ih0"],                          # (4H, F) f32
        "bias0": p["b_ih0"] + p["b_hh0"],             # (4H,)   f32
        # Recurrent / head weights: lane-padded, transposed, bf16.
        "whh0_t": whh0.T.astype(mx),                  # (Hp, 4Hp)
        "wih1_t": wih1.T.astype(mx),                  # (Hp, 4Hp)
        "whh1_t": whh1.T.astype(mx),                  # (Hp, 4Hp)
        "b1": b1[None, :],                            # (1, 4Hp) f32
        "wfc1_t": wfc1.T.astype(mx),                  # (Hp, 256)
        "bfc1": p["b_fc1"][None, :],                  # (1, 256) f32
        "wfc2_t": wfc2.T.astype(mx),                  # (256, Dp)
        "bfc2": bfc2[None, :],                        # (1, Dp)  f32
        "wfc3_t": wfc3.T.astype(mx),                  # (Dp, 128)
        "bfc3": bfc3[None, :],                        # (1, 128) f32
    }


# ---------------------------------------------------------------------------
# Forward wrapper
# ---------------------------------------------------------------------------
@jax.jit
def network_forward(frame, prep):
    """frame: (T, B, F) f32 -> (B, 1) f32, matching Network.forward."""
    T, B, _ = frame.shape
    H = prep["bias0"].shape[0] // 4
    Hp = prep["whh0_t"].shape[0]
    Bp = _round_up(max(B, SUBLANE), SUBLANE)

    # Hoisted layer-0 input projection: one (T*B, F) x (F, 4H) matmul in XLA.
    gx0 = jnp.einsum("tbf,gf->tbg", frame, prep["w_ih0"]) + prep["bias0"]
    # Pad each gate block H -> Hp (lane-dense) and the batch B -> Bp (sublane).
    gx0 = gx0.reshape(T, B, 4, H)
    gx0 = jnp.pad(gx0, ((0, 0), (0, Bp - B), (0, 0), (0, Hp - H)))
    gx0 = gx0.reshape(T, Bp, 4 * Hp)

    vmem = pl.BlockSpec(memory_space=pltpu.MemorySpace.VMEM)
    out_p = pl.pallas_call(
        _network_kernel,
        out_shape=jax.ShapeDtypeStruct((Bp, LANE), jnp.float32),
        in_specs=[vmem] * 11,
        out_specs=vmem,
    )(gx0,
      prep["whh0_t"], prep["wih1_t"], prep["whh1_t"], prep["b1"],
      prep["wfc1_t"], prep["bfc1"],
      prep["wfc2_t"], prep["bfc2"],
      prep["wfc3_t"], prep["bfc3"])
    return out_p[:B, :1]


# ---------------------------------------------------------------------------
# Pure-JAX f32 reference (faithful to the PyTorch module) for a sanity check
# ---------------------------------------------------------------------------
def network_reference(frame, p):
    H = p["w_hh0"].shape[1]

    def lstm_layer(x_seq, w_ih, w_hh, b_ih, b_hh):
        Bn = x_seq.shape[1]

        def step(carry, x_t):
            h, c = carry
            g = x_t @ w_ih.T + b_ih + h @ w_hh.T + b_hh
            i, f, gg, o = jnp.split(g, 4, axis=-1)
            c = jax.nn.sigmoid(f) * c + jax.nn.sigmoid(i) * jnp.tanh(gg)
            h = jax.nn.sigmoid(o) * jnp.tanh(c)
            return (h, c), h

        init = (jnp.zeros((Bn, H)), jnp.zeros((Bn, H)))
        (h, _), ys = lax.scan(step, init, x_seq)
        return ys, h

    y0, _ = lstm_layer(frame, p["w_ih0"], p["w_hh0"], p["b_ih0"], p["b_hh0"])
    _, h1 = lstm_layer(y0, p["w_ih1"], p["w_hh1"], p["b_ih1"], p["b_hh1"])
    x = jax.nn.relu(h1 @ p["w_fc1"].T + p["b_fc1"])
    x = jax.nn.relu(x @ p["w_fc2"].T + p["b_fc2"])
    return jax.nn.sigmoid(x @ p["w_fc3"].T + p["b_fc3"])


if __name__ == "__main__":
    T, B = 8, 2            # seq_len, batch
    FEATURES = 4
    ENC_HID_DIM = 32       # encoder hidden size (fc1 input)
    HID_DIM = 32           # Network hid_dim (fc2 output / fc3 input)

    key = jax.random.PRNGKey(0)
    key, k_in = jax.random.split(key)
    frame = jax.random.normal(k_in, (T, B, FEATURES), dtype=jnp.float32)

    raw = init_network_params(key, FEATURES, ENC_HID_DIM, HID_DIM)
    prep = prepare_params(raw, ENC_HID_DIM, HID_DIM)

    out = network_forward(frame, prep)
    jax.block_until_ready(out)
    assert out.shape == (B, 1), out.shape

    # Loose-tolerance self-check vs the f32 reference (kernel matmuls use bf16
    # MXU inputs with f32 accumulation).
    ref = network_reference(frame, raw)
    max_err = float(jnp.max(jnp.abs(out - ref)))
    assert max_err < 5e-2, max_err

    print("KERNEL_OK")
</pallas_src>

<mosaic_0001>
module attributes {stable_mosaic.version = 11 : i64} {
  func.func @_network_kernel(%arg0: memref<8x8x512xf32, #tpu.memory_space<vmem>>, %arg1: memref<128x512xbf16, #tpu.memory_space<vmem>>, %arg2: memref<128x512xbf16, #tpu.memory_space<vmem>>, %arg3: memref<128x512xbf16, #tpu.memory_space<vmem>>, %arg4: memref<1x512xf32, #tpu.memory_space<vmem>>, %arg5: memref<128x256xbf16, #tpu.memory_space<vmem>>, %arg6: memref<1x256xf32, #tpu.memory_space<vmem>>, %arg7: memref<256x128xbf16, #tpu.memory_space<vmem>>, %arg8: memref<1x128xf32, #tpu.memory_space<vmem>>, %arg9: memref<128x128xbf16, #tpu.memory_space<vmem>>, %arg10: memref<1x128xf32, #tpu.memory_space<vmem>>, %arg11: memref<8x128xf32, #tpu.memory_space<vmem>>) attributes {dimension_semantics = [], scalar_prefetch = 0 : i64, scratch_operands = 0 : i64, tpu.core_type = #tpu.core_type<tc>} {
    %cst = arith.constant 0.000000e+00 : f32
    %0 = vector.broadcast %cst : f32 to vector<8x128xf32>
    %c0_i32 = arith.constant 0 : i32
    %1 = arith.index_cast %c0_i32 : i32 to index
    %c0 = arith.constant 0 : index
    %c0_0 = arith.constant 0 : index
    %2 = vector.load %arg0[%1, %c0, %c0_0] : memref<8x8x512xf32, #tpu.memory_space<vmem>>, vector<1x8x512xf32>
    %3 = vector.shape_cast %2 : vector<1x8x512xf32> to vector<8x512xf32>
    %4 = arith.truncf %0 : vector<8x128xf32> to vector<8x128xbf16>
    %c0_1 = arith.constant 0 : index
    %c0_2 = arith.constant 0 : index
    %5 = vector.load %arg1[%c0_1, %c0_2] : memref<128x512xbf16, #tpu.memory_space<vmem>>, vector<128x512xbf16>
    %cst_3 = arith.constant dense<0.000000e+00> : vector<8x512xf32>
    %6 = tpu.matmul %4, %5, %cst_3 {dimension_numbers = #tpu.dot_dimension_numbers<[1], [0], [0], [1], [0, 0, 1, 1], [], []>} : vector<8x128xbf16>, vector<128x512xbf16>, vector<8x512xf32> -> vector<8x512xf32>
    %7 = arith.addf %3, %6 : vector<8x512xf32>
    %8 = vector.extract_strided_slice %7 {offsets = [0, 0], sizes = [8, 128], strides = [1, 1]} : vector<8x512xf32> to vector<8x128xf32>
    %9 = arith.negf %8 : vector<8x128xf32>
    %10 = math.exp %9 : vector<8x128xf32>
    %cst_4 = arith.constant 1.000000e+00 : f32
    %11 = vector.broadcast %cst_4 : f32 to vector<8x128xf32>
    %12 = arith.addf %11, %10 : vector<8x128xf32>
    %13 = arith.divf %11, %12 : vector<8x128xf32>
    %14 = vector.extract_strided_slice %7 {offsets = [0, 128], sizes = [8, 128], strides = [1, 1]} : vector<8x512xf32> to vector<8x128xf32>
    %15 = arith.negf %14 : vector<8x128xf32>
    %16 = math.exp %15 : vector<8x128xf32>
    %cst_5 = arith.constant 1.000000e+00 : f32
    %17 = vector.broadcast %cst_5 : f32 to vector<8x128xf32>
    %18 = arith.addf %17, %16 : vector<8x128xf32>
    %19 = arith.divf %17, %18 : vector<8x128xf32>
    %20 = vector.extract_strided_slice %7 {offsets = [0, 256], sizes = [8, 128], strides = [1, 1]} : vector<8x512xf32> to vector<8x128xf32>
    %21 = math.tanh %20 : vector<8x128xf32>
    %22 = vector.extract_strided_slice %7 {offsets = [0, 384], sizes = [8, 128], strides = [1, 1]} : vector<8x512xf32> to vector<8x128xf32>
    %23 = arith.negf %22 : vector<8x128xf32>
    %24 = math.exp %23 : vector<8x128xf32>
    %cst_6 = arith.constant 1.000000e+00 : f32
    %25 = vector.broadcast %cst_6 : f32 to vector<8x128xf32>
    %26 = arith.addf %25, %24 : vector<8x128xf32>
    %27 = arith.divf %25, %26 : vector<8x128xf32>
    %28 = arith.mulf %19, %0 : vector<8x128xf32>
    %29 = arith.mulf %13, %21 : vector<8x128xf32>
    %30 = arith.addf %28, %29 : vector<8x128xf32>
    %31 = math.tanh %30 : vector<8x128xf32>
    %32 = arith.mulf %27, %31 : vector<8x128xf32>
    %c0_7 = arith.constant 0 : index
    %c0_8 = arith.constant 0 : index
    %33 = vector.load %arg4[%c0_7, %c0_8] : memref<1x512xf32, #tpu.memory_space<vmem>>, vector<1x512xf32>
    %34 = arith.truncf %32 : vector<8x128xf32> to vector<8x128xbf16>
    %c0_9 = arith.constant 0 : index
    %c0_10 = arith.constant 0 : index
    %35 = vector.load %arg2[%c0_9, %c0_10] : memref<128x512xbf16, #tpu.memory_space<vmem>>, vector<128x512xbf16>
    %cst_11 = arith.constant dense<0.000000e+00> : vector<8x512xf32>
    %36 = tpu.matmul %34, %35, %cst_11 {dimension_numbers = #tpu.dot_dimension_numbers<[1], [0], [0], [1], [0, 0, 1, 1], [], []>} : vector<8x128xbf16>, vector<128x512xbf16>, vector<8x512xf32> -> vector<8x512xf32>
    %37 = vector.broadcast %33 : vector<1x512xf32> to vector<8x512xf32>
    %38 = arith.addf %37, %36 : vector<8x512xf32>
    %39 = arith.truncf %0 : vector<8x128xf32> to vector<8x128xbf16>
    %c0_12 = arith.constant 0 : index
    %c0_13 = arith.constant 0 : index
    %40 = vector.load %arg3[%c0_12, %c0_13] : memref<128x512xbf16, #tpu.memory_space<vmem>>, vector<128x512xbf16>
    %cst_14 = arith.constant dense<0.000000e+00> : vector<8x512xf32>
    %41 = tpu.matmul %39, %40, %cst_14 {dimension_numbers = #tpu.dot_dimension_numbers<[1], [0], [0], [1], [0, 0, 1, 1], [], []>} : vector<8x128xbf16>, vector<128x512xbf16>, vector<8x512xf32> -> vector<8x512xf32>
    %42 = arith.addf %38, %41 : vector<8x512xf32>
    %43 = vector.extract_strided_slice %42 {offsets = [0, 0], sizes = [8, 128], strides = [1, 1]} : vector<8x512xf32> to vector<8x128xf32>
    %44 = arith.negf %43 : vector<8x128xf32>
    %45 = math.exp %44 : vector<8x128xf32>
    %cst_15 = arith.constant 1.000000e+00 : f32
    %46 = vector.broadcast %cst_15 : f32 to vector<8x128xf32>
    %47 = arith.addf %46, %45 : vector<8x128xf32>
    %48 = arith.divf %46, %47 : vector<8x128xf32>
    %49 = vector.extract_strided_slice %42 {offsets = [0, 128], sizes = [8, 128], strides = [1, 1]} : vector<8x512xf32> to vector<8x128xf32>
    %50 = arith.negf %49 : vector<8x128xf32>
    %51 = math.exp %50 : vector<8x128xf32>
    %cst_16 = arith.constant 1.000000e+00 : f32
    %52 = vector.broadcast %cst_16 : f32 to vector<8x128xf32>
    %53 = arith.addf %52, %51 : vector<8x128xf32>
    %54 = arith.divf %52, %53 : vector<8x128xf32>
    %55 = vector.extract_strided_slice %42 {offsets = [0, 256], sizes = [8, 128], strides = [1, 1]} : vector<8x512xf32> to vector<8x128xf32>
    %56 = math.tanh %55 : vector<8x128xf32>
    %57 = vector.extract_strided_slice %42 {offsets = [0, 384], sizes = [8, 128], strides = [1, 1]} : vector<8x512xf32> to vector<8x128xf32>
    %58 = arith.negf %57 : vector<8x128xf32>
    %59 = math.exp %58 : vector<8x128xf32>
    %cst_17 = arith.constant 1.000000e+00 : f32
    %60 = vector.broadcast %cst_17 : f32 to vector<8x128xf32>
    %61 = arith.addf %60, %59 : vector<8x128xf32>
    %62 = arith.divf %60, %61 : vector<8x128xf32>
    %63 = arith.mulf %54, %0 : vector<8x128xf32>
    %64 = arith.mulf %48, %56 : vector<8x128xf32>
    %65 = arith.addf %63, %64 : vector<8x128xf32>
    %66 = math.tanh %65 : vector<8x128xf32>
    %67 = arith.mulf %62, %66 : vector<8x128xf32>
    %c1_i32 = arith.constant 1 : i32
    %68 = arith.index_cast %c1_i32 : i32 to index
    %c0_18 = arith.constant 0 : index
    %c0_19 = arith.constant 0 : index
    %69 = vector.load %arg0[%68, %c0_18, %c0_19] : memref<8x8x512xf32, #tpu.memory_space<vmem>>, vector<1x8x512xf32>
    %70 = vector.shape_cast %69 : vector<1x8x512xf32> to vector<8x512xf32>
    %71 = arith.truncf %32 : vector<8x128xf32> to vector<8x128xbf16>
    %c0_20 = arith.constant 0 : index
    %c0_21 = arith.constant 0 : index
    %72 = vector.load %arg1[%c0_20, %c0_21] : memref<128x512xbf16, #tpu.memory_space<vmem>>, vector<128x512xbf16>
    %cst_22 = arith.constant dense<0.000000e+00> : vector<8x512xf32>
    %73 = tpu.matmul %71, %72, %cst_22 {dimension_numbers = #tpu.dot_dimension_numbers<[1], [0], [0], [1], [0, 0, 1, 1], [], []>} : vector<8x128xbf16>, vector<128x512xbf16>, vector<8x512xf32> -> vector<8x512xf32>
    %74 = arith.addf %70, %73 : vector<8x512xf32>
    %75 = vector.extract_strided_slice %74 {offsets = [0, 0], sizes = [8, 128], strides = [1, 1]} : vector<8x512xf32> to vector<8x128xf32>
    %76 = arith.negf %75 : vector<8x128xf32>
    %77 = math.exp %76 : vector<8x128xf32>
    %cst_23 = arith.constant 1.000000e+00 : f32
    %78 = vector.broadcast %cst_23 : f32 to vector<8x128xf32>
    %79 = arith.addf %78, %77 : vector<8x128xf32>
    %80 = arith.divf %78, %79 : vector<8x128xf32>
    %81 = vector.extract_strided_slice %74 {offsets = [0, 128], sizes = [8, 128], strides = [1, 1]} : vector<8x512xf32> to vector<8x128xf32>
    %82 = arith.negf %81 : vector<8x128xf32>
    %83 = math.exp %82 : vector<8x128xf32>
    %cst_24 = arith.constant 1.000000e+00 : f32
    %84 = vector.broadcast %cst_24 : f32 to vector<8x128xf32>
    %85 = arith.addf %84, %83 : vector<8x128xf32>
    %86 = arith.divf %84, %85 : vector<8x128xf32>
    %87 = vector.extract_strided_slice %74 {offsets = [0, 256], sizes = [8, 128], strides = [1, 1]} : vector<8x512xf32> to vector<8x128xf32>
    %88 = math.tanh %87 : vector<8x128xf32>
    %89 = vector.extract_strided_slice %74 {offsets = [0, 384], sizes = [8, 128], strides = [1, 1]} : vector<8x512xf32> to vector<8x128xf32>
    %90 = arith.negf %89 : vector<8x128xf32>
    %91 = math.exp %90 : vector<8x128xf32>
    %cst_25 = arith.constant 1.000000e+00 : f32
    %92 = vector.broadcast %cst_25 : f32 to vector<8x128xf32>
    %93 = arith.addf %92, %91 : vector<8x128xf32>
    %94 = arith.divf %92, %93 : vector<8x128xf32>
    %95 = arith.mulf %86, %30 : vector<8x128xf32>
    %96 = arith.mulf %80, %88 : vector<8x128xf32>
    %97 = arith.addf %95, %96 : vector<8x128xf32>
    %98 = math.tanh %97 : vector<8x128xf32>
    %99 = arith.mulf %94, %98 : vector<8x128xf32>
    %c0_26 = arith.constant 0 : index
    %c0_27 = arith.constant 0 : index
    %100 = vector.load %arg4[%c0_26, %c0_27] : memref<1x512xf32, #tpu.memory_space<vmem>>, vector<1x512xf32>
    %101 = arith.truncf %99 : vector<8x128xf32> to vector<8x128xbf16>
    %c0_28 = arith.constant 0 : index
    %c0_29 = arith.constant 0 : index
    %102 = vector.load %arg2[%c0_28, %c0_29] : memref<128x512xbf16, #tpu.memory_space<vmem>>, vector<128x512xbf16>
    %cst_30 = arith.constant dense<0.000000e+00> : vector<8x512xf32>
    %103 = tpu.matmul %101, %102, %cst_30 {dimension_numbers = #tpu.dot_dimension_numbers<[1], [0], [0], [1], [0, 0, 1, 1], [], []>} : vector<8x128xbf16>, vector<128x512xbf16>, vector<8x512xf32> -> vector<8x512xf32>
    %104 = vector.broadcast %100 : vector<1x512xf32> to vector<8x512xf32>
    %105 = arith.addf %104, %103 : vector<8x512xf32>
    %106 = arith.truncf %67 : vector<8x128xf32> to vector<8x128xbf16>
    %c0_31 = arith.constant 0 : index
    %c0_32 = arith.constant 0 : index
    %107 = vector.load %arg3[%c0_31, %c0_32] : memref<128x512xbf16, #tpu.memory_space<vmem>>, vector<128x512xbf16>
    %cst_33 = arith.constant dense<0.000000e+00> : vector<8x512xf32>
    %108 = tpu.matmul %106, %107, %cst_33 {dimension_numbers = #tpu.dot_dimension_numbers<[1], [0], [0], [1], [0, 0, 1, 1], [], []>} : vector<8x128xbf16>, vector<128x512xbf16>, vector<8x512xf32> -> vector<8x512xf32>
    %109 = arith.addf %105, %108 : vector<8x512xf32>
    %110 = vector.extract_strided_slice %109 {offsets = [0, 0], sizes = [8, 128], strides = [1, 1]} : vector<8x512xf32> to vector<8x128xf32>
    %111 = arith.negf %110 : vector<8x128xf32>
    %112 = math.exp %111 : vector<8x128xf32>
    %cst_34 = arith.constant 1.000000e+00 : f32
    %113 = vector.broadcast %cst_34 : f32 to vector<8x128xf32>
    %114 = arith.addf %113, %112 : vector<8x128xf32>
    %115 = arith.divf %113, %114 : vector<8x128xf32>
    %116 = vector.extract_strided_slice %109 {offsets = [0, 128], sizes = [8, 128], strides = [1, 1]} : vector<8x512xf32> to vector<8x128xf32>
    %117 = arith.negf %116 : vector<8x128xf32>
    %118 = math.exp %117 : vector<8x128xf32>
    %cst_35 = arith.constant 1.000000e+00 : f32
    %119 = vector.broadcast %cst_35 : f32 to vector<8x128xf32>
    %120 = arith.addf %119, %118 : vector<8x128xf32>
    %121 = arith.divf %119, %120 : vector<8x128xf32>
    %122 = vector.extract_strided_slice %109 {offsets = [0, 256], sizes = [8, 128], strides = [1, 1]} : vector<8x512xf32> to vector<8x128xf32>
    %123 = math.tanh %122 : vector<8x128xf32>
    %124 = vector.extract_strided_slice %109 {offsets = [0, 384], sizes = [8, 128], strides = [1, 1]} : vector<8x512xf32> to vector<8x128xf32>
    %125 = arith.negf %124 : vector<8x128xf32>
    %126 = math.exp %125 : vector<8x128xf32>
    %cst_36 = arith.constant 1.000000e+00 : f32
    %127 = vector.broadcast %cst_36 : f32 to vector<8x128xf32>
    %128 = arith.addf %127, %126 : vector<8x128xf32>
    %129 = arith.divf %127, %128 : vector<8x128xf32>
    %130 = arith.mulf %121, %65 : vector<8x128xf32>
    %131 = arith.mulf %115, %123 : vector<8x128xf32>
    %132 = arith.addf %130, %131 : vector<8x128xf32>
    %133 = math.tanh %132 : vector<8x128xf32>
    %134 = arith.mulf %129, %133 : vector<8x128xf32>
    %c2_i32 = arith.constant 2 : i32
    %135 = arith.index_cast %c2_i32 : i32 to index
    %c0_37 = arith.constant 0 : index
    %c0_38 = arith.constant 0 : index
    %136 = vector.load %arg0[%135, %c0_37, %c0_38] : memref<8x8x512xf32, #tpu.memory_space<vmem>>, vector<1x8x512xf32>
    %137 = vector.shape_cast %136 : vector<1x8x512xf32> to vector<8x512xf32>
    %138 = arith.truncf %99 : vector<8x128xf32> to vector<8x128xbf16>
    %c0_39 = arith.constant 0 : index
    %c0_40 = arith.constant 0 : index
    %139 = vector.load %arg1[%c0_39, %c0_40] : memref<128x512xbf16, #tpu.memory_space<vmem>>, vector<128x512xbf16>
    %cst_41 = arith.constant dense<0.000000e+00> : vector<8x512xf32>
    %140 = tpu.matmul %138, %139, %cst_41 {dimension_numbers = #tpu.dot_dimension_numbers<[1], [0], [0], [1], [0, 0, 1, 1], [], []>} : vector<8x128xbf16>, vector<128x512xbf16>, vector<8x512xf32> -> vector<8x512xf32>
    %141 = arith.addf %137, %140 : vector<8x512xf32>
    %142 = vector.extract_strided_slice %141 {offsets = [0, 0], sizes = [8, 128], strides = [1, 1]} : vector<8x512xf32> to vector<8x128xf32>
    %143 = arith.negf %142 : vector<8x128xf32>
    %144 = math.exp %143 : vector<8x128xf32>
    %cst_42 = arith.constant 1.000000e+00 : f32
    %145 = vector.broadcast %cst_42 : f32 to vector<8x128xf32>
    %146 = arith.addf %145, %144 : vector<8x128xf32>
    %147 = arith.divf %145, %146 : vector<8x128xf32>
    %148 = vector.extract_strided_slice %141 {offsets = [0, 128], sizes = [8, 128], strides = [1, 1]} : vector<8x512xf32> to vector<8x128xf32>
    %149 = arith.negf %148 : vector<8x128xf32>
    %150 = math.exp %149 : vector<8x128xf32>
    %cst_43 = arith.constant 1.000000e+00 : f32
    %151 = vector.broadcast %cst_43 : f32 to vector<8x128xf32>
    %152 = arith.addf %151, %150 : vector<8x128xf32>
    %153 = arith.divf %151, %152 : vector<8x128xf32>
    %154 = vector.extract_strided_slice %141 {offsets = [0, 256], sizes = [8, 128], strides = [1, 1]} : vector<8x512xf32> to vector<8x128xf32>
    %155 = math.tanh %154 : vector<8x128xf32>
    %156 = vector.extract_strided_slice %141 {offsets = [0, 384], sizes = [8, 128], strides = [1, 1]} : vector<8x512xf32> to vector<8x128xf32>
    %157 = arith.negf %156 : vector<8x128xf32>
    %158 = math.exp %157 : vector<8x128xf32>
    %cst_44 = arith.constant 1.000000e+00 : f32
    %159 = vector.broadcast %cst_44 : f32 to vector<8x128xf32>
    %160 = arith.addf %159, %158 : vector<8x128xf32>
    %161 = arith.divf %159, %160 : vector<8x128xf32>
    %162 = arith.mulf %153, %97 : vector<8x128xf32>
    %163 = arith.mulf %147, %155 : vector<8x128xf32>
    %164 = arith.addf %162, %163 : vector<8x128xf32>
    %165 = math.tanh %164 : vector<8x128xf32>
    %166 = arith.mulf %161, %165 : vector<8x128xf32>
    %c0_45 = arith.constant 0 : index
    %c0_46 = arith.constant 0 : index
    %167 = vector.load %arg4[%c0_45, %c0_46] : memref<1x512xf32, #tpu.memory_space<vmem>>, vector<1x512xf32>
    %168 = arith.truncf %166 : vector<8x128xf32> to vector<8x128xbf16>
    %c0_47 = arith.constant 0 : index
    %c0_48 = arith.constant 0 : index
    %169 = vector.load %arg2[%c0_47, %c0_48] : memref<128x512xbf16, #tpu.memory_space<vmem>>, vector<128x512xbf16>
    %cst_49 = arith.constant dense<0.000000e+00> : vector<8x512xf32>
    %170 = tpu.matmul %168, %169, %cst_49 {dimension_numbers = #tpu.dot_dimension_numbers<[1], [0], [0], [1], [0, 0, 1, 1], [], []>} : vector<8x128xbf16>, vector<128x512xbf16>, vector<8x512xf32> -> vector<8x512xf32>
    %171 = vector.broadcast %167 : vector<1x512xf32> to vector<8x512xf32>
    %172 = arith.addf %171, %170 : vector<8x512xf32>
    %173 = arith.truncf %134 : vector<8x128xf32> to vector<8x128xbf16>
    %c0_50 = arith.constant 0 : index
    %c0_51 = arith.constant 0 : index
    %174 = vector.load %arg3[%c0_50, %c0_51] : memref<128x512xbf16, #tpu.memory_space<vmem>>, vector<128x512xbf16>
    %cst_52 = arith.constant dense<0.000000e+00> : vector<8x512xf32>
    %175 = tpu.matmul %173, %174, %cst_52 {dimension_numbers = #tpu.dot_dimension_numbers<[1], [0], [0], [1], [0, 0, 1, 1], [], []>} : vector<8x128xbf16>, vector<128x512xbf16>, vector<8x512xf32> -> vector<8x512xf32>
    %176 = arith.addf %172, %175 : vector<8x512xf32>
    %177 = vector.extract_strided_slice %176 {offsets = [0, 0], sizes = [8, 128], strides = [1, 1]} : vector<8x512xf32> to vector<8x128xf32>
    %178 = arith.negf %177 : vector<8x128xf32>
    %179 = math.exp %178 : vector<8x128xf32>
    %cst_53 = arith.constant 1.000000e+00 : f32
    %180 = vector.broadcast %cst_53 : f32 to vector<8x128xf32>
    %181 = arith.addf %180, %179 : vector<8x128xf32>
    %182 = arith.divf %180, %181 : vector<8x128xf32>
    %183 = vector.extract_strided_slice %176 {offsets = [0, 128], sizes = [8, 128], strides = [1, 1]} : vector<8x512xf32> to vector<8x128xf32>
    %184 = arith.negf %183 : vector<8x128xf32>
    %185 = math.exp %184 : vector<8x128xf32>
    %cst_54 = arith.constant 1.000000e+00 : f32
    %186 = vector.broadcast %cst_54 : f32 to vector<8x128xf32>
    %187 = arith.addf %186, %185 : vector<8x128xf32>
    %188 = arith.divf %186, %187 : vector<8x128xf32>
    %189 = vector.extract_strided_slice %176 {offsets = [0, 256], sizes = [8, 128], strides = [1, 1]} : vector<8x512xf32> to vector<8x128xf32>
    %190 = math.tanh %189 : vector<8x128xf32>
    %191 = vector.extract_strided_slice %176 {offsets = [0, 384], sizes = [8, 128], strides = [1, 1]} : vector<8x512xf32> to vector<8x128xf32>
    %192 = arith.negf %191 : vector<8x128xf32>
    %193 = math.exp %192 : vector<8x128xf32>
    %cst_55 = arith.constant 1.000000e+00 : f32
    %194 = vector.broadcast %cst_55 : f32 to vector<8x128xf32>
    %195 = arith.addf %194, %193 : vector<8x128xf32>
    %196 = arith.divf %194, %195 : vector<8x128xf32>
    %197 = arith.mulf %188, %132 : vector<8x128xf32>
    %198 = arith.mulf %182, %190 : vector<8x128xf32>
    %199 = arith.addf %197, %198 : vector<8x128xf32>
    %200 = math.tanh %199 : vector<8x128xf32>
    %201 = arith.mulf %196, %200 : vector<8x128xf32>
    %c3_i32 = arith.constant 3 : i32
    %202 = arith.index_cast %c3_i32 : i32 to index
    %c0_56 = arith.constant 0 : index
    %c0_57 = arith.constant 0 : index
    %203 = vector.load %arg0[%202, %c0_56, %c0_57] : memref<8x8x512xf32, #tpu.memory_space<vmem>>, vector<1x8x512xf32>
    %204 = vector.shape_cast %203 : vector<1x8x512xf32> to vector<8x512xf32>
    %205 = arith.truncf %166 : vector<8x128xf32> to vector<8x128xbf16>
    %c0_58 = arith.constant 0 : index
    %c0_59 = arith.constant 0 : index
    %206 = vector.load %arg1[%c0_58, %c0_59] : memref<128x512xbf16, #tpu.memory_space<vmem>>, vector<128x512xbf16>
    %cst_60 = arith.constant dense<0.000000e+00> : vector<8x512xf32>
    %207 = tpu.matmul %205, %206, %cst_60 {dimension_numbers = #tpu.dot_dimension_numbers<[1], [0], [0], [1], [0, 0, 1, 1], [], []>} : vector<8x128xbf16>, vector<128x512xbf16>, vector<8x512xf32> -> vector<8x512xf32>
    %208 = arith.addf %204, %207 : vector<8x512xf32>
    %209 = vector.extract_strided_slice %208 {offsets = [0, 0], sizes = [8, 128], strides = [1, 1]} : vector<8x512xf32> to vector<8x128xf32>
    %210 = arith.negf %209 : vector<8x128xf32>
    %211 = math.exp %210 : vector<8x128xf32>
    %cst_61 = arith.constant 1.000000e+00 : f32
    %212 = vector.broadcast %cst_61 : f32 to vector<8x128xf32>
    %213 = arith.addf %212, %211 : vector<8x128xf32>
    %214 = arith.divf %212, %213 : vector<8x128xf32>
    %215 = vector.extract_strided_slice %208 {offsets = [0, 128], sizes = [8, 128], strides = [1, 1]} : vector<8x512xf32> to vector<8x128xf32>
    %216 = arith.negf %215 : vector<8x128xf32>
    %217 = math.exp %216 : vector<8x128xf32>
    %cst_62 = arith.constant 1.000000e+00 : f32
    %218 = vector.broadcast %cst_62 : f32 to vector<8x128xf32>
    %219 = arith.addf %218, %217 : vector<8x128xf32>
    %220 = arith.divf %218, %219 : vector<8x128xf32>
    %221 = vector.extract_strided_slice %208 {offsets = [0, 256], sizes = [8, 128], strides = [1, 1]} : vector<8x512xf32> to vector<8x128xf32>
    %222 = math.tanh %221 : vector<8x128xf32>
    %223 = vector.extract_strided_slice %208 {offsets = [0, 384], sizes = [8, 128], strides = [1, 1]} : vector<8x512xf32> to vector<8x128xf32>
    %224 = arith.negf %223 : vector<8x128xf32>
    %225 = math.exp %224 : vector<8x128xf32>
    %cst_63 = arith.constant 1.000000e+00 : f32
    %226 = vector.broadcast %cst_63 : f32 to vector<8x128xf32>
    %227 = arith.addf %226, %225 : vector<8x128xf32>
    %228 = arith.divf %226, %227 : vector<8x128xf32>
    %229 = arith.mulf %220, %164 : vector<8x128xf32>
    %230 = arith.mulf %214, %222 : vector<8x128xf32>
    %231 = arith.addf %229, %230 : vector<8x128xf32>
    %232 = math.tanh %231 : vector<8x128xf32>
    %233 = arith.mulf %228, %232 : vector<8x128xf32>
    %c0_64 = arith.constant 0 : index
    %c0_65 = arith.constant 0 : index
    %234 = vector.load %arg4[%c0_64, %c0_65] : memref<1x512xf32, #tpu.memory_space<vmem>>, vector<1x512xf32>
    %235 = arith.truncf %233 : vector<8x128xf32> to vector<8x128xbf16>
    %c0_66 = arith.constant 0 : index
    %c0_67 = arith.constant 0 : index
    %236 = vector.load %arg2[%c0_66, %c0_67] : memref<128x512xbf16, #tpu.memory_space<vmem>>, vector<128x512xbf16>
    %cst_68 = arith.constant dense<0.000000e+00> : vector<8x512xf32>
    %237 = tpu.matmul %235, %236, %cst_68 {dimension_numbers = #tpu.dot_dimension_numbers<[1], [0], [0], [1], [0, 0, 1, 1], [], []>} : vector<8x128xbf16>, vector<128x512xbf16>, vector<8x512xf32> -> vector<8x512xf32>
    %238 = vector.broadcast %234 : vector<1x512xf32> to vector<8x512xf32>
    %239 = arith.addf %238, %237 : vector<8x512xf32>
    %240 = arith.truncf %201 : vector<8x128xf32> to vector<8x128xbf16>
    %c0_69 = arith.constant 0 : index
    %c0_70 = arith.constant 0 : index
    %241 = vector.load %arg3[%c0_69, %c0_70] : memref<128x512xbf16, #tpu.memory_space<vmem>>, vector<128x512xbf16>
    %cst_71 = arith.constant dense<0.000000e+00> : vector<8x512xf32>
    %242 = tpu.matmul %240, %241, %cst_71 {dimension_numbers = #tpu.dot_dimension_numbers<[1], [0], [0], [1], [0, 0, 1, 1], [], []>} : vector<8x128xbf16>, vector<128x512xbf16>, vector<8x512xf32> -> vector<8x512xf32>
    %243 = arith.addf %239, %242 : vector<8x512xf32>
    %244 = vector.extract_strided_slice %243 {offsets = [0, 0], sizes = [8, 128], strides = [1, 1]} : vector<8x512xf32> to vector<8x128xf32>
    %245 = arith.negf %244 : vector<8x128xf32>
    %246 = math.exp %245 : vector<8x128xf32>
    %cst_72 = arith.constant 1.000000e+00 : f32
    %247 = vector.broadcast %cst_72 : f32 to vector<8x128xf32>
    %248 = arith.addf %247, %246 : vector<8x128xf32>
    %249 = arith.divf %247, %248 : vector<8x128xf32>
    %250 = vector.extract_strided_slice %243 {offsets = [0, 128], sizes = [8, 128], strides = [1, 1]} : vector<8x512xf32> to vector<8x128xf32>
    %251 = arith.negf %250 : vector<8x128xf32>
    %252 = math.exp %251 : vector<8x128xf32>
    %cst_73 = arith.constant 1.000000e+00 : f32
    %253 = vector.broadcast %cst_73 : f32 to vector<8x128xf32>
    %254 = arith.addf %253, %252 : vector<8x128xf32>
    %255 = arith.divf %253, %254 : vector<8x128xf32>
    %256 = vector.extract_strided_slice %243 {offsets = [0, 256], sizes = [8, 128], strides = [1, 1]} : vector<8x512xf32> to vector<8x128xf32>
    %257 = math.tanh %256 : vector<8x128xf32>
    %258 = vector.extract_strided_slice %243 {offsets = [0, 384], sizes = [8, 128], strides = [1, 1]} : vector<8x512xf32> to vector<8x128xf32>
    %259 = arith.negf %258 : vector<8x128xf32>
    %260 = math.exp %259 : vector<8x128xf32>
    %cst_74 = arith.constant 1.000000e+00 : f32
    %261 = vector.broadcast %cst_74 : f32 to vector<8x128xf32>
    %262 = arith.addf %261, %260 : vector<8x128xf32>
    %263 = arith.divf %261, %262 : vector<8x128xf32>
    %264 = arith.mulf %255, %199 : vector<8x128xf32>
    %265 = arith.mulf %249, %257 : vector<8x128xf32>
    %266 = arith.addf %264, %265 : vector<8x128xf32>
    %267 = math.tanh %266 : vector<8x128xf32>
    %268 = arith.mulf %263, %267 : vector<8x128xf32>
    %c4_i32 = arith.constant 4 : i32
    %269 = arith.index_cast %c4_i32 : i32 to index
    %c0_75 = arith.constant 0 : index
    %c0_76 = arith.constant 0 : index
    %270 = vector.load %arg0[%269, %c0_75, %c0_76] : memref<8x8x512xf32, #tpu.memory_space<vmem>>, vector<1x8x512xf32>
    %271 = vector.shape_cast %270 : vector<1x8x512xf32> to vector<8x512xf32>
    %272 = arith.truncf %233 : vector<8x128xf32> to vector<8x128xbf16>
    %c0_77 = arith.constant 0 : index
    %c0_78 = arith.constant 0 : index
    %273 = vector.load %arg1[%c0_77, %c0_78] : memref<128x512xbf16, #tpu.memory_space<vmem>>, vector<128x512xbf16>
    %cst_79 = arith.constant dense<0.000000e+00> : vector<8x512xf32>
    %274 = tpu.matmul %272, %273, %cst_79 {dimension_numbers = #tpu.dot_dimension_numbers<[1], [0], [0], [1], [0, 0, 1, 1], [], []>} : vector<8x128xbf16>, vector<128x512xbf16>, vector<8x512xf32> -> vector<8x512xf32>
    %275 = arith.addf %271, %274 : vector<8x512xf32>
    %276 = vector.extract_strided_slice %275 {offsets = [0, 0], sizes = [8, 128], strides = [1, 1]} : vector<8x512xf32> to vector<8x128xf32>
    %277 = arith.negf %276 : vector<8x128xf32>
    %278 = math.exp %277 : vector<8x128xf32>
    %cst_80 = arith.constant 1.000000e+00 : f32
    %279 = vector.broadcast %cst_80 : f32 to vector<8x128xf32>
    %280 = arith.addf %279, %278 : vector<8x128xf32>
    %281 = arith.divf %279, %280 : vector<8x128xf32>
    %282 = vector.extract_strided_slice %275 {offsets = [0, 128], sizes = [8, 128], strides = [1, 1]} : vector<8x512xf32> to vector<8x128xf32>
    %283 = arith.negf %282 : vector<8x128xf32>
    %284 = math.exp %283 : vector<8x128xf32>
    %cst_81 = arith.constant 1.000000e+00 : f32
    %285 = vector.broadcast %cst_81 : f32 to vector<8x128xf32>
    %286 = arith.addf %285, %284 : vector<8x128xf32>
    %287 = arith.divf %285, %286 : vector<8x128xf32>
    %288 = vector.extract_strided_slice %275 {offsets = [0, 256], sizes = [8, 128], strides = [1, 1]} : vector<8x512xf32> to vector<8x128xf32>
    %289 = math.tanh %288 : vector<8x128xf32>
    %290 = vector.extract_strided_slice %275 {offsets = [0, 384], sizes = [8, 128], strides = [1, 1]} : vector<8x512xf32> to vector<8x128xf32>
    %291 = arith.negf %290 : vector<8x128xf32>
    %292 = math.exp %291 : vector<8x128xf32>
    %cst_82 = arith.constant 1.000000e+00 : f32
    %293 = vector.broadcast %cst_82 : f32 to vector<8x128xf32>
    %294 = arith.addf %293, %292 : vector<8x128xf32>
    %295 = arith.divf %293, %294 : vector<8x128xf32>
    %296 = arith.mulf %287, %231 : vector<8x128xf32>
    %297 = arith.mulf %281, %289 : vector<8x128xf32>
    %298 = arith.addf %296, %297 : vector<8x128xf32>
    %299 = math.tanh %298 : vector<8x128xf32>
    %300 = arith.mulf %295, %299 : vector<8x128xf32>
    %c0_83 = arith.constant 0 : index
    %c0_84 = arith.constant 0 : index
    %301 = vector.load %arg4[%c0_83, %c0_84] : memref<1x512xf32, #tpu.memory_space<vmem>>, vector<1x512xf32>
    %302 = arith.truncf %300 : vector<8x128xf32> to vector<8x128xbf16>
    %c0_85 = arith.constant 0 : index
    %c0_86 = arith.constant 0 : index
    %303 = vector.load %arg2[%c0_85, %c0_86] : memref<128x512xbf16, #tpu.memory_space<vmem>>, vector<128x512xbf16>
    %cst_87 = arith.constant dense<0.000000e+00> : vector<8x512xf32>
    %304 = tpu.matmul %302, %303, %cst_87 {dimension_numbers = #tpu.dot_dimension_numbers<[1], [0], [0], [1], [0, 0, 1, 1], [], []>} : vector<8x128xbf16>, vector<128x512xbf16>, vector<8x512xf32> -> vector<8x512xf32>
    %305 = vector.broadcast %301 : vector<1x512xf32> to vector<8x512xf32>
    %306 = arith.addf %305, %304 : vector<8x512xf32>
    %307 = arith.truncf %268 : vector<8x128xf32> to vector<8x128xbf16>
    %c0_88 = arith.constant 0 : index
    %c0_89 = arith.constant 0 : index
    %308 = vector.load %arg3[%c0_88, %c0_89] : memref<128x512xbf16, #tpu.memory_space<vmem>>, vector<128x512xbf16>
    %cst_90 = arith.constant dense<0.000000e+00> : vector<8x512xf32>
    %309 = tpu.matmul %307, %308, %cst_90 {dimension_numbers = #tpu.dot_dimension_numbers<[1], [0], [0], [1], [0, 0, 1, 1], [], []>} : vector<8x128xbf16>, vector<128x512xbf16>, vector<8x512xf32> -> vector<8x512xf32>
    %310 = arith.addf %306, %309 : vector<8x512xf32>
    %311 = vector.extract_strided_slice %310 {offsets = [0, 0], sizes = [8, 128], strides = [1, 1]} : vector<8x512xf32> to vector<8x128xf32>
    %312 = arith.negf %311 : vector<8x128xf32>
    %313 = math.exp %312 : vector<8x128xf32>
    %cst_91 = arith.constant 1.000000e+00 : f32
    %314 = vector.broadcast %cst_91 : f32 to vector<8x128xf32>
    %315 = arith.addf %314, %313 : vector<8x128xf32>
    %316 = arith.divf %314, %315 : vector<8x128xf32>
    %317 = vector.extract_strided_slice %310 {offsets = [0, 128], sizes = [8, 128], strides = [1, 1]} : vector<8x512xf32> to vector<8x128xf32>
    %318 = arith.negf %317 : vector<8x128xf32>
    %319 = math.exp %318 : vector<8x128xf32>
    %cst_92 = arith.constant 1.000000e+00 : f32
    %320 = vector.broadcast %cst_92 : f32 to vector<8x128xf32>
    %321 = arith.addf %320, %319 : vector<8x128xf32>
    %322 = arith.divf %320, %321 : vector<8x128xf32>
    %323 = vector.extract_strided_slice %310 {offsets = [0, 256], sizes = [8, 128], strides = [1, 1]} : vector<8x512xf32> to vector<8x128xf32>
    %324 = math.tanh %323 : vector<8x128xf32>
    %325 = vector.extract_strided_slice %310 {offsets = [0, 384], sizes = [8, 128], strides = [1, 1]} : vector<8x512xf32> to vector<8x128xf32>
    %326 = arith.negf %325 : vector<8x128xf32>
    %327 = math.exp %326 : vector<8x128xf32>
    %cst_93 = arith.constant 1.000000e+00 : f32
    %328 = vector.broadcast %cst_93 : f32 to vector<8x128xf32>
    %329 = arith.addf %328, %327 : vector<8x128xf32>
    %330 = arith.divf %328, %329 : vector<8x128xf32>
    %331 = arith.mulf %322, %266 : vector<8x128xf32>
    %332 = arith.mulf %316, %324 : vector<8x128xf32>
    %333 = arith.addf %331, %332 : vector<8x128xf32>
    %334 = math.tanh %333 : vector<8x128xf32>
    %335 = arith.mulf %330, %334 : vector<8x128xf32>
    %c5_i32 = arith.constant 5 : i32
    %336 = arith.index_cast %c5_i32 : i32 to index
    %c0_94 = arith.constant 0 : index
    %c0_95 = arith.constant 0 : index
    %337 = vector.load %arg0[%336, %c0_94, %c0_95] : memref<8x8x512xf32, #tpu.memory_space<vmem>>, vector<1x8x512xf32>
    %338 = vector.shape_cast %337 : vector<1x8x512xf32> to vector<8x512xf32>
    %339 = arith.truncf %300 : vector<8x128xf32> to vector<8x128xbf16>
    %c0_96 = arith.constant 0 : index
    %c0_97 = arith.constant 0 : index
    %340 = vector.load %arg1[%c0_96, %c0_97] : memref<128x512xbf16, #tpu.memory_space<vmem>>, vector<128x512xbf16>
    %cst_98 = arith.constant dense<0.000000e+00> : vector<8x512xf32>
    %341 = tpu.matmul %339, %340, %cst_98 {dimension_numbers = #tpu.dot_dimension_numbers<[1], [0], [0], [1], [0, 0, 1, 1], [], []>} : vector<8x128xbf16>, vector<128x512xbf16>, vector<8x512xf32> -> vector<8x512xf32>
    %342 = arith.addf %338, %341 : vector<8x512xf32>
    %343 = vector.extract_strided_slice %342 {offsets = [0, 0], sizes = [8, 128], strides = [1, 1]} : vector<8x512xf32> to vector<8x128xf32>
    %344 = arith.negf %343 : vector<8x128xf32>
    %345 = math.exp %344 : vector<8x128xf32>
    %cst_99 = arith.constant 1.000000e+00 : f32
    %346 = vector.broadcast %cst_99 : f32 to vector<8x128xf32>
    %347 = arith.addf %346, %345 : vector<8x128xf32>
    %348 = arith.divf %346, %347 : vector<8x128xf32>
    %349 = vector.extract_strided_slice %342 {offsets = [0, 128], sizes = [8, 128], strides = [1, 1]} : vector<8x512xf32> to vector<8x128xf32>
    %350 = arith.negf %349 : vector<8x128xf32>
    %351 = math.exp %350 : vector<8x128xf32>
    %cst_100 = arith.constant 1.000000e+00 : f32
    %352 = vector.broadcast %cst_100 : f32 to vector<8x128xf32>
    %353 = arith.addf %352, %351 : vector<8x128xf32>
    %354 = arith.divf %352, %353 : vector<8x128xf32>
    %355 = vector.extract_strided_slice %342 {offsets = [0, 256], sizes = [8, 128], strides = [1, 1]} : vector<8x512xf32> to vector<8x128xf32>
    %356 = math.tanh %355 : vector<8x128xf32>
    %357 = vector.extract_strided_slice %342 {offsets = [0, 384], sizes = [8, 128], strides = [1, 1]} : vector<8x512xf32> to vector<8x128xf32>
    %358 = arith.negf %357 : vector<8x128xf32>
    %359 = math.exp %358 : vector<8x128xf32>
    %cst_101 = arith.constant 1.000000e+00 : f32
    %360 = vector.broadcast %cst_101 : f32 to vector<8x128xf32>
    %361 = arith.addf %360, %359 : vector<8x128xf32>
    %362 = arith.divf %360, %361 : vector<8x128xf32>
    %363 = arith.mulf %354, %298 : vector<8x128xf32>
    %364 = arith.mulf %348, %356 : vector<8x128xf32>
    %365 = arith.addf %363, %364 : vector<8x128xf32>
    %366 = math.tanh %365 : vector<8x128xf32>
    %367 = arith.mulf %362, %366 : vector<8x128xf32>
    %c0_102 = arith.constant 0 : index
    %c0_103 = arith.constant 0 : index
    %368 = vector.load %arg4[%c0_102, %c0_103] : memref<1x512xf32, #tpu.memory_space<vmem>>, vector<1x512xf32>
    %369 = arith.truncf %367 : vector<8x128xf32> to vector<8x128xbf16>
    %c0_104 = arith.constant 0 : index
    %c0_105 = arith.constant 0 : index
    %370 = vector.load %arg2[%c0_104, %c0_105] : memref<128x512xbf16, #tpu.memory_space<vmem>>, vector<128x512xbf16>
    %cst_106 = arith.constant dense<0.000000e+00> : vector<8x512xf32>
    %371 = tpu.matmul %369, %370, %cst_106 {dimension_numbers = #tpu.dot_dimension_numbers<[1], [0], [0], [1], [0, 0, 1, 1], [], []>} : vector<8x128xbf16>, vector<128x512xbf16>, vector<8x512xf32> -> vector<8x512xf32>
    %372 = vector.broadcast %368 : vector<1x512xf32> to vector<8x512xf32>
    %373 = arith.addf %372, %371 : vector<8x512xf32>
    %374 = arith.truncf %335 : vector<8x128xf32> to vector<8x128xbf16>
    %c0_107 = arith.constant 0 : index
    %c0_108 = arith.constant 0 : index
    %375 = vector.load %arg3[%c0_107, %c0_108] : memref<128x512xbf16, #tpu.memory_space<vmem>>, vector<128x512xbf16>
    %cst_109 = arith.constant dense<0.000000e+00> : vector<8x512xf32>
    %376 = tpu.matmul %374, %375, %cst_109 {dimension_numbers = #tpu.dot_dimension_numbers<[1], [0], [0], [1], [0, 0, 1, 1], [], []>} : vector<8x128xbf16>, vector<128x512xbf16>, vector<8x512xf32> -> vector<8x512xf32>
    %377 = arith.addf %373, %376 : vector<8x512xf32>
    %378 = vector.extract_strided_slice %377 {offsets = [0, 0], sizes = [8, 128], strides = [1, 1]} : vector<8x512xf32> to vector<8x128xf32>
    %379 = arith.negf %378 : vector<8x128xf32>
    %380 = math.exp %379 : vector<8x128xf32>
    %cst_110 = arith.constant 1.000000e+00 : f32
    %381 = vector.broadcast %cst_110 : f32 to vector<8x128xf32>
    %382 = arith.addf %381, %380 : vector<8x128xf32>
    %383 = arith.divf %381, %382 : vector<8x128xf32>
    %384 = vector.extract_strided_slice %377 {offsets = [0, 128], sizes = [8, 128], strides = [1, 1]} : vector<8x512xf32> to vector<8x128xf32>
    %385 = arith.negf %384 : vector<8x128xf32>
    %386 = math.exp %385 : vector<8x128xf32>
    %cst_111 = arith.constant 1.000000e+00 : f32
    %387 = vector.broadcast %cst_111 : f32 to vector<8x128xf32>
    %388 = arith.addf %387, %386 : vector<8x128xf32>
    %389 = arith.divf %387, %388 : vector<8x128xf32>
    %390 = vector.extract_strided_slice %377 {offsets = [0, 256], sizes = [8, 128], strides = [1, 1]} : vector<8x512xf32> to vector<8x128xf32>
    %391 = math.tanh %390 : vector<8x128xf32>
    %392 = vector.extract_strided_slice %377 {offsets = [0, 384], sizes = [8, 128], strides = [1, 1]} : vector<8x512xf32> to vector<8x128xf32>
    %393 = arith.negf %392 : vector<8x128xf32>
    %394 = math.exp %393 : vector<8x128xf32>
    %cst_112 = arith.constant 1.000000e+00 : f32
    %395 = vector.broadcast %cst_112 : f32 to vector<8x128xf32>
    %396 = arith.addf %395, %394 : vector<8x128xf32>
    %397 = arith.divf %395, %396 : vector<8x128xf32>
    %398 = arith.mulf %389, %333 : vector<8x128xf32>
    %399 = arith.mulf %383, %391 : vector<8x128xf32>
    %400 = arith.addf %398, %399 : vector<8x128xf32>
    %401 = math.tanh %400 : vector<8x128xf32>
    %402 = arith.mulf %397, %401 : vector<8x128xf32>
    %c6_i32 = arith.constant 6 : i32
    %403 = arith.index_cast %c6_i32 : i32 to index
    %c0_113 = arith.constant 0 : index
    %c0_114 = arith.constant 0 : index
    %404 = vector.load %arg0[%403, %c0_113, %c0_114] : memref<8x8x512xf32, #tpu.memory_space<vmem>>, vector<1x8x512xf32>
    %405 = vector.shape_cast %404 : vector<1x8x512xf32> to vector<8x512xf32>
    %406 = arith.truncf %367 : vector<8x128xf32> to vector<8x128xbf16>
    %c0_115 = arith.constant 0 : index
    %c0_116 = arith.constant 0 : index
    %407 = vector.load %arg1[%c0_115, %c0_116] : memref<128x512xbf16, #tpu.memory_space<vmem>>, vector<128x512xbf16>
    %cst_117 = arith.constant dense<0.000000e+00> : vector<8x512xf32>
    %408 = tpu.matmul %406, %407, %cst_117 {dimension_numbers = #tpu.dot_dimension_numbers<[1], [0], [0], [1], [0, 0, 1, 1], [], []>} : vector<8x128xbf16>, vector<128x512xbf16>, vector<8x512xf32> -> vector<8x512xf32>
    %409 = arith.addf %405, %408 : vector<8x512xf32>
    %410 = vector.extract_strided_slice %409 {offsets = [0, 0], sizes = [8, 128], strides = [1, 1]} : vector<8x512xf32> to vector<8x128xf32>
    %411 = arith.negf %410 : vector<8x128xf32>
    %412 = math.exp %411 : vector<8x128xf32>
    %cst_118 = arith.constant 1.000000e+00 : f32
    %413 = vector.broadcast %cst_118 : f32 to vector<8x128xf32>
    %414 = arith.addf %413, %412 : vector<8x128xf32>
    %415 = arith.divf %413, %414 : vector<8x128xf32>
    %416 = vector.extract_strided_slice %409 {offsets = [0, 128], sizes = [8, 128], strides = [1, 1]} : vector<8x512xf32> to vector<8x128xf32>
    %417 = arith.negf %416 : vector<8x128xf32>
    %418 = math.exp %417 : vector<8x128xf32>
    %cst_119 = arith.constant 1.000000e+00 : f32
    %419 = vector.broadcast %cst_119 : f32 to vector<8x128xf32>
    %420 = arith.addf %419, %418 : vector<8x128xf32>
    %421 = arith.divf %419, %420 : vector<8x128xf32>
    %422 = vector.extract_strided_slice %409 {offsets = [0, 256], sizes = [8, 128], strides = [1, 1]} : vector<8x512xf32> to vector<8x128xf32>
    %423 = math.tanh %422 : vector<8x128xf32>
    %424 = vector.extract_strided_slice %409 {offsets = [0, 384], sizes = [8, 128], strides = [1, 1]} : vector<8x512xf32> to vector<8x128xf32>
    %425 = arith.negf %424 : vector<8x128xf32>
    %426 = math.exp %425 : vector<8x128xf32>
    %cst_120 = arith.constant 1.000000e+00 : f32
    %427 = vector.broadcast %cst_120 : f32 to vector<8x128xf32>
    %428 = arith.addf %427, %426 : vector<8x128xf32>
    %429 = arith.divf %427, %428 : vector<8x128xf32>
    %430 = arith.mulf %421, %365 : vector<8x128xf32>
    %431 = arith.mulf %415, %423 : vector<8x128xf32>
    %432 = arith.addf %430, %431 : vector<8x128xf32>
    %433 = math.tanh %432 : vector<8x128xf32>
    %434 = arith.mulf %429, %433 : vector<8x128xf32>
    %c0_121 = arith.constant 0 : index
    %c0_122 = arith.constant 0 : index
    %435 = vector.load %arg4[%c0_121, %c0_122] : memref<1x512xf32, #tpu.memory_space<vmem>>, vector<1x512xf32>
    %436 = arith.truncf %434 : vector<8x128xf32> to vector<8x128xbf16>
    %c0_123 = arith.constant 0 : index
    %c0_124 = arith.constant 0 : index
    %437 = vector.load %arg2[%c0_123, %c0_124] : memref<128x512xbf16, #tpu.memory_space<vmem>>, vector<128x512xbf16>
    %cst_125 = arith.constant dense<0.000000e+00> : vector<8x512xf32>
    %438 = tpu.matmul %436, %437, %cst_125 {dimension_numbers = #tpu.dot_dimension_numbers<[1], [0], [0], [1], [0, 0, 1, 1], [], []>} : vector<8x128xbf16>, vector<128x512xbf16>, vector<8x512xf32> -> vector<8x512xf32>
    %439 = vector.broadcast %435 : vector<1x512xf32> to vector<8x512xf32>
    %440 = arith.addf %439, %438 : vector<8x512xf32>
    %441 = arith.truncf %402 : vector<8x128xf32> to vector<8x128xbf16>
    %c0_126 = arith.constant 0 : index
    %c0_127 = arith.constant 0 : index
    %442 = vector.load %arg3[%c0_126, %c0_127] : memref<128x512xbf16, #tpu.memory_space<vmem>>, vector<128x512xbf16>
    %cst_128 = arith.constant dense<0.000000e+00> : vector<8x512xf32>
    %443 = tpu.matmul %441, %442, %cst_128 {dimension_numbers = #tpu.dot_dimension_numbers<[1], [0], [0], [1], [0, 0, 1, 1], [], []>} : vector<8x128xbf16>, vector<128x512xbf16>, vector<8x512xf32> -> vector<8x512xf32>
    %444 = arith.addf %440, %443 : vector<8x512xf32>
    %445 = vector.extract_strided_slice %444 {offsets = [0, 0], sizes = [8, 128], strides = [1, 1]} : vector<8x512xf32> to vector<8x128xf32>
    %446 = arith.negf %445 : vector<8x128xf32>
    %447 = math.exp %446 : vector<8x128xf32>
    %cst_129 = arith.constant 1.000000e+00 : f32
    %448 = vector.broadcast %cst_129 : f32 to vector<8x128xf32>
    %449 = arith.addf %448, %447 : vector<8x128xf32>
    %450 = arith.divf %448, %449 : vector<8x128xf32>
    %451 = vector.extract_strided_slice %444 {offsets = [0, 128], sizes = [8, 128], strides = [1, 1]} : vector<8x512xf32> to vector<8x128xf32>
    %452 = arith.negf %451 : vector<8x128xf32>
    %453 = math.exp %452 : vector<8x128xf32>
    %cst_130 = arith.constant 1.000000e+00 : f32
    %454 = vector.broadcast %cst_130 : f32 to vector<8x128xf32>
    %455 = arith.addf %454, %453 : vector<8x128xf32>
    %456 = arith.divf %454, %455 : vector<8x128xf32>
    %457 = vector.extract_strided_slice %444 {offsets = [0, 256], sizes = [8, 128], strides = [1, 1]} : vector<8x512xf32> to vector<8x128xf32>
    %458 = math.tanh %457 : vector<8x128xf32>
    %459 = vector.extract_strided_slice %444 {offsets = [0, 384], sizes = [8, 128], strides = [1, 1]} : vector<8x512xf32> to vector<8x128xf32>
    %460 = arith.negf %459 : vector<8x128xf32>
    %461 = math.exp %460 : vector<8x128xf32>
    %cst_131 = arith.constant 1.000000e+00 : f32
    %462 = vector.broadcast %cst_131 : f32 to vector<8x128xf32>
    %463 = arith.addf %462, %461 : vector<8x128xf32>
    %464 = arith.divf %462, %463 : vector<8x128xf32>
    %465 = arith.mulf %456, %400 : vector<8x128xf32>
    %466 = arith.mulf %450, %458 : vector<8x128xf32>
    %467 = arith.addf %465, %466 : vector<8x128xf32>
    %468 = math.tanh %467 : vector<8x128xf32>
    %469 = arith.mulf %464, %468 : vector<8x128xf32>
    %c7_i32 = arith.constant 7 : i32
    %470 = arith.index_cast %c7_i32 : i32 to index
    %c0_132 = arith.constant 0 : index
    %c0_133 = arith.constant 0 : index
    %471 = vector.load %arg0[%470, %c0_132, %c0_133] : memref<8x8x512xf32, #tpu.memory_space<vmem>>, vector<1x8x512xf32>
    %472 = vector.shape_cast %471 : vector<1x8x512xf32> to vector<8x512xf32>
    %473 = arith.truncf %434 : vector<8x128xf32> to vector<8x128xbf16>
    %c0_134 = arith.constant 0 : index
    %c0_135 = arith.constant 0 : index
    %474 = vector.load %arg1[%c0_134, %c0_135] : memref<128x512xbf16, #tpu.memory_space<vmem>>, vector<128x512xbf16>
    %cst_136 = arith.constant dense<0.000000e+00> : vector<8x512xf32>
    %475 = tpu.matmul %473, %474, %cst_136 {dimension_numbers = #tpu.dot_dimension_numbers<[1], [0], [0], [1], [0, 0, 1, 1], [], []>} : vector<8x128xbf16>, vector<128x512xbf16>, vector<8x512xf32> -> vector<8x512xf32>
    %476 = arith.addf %472, %475 : vector<8x512xf32>
    %477 = vector.extract_strided_slice %476 {offsets = [0, 0], sizes = [8, 128], strides = [1, 1]} : vector<8x512xf32> to vector<8x128xf32>
    %478 = arith.negf %477 : vector<8x128xf32>
    %479 = math.exp %478 : vector<8x128xf32>
    %cst_137 = arith.constant 1.000000e+00 : f32
    %480 = vector.broadcast %cst_137 : f32 to vector<8x128xf32>
    %481 = arith.addf %480, %479 : vector<8x128xf32>
    %482 = arith.divf %480, %481 : vector<8x128xf32>
    %483 = vector.extract_strided_slice %476 {offsets = [0, 128], sizes = [8, 128], strides = [1, 1]} : vector<8x512xf32> to vector<8x128xf32>
    %484 = arith.negf %483 : vector<8x128xf32>
    %485 = math.exp %484 : vector<8x128xf32>
    %cst_138 = arith.constant 1.000000e+00 : f32
    %486 = vector.broadcast %cst_138 : f32 to vector<8x128xf32>
    %487 = arith.addf %486, %485 : vector<8x128xf32>
    %488 = arith.divf %486, %487 : vector<8x128xf32>
    %489 = vector.extract_strided_slice %476 {offsets = [0, 256], sizes = [8, 128], strides = [1, 1]} : vector<8x512xf32> to vector<8x128xf32>
    %490 = math.tanh %489 : vector<8x128xf32>
    %491 = vector.extract_strided_slice %476 {offsets = [0, 384], sizes = [8, 128], strides = [1, 1]} : vector<8x512xf32> to vector<8x128xf32>
    %492 = arith.negf %491 : vector<8x128xf32>
    %493 = math.exp %492 : vector<8x128xf32>
    %cst_139 = arith.constant 1.000000e+00 : f32
    %494 = vector.broadcast %cst_139 : f32 to vector<8x128xf32>
    %495 = arith.addf %494, %493 : vector<8x128xf32>
    %496 = arith.divf %494, %495 : vector<8x128xf32>
    %497 = arith.mulf %488, %432 : vector<8x128xf32>
    %498 = arith.mulf %482, %490 : vector<8x128xf32>
    %499 = arith.addf %497, %498 : vector<8x128xf32>
    %500 = math.tanh %499 : vector<8x128xf32>
    %501 = arith.mulf %496, %500 : vector<8x128xf32>
    %c0_140 = arith.constant 0 : index
    %c0_141 = arith.constant 0 : index
    %502 = vector.load %arg4[%c0_140, %c0_141] : memref<1x512xf32, #tpu.memory_space<vmem>>, vector<1x512xf32>
    %503 = arith.truncf %501 : vector<8x128xf32> to vector<8x128xbf16>
    %c0_142 = arith.constant 0 : index
    %c0_143 = arith.constant 0 : index
    %504 = vector.load %arg2[%c0_142, %c0_143] : memref<128x512xbf16, #tpu.memory_space<vmem>>, vector<128x512xbf16>
    %cst_144 = arith.constant dense<0.000000e+00> : vector<8x512xf32>
    %505 = tpu.matmul %503, %504, %cst_144 {dimension_numbers = #tpu.dot_dimension_numbers<[1], [0], [0], [1], [0, 0, 1, 1], [], []>} : vector<8x128xbf16>, vector<128x512xbf16>, vector<8x512xf32> -> vector<8x512xf32>
    %506 = vector.broadcast %502 : vector<1x512xf32> to vector<8x512xf32>
    %507 = arith.addf %506, %505 : vector<8x512xf32>
    %508 = arith.truncf %469 : vector<8x128xf32> to vector<8x128xbf16>
    %c0_145 = arith.constant 0 : index
    %c0_146 = arith.constant 0 : index
    %509 = vector.load %arg3[%c0_145, %c0_146] : memref<128x512xbf16, #tpu.memory_space<vmem>>, vector<128x512xbf16>
    %cst_147 = arith.constant dense<0.000000e+00> : vector<8x512xf32>
    %510 = tpu.matmul %508, %509, %cst_147 {dimension_numbers = #tpu.dot_dimension_numbers<[1], [0], [0], [1], [0, 0, 1, 1], [], []>} : vector<8x128xbf16>, vector<128x512xbf16>, vector<8x512xf32> -> vector<8x512xf32>
    %511 = arith.addf %507, %510 : vector<8x512xf32>
    %512 = vector.extract_strided_slice %511 {offsets = [0, 0], sizes = [8, 128], strides = [1, 1]} : vector<8x512xf32> to vector<8x128xf32>
    %513 = arith.negf %512 : vector<8x128xf32>
    %514 = math.exp %513 : vector<8x128xf32>
    %cst_148 = arith.constant 1.000000e+00 : f32
    %515 = vector.broadcast %cst_148 : f32 to vector<8x128xf32>
    %516 = arith.addf %515, %514 : vector<8x128xf32>
    %517 = arith.divf %515, %516 : vector<8x128xf32>
    %518 = vector.extract_strided_slice %511 {offsets = [0, 128], sizes = [8, 128], strides = [1, 1]} : vector<8x512xf32> to vector<8x128xf32>
    %519 = arith.negf %518 : vector<8x128xf32>
    %520 = math.exp %519 : vector<8x128xf32>
    %cst_149 = arith.constant 1.000000e+00 : f32
    %521 = vector.broadcast %cst_149 : f32 to vector<8x128xf32>
    %522 = arith.addf %521, %520 : vector<8x128xf32>
    %523 = arith.divf %521, %522 : vector<8x128xf32>
    %524 = vector.extract_strided_slice %511 {offsets = [0, 256], sizes = [8, 128], strides = [1, 1]} : vector<8x512xf32> to vector<8x128xf32>
    %525 = math.tanh %524 : vector<8x128xf32>
    %526 = vector.extract_strided_slice %511 {offsets = [0, 384], sizes = [8, 128], strides = [1, 1]} : vector<8x512xf32> to vector<8x128xf32>
    %527 = arith.negf %526 : vector<8x128xf32>
    %528 = math.exp %527 : vector<8x128xf32>
    %cst_150 = arith.constant 1.000000e+00 : f32
    %529 = vector.broadcast %cst_150 : f32 to vector<8x128xf32>
    %530 = arith.addf %529, %528 : vector<8x128xf32>
    %531 = arith.divf %529, %530 : vector<8x128xf32>
    %532 = arith.mulf %523, %467 : vector<8x128xf32>
    %533 = arith.mulf %517, %525 : vector<8x128xf32>
    %534 = arith.addf %532, %533 : vector<8x128xf32>
    %535 = math.tanh %534 : vector<8x128xf32>
    %536 = arith.mulf %531, %535 : vector<8x128xf32>
    %c8_i32 = arith.constant 8 : i32
    %537 = arith.truncf %536 : vector<8x128xf32> to vector<8x128xbf16>
    %c0_151 = arith.constant 0 : index
    %c0_152 = arith.constant 0 : index
    %538 = vector.load %arg5[%c0_151, %c0_152] : memref<128x256xbf16, #tpu.memory_space<vmem>>, vector<128x256xbf16>
    %cst_153 = arith.constant dense<0.000000e+00> : vector<8x256xf32>
    %539 = tpu.matmul %537, %538, %cst_153 {dimension_numbers = #tpu.dot_dimension_numbers<[1], [0], [0], [1], [0, 0, 1, 1], [], []>} : vector<8x128xbf16>, vector<128x256xbf16>, vector<8x256xf32> -> vector<8x256xf32>
    %c0_154 = arith.constant 0 : index
    %c0_155 = arith.constant 0 : index
    %540 = vector.load %arg6[%c0_154, %c0_155] : memref<1x256xf32, #tpu.memory_space<vmem>>, vector<1x256xf32>
    %541 = vector.broadcast %540 : vector<1x256xf32> to vector<8x256xf32>
    %542 = arith.addf %539, %541 : vector<8x256xf32>
    %cst_156 = arith.constant 0.000000e+00 : f32
    %543 = vector.broadcast %cst_156 : f32 to vector<8x256xf32>
    %544 = arith.maximumf %542, %543 : vector<8x256xf32>
    %545 = arith.truncf %544 : vector<8x256xf32> to vector<8x256xbf16>
    %c0_157 = arith.constant 0 : index
    %c0_158 = arith.constant 0 : index
    %546 = vector.load %arg7[%c0_157, %c0_158] : memref<256x128xbf16, #tpu.memory_space<vmem>>, vector<256x128xbf16>
    %cst_159 = arith.constant dense<0.000000e+00> : vector<8x128xf32>
    %547 = tpu.matmul %545, %546, %cst_159 {dimension_numbers = #tpu.dot_dimension_numbers<[1], [0], [0], [1], [0, 0, 1, 1], [], []>} : vector<8x256xbf16>, vector<256x128xbf16>, vector<8x128xf32> -> vector<8x128xf32>
    %c0_160 = arith.constant 0 : index
    %c0_161 = arith.constant 0 : index
    %548 = vector.load %arg8[%c0_160, %c0_161] : memref<1x128xf32, #tpu.memory_space<vmem>>, vector<1x128xf32>
    %549 = vector.broadcast %548 : vector<1x128xf32> to vector<8x128xf32>
    %550 = arith.addf %547, %549 : vector<8x128xf32>
    %cst_162 = arith.constant 0.000000e+00 : f32
    %551 = vector.broadcast %cst_162 : f32 to vector<8x128xf32>
    %552 = arith.maximumf %550, %551 : vector<8x128xf32>
    %553 = arith.truncf %552 : vector<8x128xf32> to vector<8x128xbf16>
    %c0_163 = arith.constant 0 : index
    %c0_164 = arith.constant 0 : index
    %554 = vector.load %arg9[%c0_163, %c0_164] : memref<128x128xbf16, #tpu.memory_space<vmem>>, vector<128x128xbf16>
    %cst_165 = arith.constant dense<0.000000e+00> : vector<8x128xf32>
    %555 = tpu.matmul %553, %554, %cst_165 {dimension_numbers = #tpu.dot_dimension_numbers<[1], [0], [0], [1], [0, 0, 1, 1], [], []>} : vector<8x128xbf16>, vector<128x128xbf16>, vector<8x128xf32> -> vector<8x128xf32>
    %c0_166 = arith.constant 0 : index
    %c0_167 = arith.constant 0 : index
    %556 = vector.load %arg10[%c0_166, %c0_167] : memref<1x128xf32, #tpu.memory_space<vmem>>, vector<1x128xf32>
    %557 = vector.broadcast %556 : vector<1x128xf32> to vector<8x128xf32>
    %558 = arith.addf %555, %557 : vector<8x128xf32>
    %559 = arith.negf %558 : vector<8x128xf32>
    %560 = math.exp %559 : vector<8x128xf32>
    %cst_168 = arith.constant 1.000000e+00 : f32
    %561 = vector.broadcast %cst_168 : f32 to vector<8x128xf32>
    %562 = arith.addf %561, %560 : vector<8x128xf32>
    %563 = arith.divf %561, %562 : vector<8x128xf32>
    %c0_169 = arith.constant 0 : index
    %c0_170 = arith.constant 0 : index
    %564 = vector.load %arg11[%c0_169, %c0_170] : memref<8x128xf32, #tpu.memory_space<vmem>>, vector<8x128xf32>
    tpu.vector_store %arg11[%c0_169, %c0_170], %563 {strides = array<i32>} : memref<8x128xf32, #tpu.memory_space<vmem>>, vector<8x128xf32>,
    return
  }
}

</mosaic_0001>

<llo_original>
// kernel: network_forward.1
$region0: #{network_forward.1}
  #allocation0 [shape = 'u32[]', space=smem, size = 0x4, offset = 0x4, fixed_abs, tag = 'smem constant byte address 0x4 - core index']
  #allocation1 [shape = 'u32[144,128]{1,0:T(1,128)}', space=vmem, size = 0x12000, scoped, tag = 'internal scratch']
  %s0 = inlined_call_operand.vmem [shape: f32[8,8,512], index: 0, kind: input, shape index: {}]
  %s1 = inlined_call_operand.vmem [shape: bf16[128,512], index: 1, kind: input, shape index: {}]
  %s2 = inlined_call_operand.vmem [shape: bf16[128,512], index: 2, kind: input, shape index: {}]
  %s3 = inlined_call_operand.hbm [shape: bf16[128,512], index: 3, kind: input, shape index: {}]
  %s4 = inlined_call_operand.hbm [shape: f32[1,512], index: 4, kind: input, shape index: {}]
  %s5 = inlined_call_operand.hbm [shape: bf16[128,256], index: 5, kind: input, shape index: {}]
  %s6 = inlined_call_operand.vmem [shape: f32[1,256], index: 6, kind: input, shape index: {}]
  %s7 = inlined_call_operand.hbm [shape: bf16[256,128], index: 7, kind: input, shape index: {}]
  %s8 = inlined_call_operand.vmem [shape: f32[1,128], index: 8, kind: input, shape index: {}]
  %s9 = inlined_call_operand.vmem [shape: bf16[128,128], index: 9, kind: input, shape index: {}]
  %s10 = inlined_call_operand.hbm [shape: f32[1,128], index: 10, kind: input, shape index: {}]
  %s11 = inlined_call_operand.vmem [shape: f32[8,128], index: 11, kind: output, shape index: {}]
  %s12 = sld [smem:[#allocation0]]
  $region74: #{network_forward.1} parent=0
    _
  %s14 = ssub.s32 1, %s12
  %s15 = scalar_select 0, %s14, %s12
  $region1: #{network_forward.1} parent=0
    #allocation2 [shape = 'u8[131072]{0}', space=vmem, size = 0x20000, scoped, tag = 'input window, operand 3, single buffered']
    #allocation3 [shape = 's32[1]{0}', space=sflag, size = 0x4, scoped, tag = 'scoped memory for network_forward.1']
    #allocation4 [shape = 'u8[2048]{0}', space=vmem, size = 0x800, scoped, tag = 'input window, operand 4, single buffered']
    #allocation5 [shape = 's32[1]{0}', space=sflag, size = 0x4, scoped, tag = 'scoped memory for network_forward.1']
    #allocation6 [shape = 'u8[65536]{0}', space=vmem, size = 0x10000, scoped, tag = 'input window, operand 5, single buffered']
    #allocation7 [shape = 'u8[65536]{0}', space=vmem, size = 0x10000, scoped, tag = 'input window, operand 7, single buffered']
    #allocation8 [shape = 's32[1]{0}', space=sflag, size = 0x4, scoped, tag = 'scoped memory for network_forward.1']
    #allocation9 [shape = 'u8[512]{0}', space=vmem, size = 0x400, scoped, tag = 'input window, operand 10, single buffered']
    %16 = vsyncpa [#allocation3], 0
    %17 = vsyncpa [#allocation5], 0
    %18 = vsyncpa [#allocation8], 0
    // Predicated region
    $region2: #{network_forward.1} parent=1 // pred_check
      _
    $region3: #{network_forward.1} parent=1 // pred_check_branch
      %20 = sbr.rel (0) target = $region5
    $region4: #{network_forward.1} parent=1 // pred_region
      _
    $region5: #{network_forward.1} parent=1 // pred_fallthru
      _
    // Predicated region
    $region6: #{network_forward.1} parent=1 // pred_check
      _
    $region7: #{network_forward.1} parent=1 // pred_check_branch
      %22 = sbr.rel (0) target = $region9
    $region8: #{network_forward.1} parent=1 // pred_region
      _
    $region9: #{network_forward.1} parent=1 // pred_fallthru
      _
    // Predicated region
    $region10: #{network_forward.1} parent=1 // pred_check
      _
    $region11: #{network_forward.1} parent=1 // pred_check_branch
      %24 = sbr.rel (0) target = $region13
    $region12: #{network_forward.1} parent=1 // pred_region
      _
    $region13: #{network_forward.1} parent=1 // pred_fallthru
      _
    // Predicated region
    $region14: #{network_forward.1} parent=1 // pred_check
      _
    $region15: #{network_forward.1} parent=1 // pred_check_branch
      %26 = sbr.rel (0) target = $region17
    $region16: #{network_forward.1} parent=1 // pred_region
      %s28 = ssub.s32 4096, 4096
      %29 = vsyncadd [#allocation3], %s28
      %s30 = sshll.u32 [#allocation2], 4
      %s31 = int_to_ptr.vmem [resolvable:$true] %s30
      %36 = dma.hbm_to_vmem [thread:$0]  %s3, 4096, %s31, [#allocation3], 256, 256, 16
    $region17: #{network_forward.1} parent=1 // pred_fallthru
      _
    // Predicated region
    $region18: #{network_forward.1} parent=1 // pred_check
      _
    $region19: #{network_forward.1} parent=1 // pred_check_branch
      %38 = sbr.rel (0) target = $region21
    $region20: #{network_forward.1} parent=1 // pred_region
      %s40 = ssub.s32 64, 64
      %41 = vsyncadd [#allocation5], %s40
      %s43 = sshll.u32 [#allocation4], 4
      %s44 = int_to_ptr.vmem [resolvable:$true] %s43
      %46 = dma.hbm_to_vmem [thread:$0]  %s4, 64, %s44, [#allocation5]
    $region21: #{network_forward.1} parent=1 // pred_fallthru
      _
    // Predicated region
    $region22: #{network_forward.1} parent=1 // pred_check
      _
    $region23: #{network_forward.1} parent=1 // pred_check_branch
      %48 = sbr.rel (0) target = $region25
    $region24: #{network_forward.1} parent=1 // pred_region
      %s50 = ssub.s32 2048, 2048
      %51 = vsyncadd [#allocation5], %s50
      %s52 = sshll.u32 [#allocation6], 4
      %s53 = int_to_ptr.vmem [resolvable:$true] %s52
      %58 = dma.hbm_to_vmem [thread:$0]  %s5, 2048, %s53, [#allocation5], 128, 128, 8
    $region25: #{network_forward.1} parent=1 // pred_fallthru
      _
    // Predicated region
    $region26: #{network_forward.1} parent=1 // pred_check
      _
    $region27: #{network_forward.1} parent=1 // pred_check_branch
      %60 = sbr.rel (0) target = $region29
    $region28: #{network_forward.1} parent=1 // pred_region
      _
    $region29: #{network_forward.1} parent=1 // pred_fallthru
      _
    // Predicated region
    $region30: #{network_forward.1} parent=1 // pred_check
      _
    $region31: #{network_forward.1} parent=1 // pred_check_branch
      %62 = sbr.rel (0) target = $region33
    $region32: #{network_forward.1} parent=1 // pred_region
      %s64 = ssub.s32 2048, 2048
      %65 = vsyncadd [#allocation8], %s64
      %s66 = sshll.u32 [#allocation7], 4
      %s67 = int_to_ptr.vmem [resolvable:$true] %s66
      %72 = dma.hbm_to_vmem [thread:$0]  %s7, 2048, %s67, [#allocation8], 64, 64, 4
    $region33: #{network_forward.1} parent=1 // pred_fallthru
      _
    // Predicated region
    $region34: #{network_forward.1} parent=1 // pred_check
      _
    $region35: #{network_forward.1} parent=1 // pred_check_branch
      %74 = sbr.rel (0) target = $region37
    $region36: #{network_forward.1} parent=1 // pred_region
      _
    $region37: #{network_forward.1} parent=1 // pred_fallthru
      _
    // Predicated region
    $region38: #{network_forward.1} parent=1 // pred_check
      _
    $region39: #{network_forward.1} parent=1 // pred_check_branch
      %76 = sbr.rel (0) target = $region41
    $region40: #{network_forward.1} parent=1 // pred_region
      _
    $region41: #{network_forward.1} parent=1 // pred_fallthru
      _
    // Predicated region
    $region42: #{network_forward.1} parent=1 // pred_check
      _
    $region43: #{network_forward.1} parent=1 // pred_check_branch
      %78 = sbr.rel (0) target = $region45
    $region44: #{network_forward.1} parent=1 // pred_region
      %s80 = ssub.s32 16, 16
      %81 = vsyncadd [#allocation8], %s80
      %s83 = sshll.u32 [#allocation9], 4
      %s84 = int_to_ptr.vmem [resolvable:$true] %s83
      %86 = dma.hbm_to_vmem [thread:$0]  %s10, 16, %s84, [#allocation8]
    $region45: #{network_forward.1} parent=1 // pred_fallthru
      _
    // Predicated region
    $region46: #{network_forward.1} parent=1 // pred_check
      _
    $region47: #{network_forward.1} parent=1 // pred_check_branch
      %88 = sbr.rel (0) target = $region49
    $region48: #{network_forward.1} parent=1 // pred_region
      %89 = dma.done [#allocation3], 4096
    $region49: #{network_forward.1} parent=1 // pred_fallthru
      _
    // Predicated region
    $region50: #{network_forward.1} parent=1 // pred_check
      _
    $region51: #{network_forward.1} parent=1 // pred_check_branch
      %91 = sbr.rel (0) target = $region53
    $region52: #{network_forward.1} parent=1 // pred_region
      %92 = dma.done [#allocation5], 64
    $region53: #{network_forward.1} parent=1 // pred_fallthru
      _
    // Predicated region
    $region54: #{network_forward.1} parent=1 // pred_check
      _
    $region55: #{network_forward.1} parent=1 // pred_check_branch
      %94 = sbr.rel (0) target = $region57
    $region56: #{network_forward.1} parent=1 // pred_region
      %95 = dma.done [#allocation5], 2048
    $region57: #{network_forward.1} parent=1 // pred_fallthru
      _
    // Predicated region
    $region58: #{network_forward.1} parent=1 // pred_check
      _
    $region59: #{network_forward.1} parent=1 // pred_check_branch
      %97 = sbr.rel (0) target = $region61
    $region60: #{network_forward.1} parent=1 // pred_region
      %98 = dma.done [#allocation8], 2048
    $region61: #{network_forward.1} parent=1 // pred_fallthru
      _
    // Predicated region
    $region62: #{network_forward.1} parent=1 // pred_check
      _
    $region63: #{network_forward.1} parent=1 // pred_check_branch
      %100 = sbr.rel (0) target = $region65
    $region64: #{network_forward.1} parent=1 // pred_region
      %101 = dma.done [#allocation8], 16
    $region65: #{network_forward.1} parent=1 // pred_fallthru
      _
    %v103 = vld [vmem:[%s0] sm:$0xff]
    %v104 = vld [vmem:[%s0 + $0x8] sm:$0xff]
    %v105 = vld [vmem:[%s0 + $0x10] sm:$0xff]
    %v106 = vld [vmem:[%s0 + $0x18] sm:$0xff]
    %v107 = vld [vmem:[%s1] sm:$0xff]
    %v108 = vld [vmem:[%s1 + $0x8] sm:$0xff]
    %v109 = vld [vmem:[%s1 + $0x10] sm:$0xff]
    %v110 = vld [vmem:[%s1 + $0x18] sm:$0xff]
    %v111 = vld [vmem:[%s1 + $0x20] sm:$0xff]
    %v112 = vld [vmem:[%s1 + $0x28] sm:$0xff]
    %v113 = vld [vmem:[%s1 + $0x30] sm:$0xff]
    %v114 = vld [vmem:[%s1 + $0x38] sm:$0xff]
    %v115 = vld [vmem:[%s1 + $0x40] sm:$0xff]
    %v116 = vld [vmem:[%s1 + $0x48] sm:$0xff]
    %v117 = vld [vmem:[%s1 + $0x50] sm:$0xff]
    %v118 = vld [vmem:[%s1 + $0x58] sm:$0xff]
    %v119 = vld [vmem:[%s1 + $0x60] sm:$0xff]
    %v120 = vld [vmem:[%s1 + $0x68] sm:$0xff]
    %v121 = vld [vmem:[%s1 + $0x70] sm:$0xff]
    %v122 = vld [vmem:[%s1 + $0x78] sm:$0xff]
    %v123 = vld [vmem:[%s1 + $0x80] sm:$0xff]
    %v124 = vld [vmem:[%s1 + $0x88] sm:$0xff]
    %v125 = vld [vmem:[%s1 + $0x90] sm:$0xff]
    %v126 = vld [vmem:[%s1 + $0x98] sm:$0xff]
    %v127 = vld [vmem:[%s1 + $0xa0] sm:$0xff]
    %v128 = vld [vmem:[%s1 + $0xa8] sm:$0xff]
    %v129 = vld [vmem:[%s1 + $0xb0] sm:$0xff]
    %v130 = vld [vmem:[%s1 + $0xb8] sm:$0xff]
    %v131 = vld [vmem:[%s1 + $0xc0] sm:$0xff]
    %v132 = vld [vmem:[%s1 + $0xc8] sm:$0xff]
    %v133 = vld [vmem:[%s1 + $0xd0] sm:$0xff]
    %v134 = vld [vmem:[%s1 + $0xd8] sm:$0xff]
    %v135 = vld [vmem:[%s1 + $0xe0] sm:$0xff]
    %v136 = vld [vmem:[%s1 + $0xe8] sm:$0xff]
    %v137 = vld [vmem:[%s1 + $0xf0] sm:$0xff]
    %v138 = vld [vmem:[%s1 + $0xf8] sm:$0xff]
    %v171 = vunpack.c.l.b16 %v107
    %v172 = vunpack.c.h.b16 %v107
    %v173 = vunpack.c.l.b16 %v108
    %v174 = vunpack.c.h.b16 %v108
    %v175 = vunpack.c.l.b16 %v109
    %v176 = vunpack.c.h.b16 %v109
    %v177 = vunpack.c.l.b16 %v110
    %v178 = vunpack.c.h.b16 %v110
    %v179 = vunpack.c.l.b16 %v111
    %v180 = vunpack.c.h.b16 %v111
    %v181 = vunpack.c.l.b16 %v112
    %v182 = vunpack.c.h.b16 %v112
    %v183 = vunpack.c.l.b16 %v113
    %v184 = vunpack.c.h.b16 %v113
    %v185 = vunpack.c.l.b16 %v114
    %v186 = vunpack.c.h.b16 %v114
    %v187 = vunpack.c.l.b16 %v115
    %v188 = vunpack.c.h.b16 %v115
    %v189 = vunpack.c.l.b16 %v116
    %v190 = vunpack.c.h.b16 %v116
    %v191 = vunpack.c.l.b16 %v117
    %v192 = vunpack.c.h.b16 %v117
    %v193 = vunpack.c.l.b16 %v118
    %v194 = vunpack.c.h.b16 %v118
    %v195 = vunpack.c.l.b16 %v119
    %v196 = vunpack.c.h.b16 %v119
    %v197 = vunpack.c.l.b16 %v120
    %v198 = vunpack.c.h.b16 %v120
    %v199 = vunpack.c.l.b16 %v121
    %v200 = vunpack.c.h.b16 %v121
    %v201 = vunpack.c.l.b16 %v122
    %v202 = vunpack.c.h.b16 %v122
    %v203 = vunpack.c.l.b16 %v123
    %v204 = vunpack.c.h.b16 %v123
    %v205 = vunpack.c.l.b16 %v124
    %v206 = vunpack.c.h.b16 %v124
    %v207 = vunpack.c.l.b16 %v125
    %v208 = vunpack.c.h.b16 %v125
    %v209 = vunpack.c.l.b16 %v126
    %v210 = vunpack.c.h.b16 %v126
    %v211 = vunpack.c.l.b16 %v127
    %v212 = vunpack.c.h.b16 %v127
    %v213 = vunpack.c.l.b16 %v128
    %v214 = vunpack.c.h.b16 %v128
    %v215 = vunpack.c.l.b16 %v129
    %v216 = vunpack.c.h.b16 %v129
    %v217 = vunpack.c.l.b16 %v130
    %v218 = vunpack.c.h.b16 %v130
    %v219 = vunpack.c.l.b16 %v131
    %v220 = vunpack.c.h.b16 %v131
    %v221 = vunpack.c.l.b16 %v132
    %v222 = vunpack.c.h.b16 %v132
    %v223 = vunpack.c.l.b16 %v133
    %v224 = vunpack.c.h.b16 %v133
    %v225 = vunpack.c.l.b16 %v134
    %v226 = vunpack.c.h.b16 %v134
    %v227 = vunpack.c.l.b16 %v135
    %v228 = vunpack.c.h.b16 %v135
    %v229 = vunpack.c.l.b16 %v136
    %v230 = vunpack.c.h.b16 %v136
    %v231 = vunpack.c.l.b16 %v137
    %v232 = vunpack.c.h.b16 %v137
    %v233 = vunpack.c.l.b16 %v138
    %v234 = vunpack.c.h.b16 %v138
    %v235 = vpack.c.b16 %v175, %v171
    %v236 = vpack.c.b16 %v176, %v172
    %v237 = vpack.c.b16 %v177, %v173
    %v238 = vpack.c.b16 %v178, %v174
    %v239 = vpack.c.b16 %v183, %v179
    %v240 = vpack.c.b16 %v184, %v180
    %v241 = vpack.c.b16 %v185, %v181
    %v242 = vpack.c.b16 %v186, %v182
    %v243 = vpack.c.b16 %v191, %v187
    %v244 = vpack.c.b16 %v192, %v188
    %v245 = vpack.c.b16 %v193, %v189
    %v246 = vpack.c.b16 %v194, %v190
    %v247 = vpack.c.b16 %v199, %v195
    %v248 = vpack.c.b16 %v200, %v196
    %v249 = vpack.c.b16 %v201, %v197
    %v250 = vpack.c.b16 %v202, %v198
    %v251 = vpack.c.b16 %v207, %v203
    %v252 = vpack.c.b16 %v208, %v204
    %v253 = vpack.c.b16 %v209, %v205
    %v254 = vpack.c.b16 %v210, %v206
    %v255 = vpack.c.b16 %v215, %v211
    %v256 = vpack.c.b16 %v216, %v212
    %v257 = vpack.c.b16 %v217, %v213
    %v258 = vpack.c.b16 %v218, %v214
    %v259 = vpack.c.b16 %v223, %v219
    %v260 = vpack.c.b16 %v224, %v220
    %v261 = vpack.c.b16 %v225, %v221
    %v262 = vpack.c.b16 %v226, %v222
    %v263 = vpack.c.b16 %v231, %v227
    %v264 = vpack.c.b16 %v232, %v228
    %v265 = vpack.c.b16 %v233, %v229
    %v266 = vpack.c.b16 %v234, %v230
    %299 = vmatprep.subr.bf16.mxu0 %v236
    %300 = vmatpush1.bf16.msra.mxu0 %v235
    %301 = vmatprep.subr.bf16.mxu0 %v240
    %302 = vmatpush1.bf16.msra.mxu0 %v239
    %303 = vmatprep.subr.bf16.mxu0 %v244
    %304 = vmatpush1.bf16.msra.mxu0 %v243
    %305 = vmatprep.subr.bf16.mxu0 %v248
    %306 = vmatpush1.bf16.msra.mxu0 %v247
    %307 = vmatprep.subr.bf16.mxu0 %v252
    %308 = vmatpush1.bf16.msra.mxu0 %v251
    %309 = vmatprep.subr.bf16.mxu0 %v256
    %310 = vmatpush1.bf16.msra.mxu0 %v255
    %311 = vmatprep.subr.bf16.mxu0 %v260
    %312 = vmatpush1.bf16.msra.mxu0 %v259
    %313 = vmatprep.subr.bf16.mxu0 %v264
    %314 = vmatpush1.bf16.msra.mxu0 %v263
    %315 = vmatprep.subr.bf16.mxu0 0
    %316 = vmatpush1.bf16.msra.mxu0 0
    %317 = vmatprep.subr.bf16.mxu0 0
    %318 = vmatpush1.bf16.msra.mxu0 0
    %319 = vmatprep.subr.bf16.mxu0 0
    %320 = vmatpush1.bf16.msra.mxu0 0
    %321 = vmatprep.subr.bf16.mxu0 0
    %322 = vmatpush1.bf16.msra.mxu0 0
    %323 = vmatprep.subr.bf16.mxu0 0
    %324 = vmatpush1.bf16.msra.mxu0 0
    %325 = vmatprep.subr.bf16.mxu0 0
    %326 = vmatpush1.bf16.msra.mxu0 0
    %327 = vmatprep.subr.bf16.mxu0 0
    %328 = vmatpush1.bf16.msra.mxu0 0
    %329 = vmatprep.subr.bf16.mxu0 0
    %330 = vmatpush1.bf16.msra.mxu0 0
    %331 = vmatprep.mubr.bf16.mxu0 0
    %332 = vmatmul.mubr.bf16.gmra.mrb[0].mxu0 0
    %v333 = vpop.f32.mrb[0].mxu0
    %v334 = vadd.f32 0.0, %v333
    %v335 = vpop.f32.mrb[0].mxu0
    %v336 = vadd.f32 0.0, %v335
    %v337 = vpop.f32.mrb[0].mxu0
    %v338 = vpop.f32.mrb[0].mxu0
    %339 = vdwg.mxu0
    %340 = vmatprep.subr.bf16.mxu0 %v238
    %341 = vmatpush1.bf16.msra.mxu0 %v237
    %342 = vmatprep.subr.bf16.mxu0 %v242
    %343 = vmatpush1.bf16.msra.mxu0 %v241
    %344 = vmatprep.subr.bf16.mxu0 %v246
    %345 = vmatpush1.bf16.msra.mxu0 %v245
    %346 = vmatprep.subr.bf16.mxu0 %v250
    %347 = vmatpush1.bf16.msra.mxu0 %v249
    %348 = vmatprep.subr.bf16.mxu0 %v254
    %349 = vmatpush1.bf16.msra.mxu0 %v253
    %350 = vmatprep.subr.bf16.mxu0 %v258
    %351 = vmatpush1.bf16.msra.mxu0 %v257
    %352 = vmatprep.subr.bf16.mxu0 %v262
    %353 = vmatpush1.bf16.msra.mxu0 %v261
    %354 = vmatprep.subr.bf16.mxu0 %v266
    %355 = vmatpush1.bf16.msra.mxu0 %v265
    %356 = vmatprep.subr.bf16.mxu0 0
    %357 = vmatpush1.bf16.msra.mxu0 0
    %358 = vmatprep.subr.bf16.mxu0 0
    %359 = vmatpush1.bf16.msra.mxu0 0
    %360 = vmatprep.subr.bf16.mxu0 0
    %361 = vmatpush1.bf16.msra.mxu0 0
    %362 = vmatprep.subr.bf16.mxu0 0
    %363 = vmatpush1.bf16.msra.mxu0 0
    %364 = vmatprep.subr.bf16.mxu0 0
    %365 = vmatpush1.bf16.msra.mxu0 0
    %366 = vmatprep.subr.bf16.mxu0 0
    %367 = vmatpush1.bf16.msra.mxu0 0
    %368 = vmatprep.subr.bf16.mxu0 0
    %369 = vmatpush1.bf16.msra.mxu0 0
    %370 = vmatprep.subr.bf16.mxu0 0
    %371 = vmatpush1.bf16.msra.mxu0 0
    %372 = vmatprep.mubr.bf16.mxu0 0
    %373 = vmatmul.mubr.bf16.gmra.mrb[0].mxu0 0
    %v374 = vpop.f32.mrb[0].mxu0
    %v375 = vadd.f32 0.0, %v374
    %v376 = vpop.f32.mrb[0].mxu0
    %v377 = vadd.f32 0.0, %v376
    %v378 = vpop.f32.mrb[0].mxu0
    %v379 = vpop.f32.mrb[0].mxu0
    %380 = vdwg.mxu0
    %v381 = vadd.f32 %v103, %v334
    %v382 = vadd.f32 %v104, %v336
    %v383 = vadd.f32 %v105, %v375
    %v384 = vadd.f32 %v106, %v377
    %v385 = vxor.u32 %v381, 2147483648
    %v386 = vmul.f32 %v385, 1.442695
    %v387 = vpow.pop %v386
    %v388 = vadd.f32 %v387, 1.0
    %v389 = vrcp.pop %v388
    %v390 = vmul.f32 1.0, %v389
    %v391 = vxor.u32 %v382, 2147483648
    %v392 = vmul.f32 %v391, 1.442695
    %v393 = vpow.pop %v392
    %v394 = vadd.f32 %v393, 1.0
    %v395 = vrcp.pop %v394
    %v396 = vmul.f32 1.0, %v395
    %v397 = vtanh.pop %v383
    %v398 = vxor.u32 %v384, 2147483648
    %v399 = vmul.f32 %v398, 1.442695
    %v400 = vpow.pop %v399
    %v401 = vadd.f32 %v400, 1.0
    %v402 = vrcp.pop %v401
    %v403 = vmul.f32 1.0, %v402
    %v404 = vmul.f32 %v396, 0.0
    %v405 = vmul.f32 %v390, %v397
    %v406 = vadd.f32 %v404, %v405
    %v407 = vtanh.pop %v406
    %v408 = vmul.f32 %v403, %v407
    %v409 = vld [vmem:[#allocation4] sm:$0xf]
    %v410 = vpack.c.bf16 %v408, %v408
    %v411 = vld [vmem:[%s2] sm:$0xff]
    %v412 = vld [vmem:[%s2 + $0x8] sm:$0xff]
    %v413 = vld [vmem:[%s2 + $0x10] sm:$0xff]
    %v414 = vld [vmem:[%s2 + $0x18] sm:$0xff]
    %v415 = vld [vmem:[%s2 + $0x20] sm:$0xff]
    %v416 = vld [vmem:[%s2 + $0x28] sm:$0xff]
    %v417 = vld [vmem:[%s2 + $0x30] sm:$0xff]
    %v418 = vld [vmem:[%s2 + $0x38] sm:$0xff]
    %v419 = vld [vmem:[%s2 + $0x40] sm:$0xff]
    %v420 = vld [vmem:[%s2 + $0x48] sm:$0xff]
    %v421 = vld [vmem:[%s2 + $0x50] sm:$0xff]
    %v422 = vld [vmem:[%s2 + $0x58] sm:$0xff]
    %v423 = vld [vmem:[%s2 + $0x60] sm:$0xff]
    %v424 = vld [vmem:[%s2 + $0x68] sm:$0xff]
    %v425 = vld [vmem:[%s2 + $0x70] sm:$0xff]
    %v426 = vld [vmem:[%s2 + $0x78] sm:$0xff]
    %v427 = vld [vmem:[%s2 + $0x80] sm:$0xff]
    %v428 = vld [vmem:[%s2 + $0x88] sm:$0xff]
    %v429 = vld [vmem:[%s2 + $0x90] sm:$0xff]
    %v430 = vld [vmem:[%s2 + $0x98] sm:$0xff]
    %v431 = vld [vmem:[%s2 + $0xa0] sm:$0xff]
    %v432 = vld [vmem:[%s2 + $0xa8] sm:$0xff]
    %v433 = vld [vmem:[%s2 + $0xb0] sm:$0xff]
    %v434 = vld [vmem:[%s2 + $0xb8] sm:$0xff]
    %v435 = vld [vmem:[%s2 + $0xc0] sm:$0xff]
    %v436 = vld [vmem:[%s2 + $0xc8] sm:$0xff]
    %v437 = vld [vmem:[%s2 + $0xd0] sm:$0xff]
    %v438 = vld [vmem:[%s2 + $0xd8] sm:$0xff]
    %v439 = vld [vmem:[%s2 + $0xe0] sm:$0xff]
    %v440 = vld [vmem:[%s2 + $0xe8] sm:$0xff]
    %v441 = vld [vmem:[%s2 + $0xf0] sm:$0xff]
    %v442 = vld [vmem:[%s2 + $0xf8] sm:$0xff]
    %v475 = vunpack.c.l.b16 %v411
    %v476 = vunpack.c.h.b16 %v411
    %v477 = vunpack.c.l.b16 %v412
    %v478 = vunpack.c.h.b16 %v412
    %v479 = vunpack.c.l.b16 %v413
    %v480 = vunpack.c.h.b16 %v413
    %v481 = vunpack.c.l.b16 %v414
    %v482 = vunpack.c.h.b16 %v414
    %v483 = vunpack.c.l.b16 %v415
    %v484 = vunpack.c.h.b16 %v415
    %v485 = vunpack.c.l.b16 %v416
    %v486 = vunpack.c.h.b16 %v416
    %v487 = vunpack.c.l.b16 %v417
    %v488 = vunpack.c.h.b16 %v417
    %v489 = vunpack.c.l.b16 %v418
    %v490 = vunpack.c.h.b16 %v418
    %v491 = vunpack.c.l.b16 %v419
    %v492 = vunpack.c.h.b16 %v419
    %v493 = vunpack.c.l.b16 %v420
    %v494 = vunpack.c.h.b16 %v420
    %v495 = vunpack.c.l.b16 %v421
    %v496 = vunpack.c.h.b16 %v421
    %v497 = vunpack.c.l.b16 %v422
    %v498 = vunpack.c.h.b16 %v422
    %v499 = vunpack.c.l.b16 %v423
    %v500 = vunpack.c.h.b16 %v423
    %v501 = vunpack.c.l.b16 %v424
    %v502 = vunpack.c.h.b16 %v424
    %v503 = vunpack.c.l.b16 %v425
    %v504 = vunpack.c.h.b16 %v425
    %v505 = vunpack.c.l.b16 %v426
    %v506 = vunpack.c.h.b16 %v426
    %v507 = vunpack.c.l.b16 %v427
    %v508 = vunpack.c.h.b16 %v427
    %v509 = vunpack.c.l.b16 %v428
    %v510 = vunpack.c.h.b16 %v428
    %v511 = vunpack.c.l.b16 %v429
    %v512 = vunpack.c.h.b16 %v429
    %v513 = vunpack.c.l.b16 %v430
    %v514 = vunpack.c.h.b16 %v430
    %v515 = vunpack.c.l.b16 %v431
    %v516 = vunpack.c.h.b16 %v431
    %v517 = vunpack.c.l.b16 %v432
    %v518 = vunpack.c.h.b16 %v432
    %v519 = vunpack.c.l.b16 %v433
    %v520 = vunpack.c.h.b16 %v433
    %v521 = vunpack.c.l.b16 %v434
    %v522 = vunpack.c.h.b16 %v434
    %v523 = vunpack.c.l.b16 %v435
    %v524 = vunpack.c.h.b16 %v435
    %v525 = vunpack.c.l.b16 %v436
    %v526 = vunpack.c.h.b16 %v436
    %v527 = vunpack.c.l.b16 %v437
    %v528 = vunpack.c.h.b16 %v437
    %v529 = vunpack.c.l.b16 %v438
    %v530 = vunpack.c.h.b16 %v438
    %v531 = vunpack.c.l.b16 %v439
    %v532 = vunpack.c.h.b16 %v439
    %v533 = vunpack.c.l.b16 %v440
    %v534 = vunpack.c.h.b16 %v440
    %v535 = vunpack.c.l.b16 %v441
    %v536 = vunpack.c.h.b16 %v441
    %v537 = vunpack.c.l.b16 %v442
    %v538 = vunpack.c.h.b16 %v442
    %v539 = vpack.c.b16 %v479, %v475
    %v540 = vpack.c.b16 %v480, %v476
    %v541 = vpack.c.b16 %v481, %v477
    %v542 = vpack.c.b16 %v482, %v478
    %v543 = vpack.c.b16 %v487, %v483
    %v544 = vpack.c.b16 %v488, %v484
    %v545 = vpack.c.b16 %v489, %v485
    %v546 = vpack.c.b16 %v490, %v486
    %v547 = vpack.c.b16 %v495, %v491
    %v548 = vpack.c.b16 %v496, %v492
    %v549 = vpack.c.b16 %v497, %v493
    %v550 = vpack.c.b16 %v498, %v494
    %v551 = vpack.c.b16 %v503, %v499
    %v552 = vpack.c.b16 %v504, %v500
    %v553 = vpack.c.b16 %v505, %v501
    %v554 = vpack.c.b16 %v506, %v502
    %v555 = vpack.c.b16 %v511, %v507
    %v556 = vpack.c.b16 %v512, %v508
    %v557 = vpack.c.b16 %v513, %v509
    %v558 = vpack.c.b16 %v514, %v510
    %v559 = vpack.c.b16 %v519, %v515
    %v560 = vpack.c.b16 %v520, %v516
    %v561 = vpack.c.b16 %v521, %v517
    %v562 = vpack.c.b16 %v522, %v518
    %v563 = vpack.c.b16 %v527, %v523
    %v564 = vpack.c.b16 %v528, %v524
    %v565 = vpack.c.b16 %v529, %v525
    %v566 = vpack.c.b16 %v530, %v526
    %v567 = vpack.c.b16 %v535, %v531
    %v568 = vpack.c.b16 %v536, %v532
    %v569 = vpack.c.b16 %v537, %v533
    %v570 = vpack.c.b16 %v538, %v534
    %603 = vmatprep.subr.bf16.mxu0 %v540
    %604 = vmatpush1.bf16.msra.mxu0 %v539
    %605 = vmatprep.subr.bf16.mxu0 %v544
    %606 = vmatpush1.bf16.msra.mxu0 %v543
    %607 = vmatprep.subr.bf16.mxu0 %v548
    %608 = vmatpush1.bf16.msra.mxu0 %v547
    %609 = vmatprep.subr.bf16.mxu0 %v552
    %610 = vmatpush1.bf16.msra.mxu0 %v551
    %611 = vmatprep.subr.bf16.mxu0 %v556
    %612 = vmatpush1.bf16.msra.mxu0 %v555
    %613 = vmatprep.subr.bf16.mxu0 %v560
    %614 = vmatpush1.bf16.msra.mxu0 %v559
    %615 = vmatprep.subr.bf16.mxu0 %v564
    %616 = vmatpush1.bf16.msra.mxu0 %v563
    %617 = vmatprep.subr.bf16.mxu0 %v568
    %618 = vmatpush1.bf16.msra.mxu0 %v567
    %619 = vmatprep.subr.bf16.mxu0 0
    %620 = vmatpush1.bf16.msra.mxu0 0
    %621 = vmatprep.subr.bf16.mxu0 0
    %622 = vmatpush1.bf16.msra.mxu0 0
    %623 = vmatprep.subr.bf16.mxu0 0
    %624 = vmatpush1.bf16.msra.mxu0 0
    %625 = vmatprep.subr.bf16.mxu0 0
    %626 = vmatpush1.bf16.msra.mxu0 0
    %627 = vmatprep.subr.bf16.mxu0 0
    %628 = vmatpush1.bf16.msra.mxu0 0
    %629 = vmatprep.subr.bf16.mxu0 0
    %630 = vmatpush1.bf16.msra.mxu0 0
    %631 = vmatprep.subr.bf16.mxu0 0
    %632 = vmatpush1.bf16.msra.mxu0 0
    %633 = vmatprep.subr.bf16.mxu0 0
    %634 = vmatpush1.bf16.msra.mxu0 0
    %635 = vmatprep.mubr.bf16.mxu0 0
    %636 = vmatmul.mubr.bf16.gmra.mrb[0].mxu0 %v410
    %v637 = vpop.f32.mrb[0].mxu0
    %v638 = vadd.f32 0.0, %v637
    %v639 = vpop.f32.mrb[0].mxu0
    %v640 = vadd.f32 0.0, %v639
    %v641 = vpop.f32.mrb[0].mxu0
    %v642 = vpop.f32.mrb[0].mxu0
    %643 = vdwg.mxu0
    %644 = vmatprep.subr.bf16.mxu0 %v542
    %645 = vmatpush1.bf16.msra.mxu0 %v541
    %646 = vmatprep.subr.bf16.mxu0 %v546
    %647 = vmatpush1.bf16.msra.mxu0 %v545
    %648 = vmatprep.subr.bf16.mxu0 %v550
    %649 = vmatpush1.bf16.msra.mxu0 %v549
    %650 = vmatprep.subr.bf16.mxu0 %v554
    %651 = vmatpush1.bf16.msra.mxu0 %v553
    %652 = vmatprep.subr.bf16.mxu0 %v558
    %653 = vmatpush1.bf16.msra.mxu0 %v557
    %654 = vmatprep.subr.bf16.mxu0 %v562
    %655 = vmatpush1.bf16.msra.mxu0 %v561
    %656 = vmatprep.subr.bf16.mxu0 %v566
    %657 = vmatpush1.bf16.msra.mxu0 %v565
    %658 = vmatprep.subr.bf16.mxu0 %v570
    %659 = vmatpush1.bf16.msra.mxu0 %v569
    %660 = vmatprep.subr.bf16.mxu0 0
    %661 = vmatpush1.bf16.msra.mxu0 0
    %662 = vmatprep.subr.bf16.mxu0 0
    %663 = vmatpush1.bf16.msra.mxu0 0
    %664 = vmatprep.subr.bf16.mxu0 0
    %665 = vmatpush1.bf16.msra.mxu0 0
    %666 = vmatprep.subr.bf16.mxu0 0
    %667 = vmatpush1.bf16.msra.mxu0 0
    %668 = vmatprep.subr.bf16.mxu0 0
    %669 = vmatpush1.bf16.msra.mxu0 0
    %670 = vmatprep.subr.bf16.mxu0 0
    %671 = vmatpush1.bf16.msra.mxu0 0
    %672 = vmatprep.subr.bf16.mxu0 0
    %673 = vmatpush1.bf16.msra.mxu0 0
    %674 = vmatprep.subr.bf16.mxu0 0
    %675 = vmatpush1.bf16.msra.mxu0 0
    %676 = vmatprep.mubr.bf16.mxu0 0
    %677 = vmatmul.mubr.bf16.gmra.mrb[0].mxu0 %v410
    %v678 = vpop.f32.mrb[0].mxu0
    %v679 = vadd.f32 0.0, %v678
    %v680 = vpop.f32.mrb[0].mxu0
    %v681 = vadd.f32 0.0, %v680
    %v682 = vpop.f32.mrb[0].mxu0
    %v683 = vpop.f32.mrb[0].mxu0
    %684 = vdwg.mxu0
    %v686 = vlaneseq
    %v687 = vshrl.u32 %v686, 7
    %v688 = vsub.s32 0, %v687
    %v689 = vrot.slane %v409, %v688
    %v690 = vlaneseq
    %v691 = vshrl.u32 %v690, 7
    %v692 = vsub.s32 1, %v691
    %v693 = vrot.slane %v409, %v692
    %v694 = vlaneseq
    %v695 = vshrl.u32 %v694, 7
    %v696 = vsub.s32 2, %v695
    %v697 = vrot.slane %v409, %v696
    %v698 = vlaneseq
    %v699 = vshrl.u32 %v698, 7
    %v700 = vsub.s32 3, %v699
    %v701 = vrot.slane %v409, %v700
    %v706 = vadd.f32 %v689, %v638
    %v707 = vadd.f32 %v693, %v640
    %v708 = vadd.f32 %v697, %v679
    %v709 = vadd.f32 %v701, %v681
    %v710 = vld [vmem:[#allocation2] sm:$0xff]
    %v711 = vld [vmem:[#allocation2 + $0x8] sm:$0xff]
    %v712 = vld [vmem:[#allocation2 + $0x10] sm:$0xff]
    %v713 = vld [vmem:[#allocation2 + $0x18] sm:$0xff]
    %v714 = vld [vmem:[#allocation2 + $0x20] sm:$0xff]
    %v715 = vld [vmem:[#allocation2 + $0x28] sm:$0xff]
    %v716 = vld [vmem:[#allocation2 + $0x30] sm:$0xff]
    %v717 = vld [vmem:[#allocation2 + $0x38] sm:$0xff]
    %v718 = vld [vmem:[#allocation2 + $0x40] sm:$0xff]
    %v719 = vld [vmem:[#allocation2 + $0x48] sm:$0xff]
    %v720 = vld [vmem:[#allocation2 + $0x50] sm:$0xff]
    %v721 = vld [vmem:[#allocation2 + $0x58] sm:$0xff]
    %v722 = vld [vmem:[#allocation2 + $0x60] sm:$0xff]
    %v723 = vld [vmem:[#allocation2 + $0x68] sm:$0xff]
    %v724 = vld [vmem:[#allocation2 + $0x70] sm:$0xff]
    %v725 = vld [vmem:[#allocation2 + $0x78] sm:$0xff]
    %v726 = vld [vmem:[#allocation2 + $0x80] sm:$0xff]
    %v727 = vld [vmem:[#allocation2 + $0x88] sm:$0xff]
    %v728 = vld [vmem:[#allocation2 + $0x90] sm:$0xff]
    %v729 = vld [vmem:[#allocation2 + $0x98] sm:$0xff]
    %v730 = vld [vmem:[#allocation2 + $0xa0] sm:$0xff]
    %v731 = vld [vmem:[#allocation2 + $0xa8] sm:$0xff]
    %v732 = vld [vmem:[#allocation2 + $0xb0] sm:$0xff]
    %v733 = vld [vmem:[#allocation2 + $0xb8] sm:$0xff]
    %v734 = vld [vmem:[#allocation2 + $0xc0] sm:$0xff]
    %v735 = vld [vmem:[#allocation2 + $0xc8] sm:$0xff]
    %v736 = vld [vmem:[#allocation2 + $0xd0] sm:$0xff]
    %v737 = vld [vmem:[#allocation2 + $0xd8] sm:$0xff]
    %v738 = vld [vmem:[#allocation2 + $0xe0] sm:$0xff]
    %v739 = vld [vmem:[#allocation2 + $0xe8] sm:$0xff]
    %v740 = vld [vmem:[#allocation2 + $0xf0] sm:$0xff]
    %v741 = vld [vmem:[#allocation2 + $0xf8] sm:$0xff]
    %v774 = vunpack.c.l.b16 %v710
    %v775 = vunpack.c.h.b16 %v710
    %v776 = vunpack.c.l.b16 %v711
    %v777 = vunpack.c.h.b16 %v711
    %v778 = vunpack.c.l.b16 %v712
    %v779 = vunpack.c.h.b16 %v712
    %v780 = vunpack.c.l.b16 %v713
    %v781 = vunpack.c.h.b16 %v713
    %v782 = vunpack.c.l.b16 %v714
    %v783 = vunpack.c.h.b16 %v714
    %v784 = vunpack.c.l.b16 %v715
    %v785 = vunpack.c.h.b16 %v715
    %v786 = vunpack.c.l.b16 %v716
    %v787 = vunpack.c.h.b16 %v716
    %v788 = vunpack.c.l.b16 %v717
    %v789 = vunpack.c.h.b16 %v717
    %v790 = vunpack.c.l.b16 %v718
    %v791 = vunpack.c.h.b16 %v718
    %v792 = vunpack.c.l.b16 %v719
    %v793 = vunpack.c.h.b16 %v719
    %v794 = vunpack.c.l.b16 %v720
    %v795 = vunpack.c.h.b16 %v720
    %v796 = vunpack.c.l.b16 %v721
    %v797 = vunpack.c.h.b16 %v721
    %v798 = vunpack.c.l.b16 %v722
    %v799 = vunpack.c.h.b16 %v722
    %v800 = vunpack.c.l.b16 %v723
    %v801 = vunpack.c.h.b16 %v723
    %v802 = vunpack.c.l.b16 %v724
    %v803 = vunpack.c.h.b16 %v724
    %v804 = vunpack.c.l.b16 %v725
    %v805 = vunpack.c.h.b16 %v725
    %v806 = vunpack.c.l.b16 %v726
    %v807 = vunpack.c.h.b16 %v726
    %v808 = vunpack.c.l.b16 %v727
    %v809 = vunpack.c.h.b16 %v727
    %v810 = vunpack.c.l.b16 %v728
    %v811 = vunpack.c.h.b16 %v728
    %v812 = vunpack.c.l.b16 %v729
    %v813 = vunpack.c.h.b16 %v729
    %v814 = vunpack.c.l.b16 %v730
    %v815 = vunpack.c.h.b16 %v730
    %v816 = vunpack.c.l.b16 %v731
    %v817 = vunpack.c.h.b16 %v731
    %v818 = vunpack.c.l.b16 %v732
    %v819 = vunpack.c.h.b16 %v732
    %v820 = vunpack.c.l.b16 %v733
    %v821 = vunpack.c.h.b16 %v733
    %v822 = vunpack.c.l.b16 %v734
    %v823 = vunpack.c.h.b16 %v734
    %v824 = vunpack.c.l.b16 %v735
    %v825 = vunpack.c.h.b16 %v735
    %v826 = vunpack.c.l.b16 %v736
    %v827 = vunpack.c.h.b16 %v736
    %v828 = vunpack.c.l.b16 %v737
    %v829 = vunpack.c.h.b16 %v737
    %v830 = vunpack.c.l.b16 %v738
    %v831 = vunpack.c.h.b16 %v738
    %v832 = vunpack.c.l.b16 %v739
    %v833 = vunpack.c.h.b16 %v739
    %v834 = vunpack.c.l.b16 %v740
    %v835 = vunpack.c.h.b16 %v740
    %v836 = vunpack.c.l.b16 %v741
    %v837 = vunpack.c.h.b16 %v741
    %v838 = vpack.c.b16 %v778, %v774
    %v839 = vpack.c.b16 %v779, %v775
    %v840 = vpack.c.b16 %v780, %v776
    %v841 = vpack.c.b16 %v781, %v777
    %v842 = vpack.c.b16 %v786, %v782
    %v843 = vpack.c.b16 %v787, %v783
    %v844 = vpack.c.b16 %v788, %v784
    %v845 = vpack.c.b16 %v789, %v785
    %v846 = vpack.c.b16 %v794, %v790
    %v847 = vpack.c.b16 %v795, %v791
    %v848 = vpack.c.b16 %v796, %v792
    %v849 = vpack.c.b16 %v797, %v793
    %v850 = vpack.c.b16 %v802, %v798
    %v851 = vpack.c.b16 %v803, %v799
    %v852 = vpack.c.b16 %v804, %v800
    %v853 = vpack.c.b16 %v805, %v801
    %v854 = vpack.c.b16 %v810, %v806
    %v855 = vpack.c.b16 %v811, %v807
    %v856 = vpack.c.b16 %v812, %v808
    %v857 = vpack.c.b16 %v813, %v809
    %v858 = vpack.c.b16 %v818, %v814
    %v859 = vpack.c.b16 %v819, %v815
    %v860 = vpack.c.b16 %v820, %v816
    %v861 = vpack.c.b16 %v821, %v817
    %v862 = vpack.c.b16 %v826, %v822
    %v863 = vpack.c.b16 %v827, %v823
    %v864 = vpack.c.b16 %v828, %v824
    %v865 = vpack.c.b16 %v829, %v825
    %v866 = vpack.c.b16 %v834, %v830
    %v867 = vpack.c.b16 %v835, %v831
    %v868 = vpack.c.b16 %v836, %v832
    %v869 = vpack.c.b16 %v837, %v833
    %902 = vmatprep.subr.bf16.mxu0 %v839
    %903 = vmatpush1.bf16.msra.mxu0 %v838
    %904 = vmatprep.subr.bf16.mxu0 %v843
    %905 = vmatpush1.bf16.msra.mxu0 %v842
    %906 = vmatprep.subr.bf16.mxu0 %v847
    %907 = vmatpush1.bf16.msra.mxu0 %v846
    %908 = vmatprep.subr.bf16.mxu0 %v851
    %909 = vmatpush1.bf16.msra.mxu0 %v850
    %910 = vmatprep.subr.bf16.mxu0 %v855
    %911 = vmatpush1.bf16.msra.mxu0 %v854
    %912 = vmatprep.subr.bf16.mxu0 %v859
    %913 = vmatpush1.bf16.msra.mxu0 %v858
    %914 = vmatprep.subr.bf16.mxu0 %v863
    %915 = vmatpush1.bf16.msra.mxu0 %v862
    %916 = vmatprep.subr.bf16.mxu0 %v867
    %917 = vmatpush1.bf16.msra.mxu0 %v866
    %918 = vmatprep.subr.bf16.mxu0 0
    %919 = vmatpush1.bf16.msra.mxu0 0
    %920 = vmatprep.subr.bf16.mxu0 0
    %921 = vmatpush1.bf16.msra.mxu0 0
    %922 = vmatprep.subr.bf16.mxu0 0
    %923 = vmatpush1.bf16.msra.mxu0 0
    %924 = vmatprep.subr.bf16.mxu0 0
    %925 = vmatpush1.bf16.msra.mxu0 0
    %926 = vmatprep.subr.bf16.mxu0 0
    %927 = vmatpush1.bf16.msra.mxu0 0
    %928 = vmatprep.subr.bf16.mxu0 0
    %929 = vmatpush1.bf16.msra.mxu0 0
    %930 = vmatprep.subr.bf16.mxu0 0
    %931 = vmatpush1.bf16.msra.mxu0 0
    %932 = vmatprep.subr.bf16.mxu0 0
    %933 = vmatpush1.bf16.msra.mxu0 0
    %934 = vmatprep.mubr.bf16.mxu0 0
    %935 = vmatmul.mubr.bf16.gmra.mrb[0].mxu0 0
    %v936 = vpop.f32.mrb[0].mxu0
    %v937 = vadd.f32 0.0, %v936
    %v938 = vpop.f32.mrb[0].mxu0
    %v939 = vadd.f32 0.0, %v938
    %v940 = vpop.f32.mrb[0].mxu0
    %v941 = vpop.f32.mrb[0].mxu0
    %942 = vdwg.mxu0
    %943 = vmatprep.subr.bf16.mxu0 %v841
    %944 = vmatpush1.bf16.msra.mxu0 %v840
    %945 = vmatprep.subr.bf16.mxu0 %v845
    %946 = vmatpush1.bf16.msra.mxu0 %v844
    %947 = vmatprep.subr.bf16.mxu0 %v849
    %948 = vmatpush1.bf16.msra.mxu0 %v848
    %949 = vmatprep.subr.bf16.mxu0 %v853
    %950 = vmatpush1.bf16.msra.mxu0 %v852
    %951 = vmatprep.subr.bf16.mxu0 %v857
    %952 = vmatpush1.bf16.msra.mxu0 %v856
    %953 = vmatprep.subr.bf16.mxu0 %v861
    %954 = vmatpush1.bf16.msra.mxu0 %v860
    %955 = vmatprep.subr.bf16.mxu0 %v865
    %956 = vmatpush1.bf16.msra.mxu0 %v864
    %957 = vmatprep.subr.bf16.mxu0 %v869
    %958 = vmatpush1.bf16.msra.mxu0 %v868
    %959 = vmatprep.subr.bf16.mxu0 0
    %960 = vmatpush1.bf16.msra.mxu0 0
    %961 = vmatprep.subr.bf16.mxu0 0
    %962 = vmatpush1.bf16.msra.mxu0 0
    %963 = vmatprep.subr.bf16.mxu0 0
    %964 = vmatpush1.bf16.msra.mxu0 0
    %965 = vmatprep.subr.bf16.mxu0 0
    %966 = vmatpush1.bf16.msra.mxu0 0
    %967 = vmatprep.subr.bf16.mxu0 0
    %968 = vmatpush1.bf16.msra.mxu0 0
    %969 = vmatprep.subr.bf16.mxu0 0
    %970 = vmatpush1.bf16.msra.mxu0 0
    %971 = vmatprep.subr.bf16.mxu0 0
    %972 = vmatpush1.bf16.msra.mxu0 0
    %973 = vmatprep.subr.bf16.mxu0 0
    %974 = vmatpush1.bf16.msra.mxu0 0
    %975 = vmatprep.mubr.bf16.mxu0 0
    %976 = vmatmul.mubr.bf16.gmra.mrb[0].mxu0 0
    %v977 = vpop.f32.mrb[0].mxu0
    %v978 = vadd.f32 0.0, %v977
    %v979 = vpop.f32.mrb[0].mxu0
    %v980 = vadd.f32 0.0, %v979
    %v981 = vpop.f32.mrb[0].mxu0
    %v982 = vpop.f32.mrb[0].mxu0
    %983 = vdwg.mxu0
    %v984 = vadd.f32 %v706, %v937
    %v985 = vadd.f32 %v707, %v939
    %v986 = vadd.f32 %v708, %v978
    %v987 = vadd.f32 %v709, %v980
    %v988 = vxor.u32 %v984, 2147483648
    %v989 = vmul.f32 %v988, 1.442695
    %v990 = vpow.pop %v989
    %v991 = vadd.f32 %v990, 1.0
    %v992 = vrcp.pop %v991
    %v993 = vmul.f32 1.0, %v992
    %v994 = vxor.u32 %v985, 2147483648
    %v995 = vmul.f32 %v994, 1.442695
    %v996 = vpow.pop %v995
    %v997 = vadd.f32 %v996, 1.0
    %v998 = vrcp.pop %v997
    %v999 = vmul.f32 1.0, %v998
    %v1000 = vtanh.pop %v986
    %v1001 = vxor.u32 %v987, 2147483648
    %v1002 = vmul.f32 %v1001, 1.442695
    %v1003 = vpow.pop %v1002
    %v1004 = vadd.f32 %v1003, 1.0
    %v1005 = vrcp.pop %v1004
    %v1006 = vmul.f32 1.0, %v1005
    %v1007 = vmul.f32 %v999, 0.0
    %v1008 = vmul.f32 %v993, %v1000
    %v1009 = vadd.f32 %v1007, %v1008
    %v1010 = vtanh.pop %v1009
    %v1011 = vmul.f32 %v1006, %v1010
    %s1012 = scalar_lea.vmem %s0, 32
    %v1013 = vld [vmem:[%s1012] sm:$0xff]
    %v1014 = vld [vmem:[%s1012 + $0x8] sm:$0xff]
    %v1015 = vld [vmem:[%s1012 + $0x10] sm:$0xff]
    %v1016 = vld [vmem:[%s1012 + $0x18] sm:$0xff]
    %1017 = vmatprep.subr.bf16.mxu0 %v236
    %1018 = vmatpush1.bf16.msra.mxu0 %v235
    %1019 = vmatprep.subr.bf16.mxu0 %v240
    %1020 = vmatpush1.bf16.msra.mxu0 %v239
    %1021 = vmatprep.subr.bf16.mxu0 %v244
    %1022 = vmatpush1.bf16.msra.mxu0 %v243
    %1023 = vmatprep.subr.bf16.mxu0 %v248
    %1024 = vmatpush1.bf16.msra.mxu0 %v247
    %1025 = vmatprep.subr.bf16.mxu0 %v252
    %1026 = vmatpush1.bf16.msra.mxu0 %v251
    %1027 = vmatprep.subr.bf16.mxu0 %v256
    %1028 = vmatpush1.bf16.msra.mxu0 %v255
    %1029 = vmatprep.subr.bf16.mxu0 %v260
    %1030 = vmatpush1.bf16.msra.mxu0 %v259
    %1031 = vmatprep.subr.bf16.mxu0 %v264
    %1032 = vmatpush1.bf16.msra.mxu0 %v263
    %1033 = vmatprep.subr.bf16.mxu0 0
    %1034 = vmatpush1.bf16.msra.mxu0 0
    %1035 = vmatprep.subr.bf16.mxu0 0
    %1036 = vmatpush1.bf16.msra.mxu0 0
    %1037 = vmatprep.subr.bf16.mxu0 0
    %1038 = vmatpush1.bf16.msra.mxu0 0
    %1039 = vmatprep.subr.bf16.mxu0 0
    %1040 = vmatpush1.bf16.msra.mxu0 0
    %1041 = vmatprep.subr.bf16.mxu0 0
    %1042 = vmatpush1.bf16.msra.mxu0 0
    %1043 = vmatprep.subr.bf16.mxu0 0
    %1044 = vmatpush1.bf16.msra.mxu0 0
    %1045 = vmatprep.subr.bf16.mxu0 0
    %1046 = vmatpush1.bf16.msra.mxu0 0
    %1047 = vmatprep.subr.bf16.mxu0 0
    %1048 = vmatpush1.bf16.msra.mxu0 0
    %1049 = vmatprep.mubr.bf16.mxu0 0
    %1050 = vmatmul.mubr.bf16.gmra.mrb[0].mxu0 %v410
    %v1051 = vpop.f32.mrb[0].mxu0
    %v1052 = vadd.f32 0.0, %v1051
    %v1053 = vpop.f32.mrb[0].mxu0
    %v1054 = vadd.f32 0.0, %v1053
    %v1055 = vpop.f32.mrb[0].mxu0
    %v1056 = vpop.f32.mrb[0].mxu0
    %1057 = vdwg.mxu0
    %1058 = vmatprep.subr.bf16.mxu0 %v238
    %1059 = vmatpush1.bf16.msra.mxu0 %v237
    %1060 = vmatprep.subr.bf16.mxu0 %v242
    %1061 = vmatpush1.bf16.msra.mxu0 %v241
    %1062 = vmatprep.subr.bf16.mxu0 %v246
    %1063 = vmatpush1.bf16.msra.mxu0 %v245
    %1064 = vmatprep.subr.bf16.mxu0 %v250
    %1065 = vmatpush1.bf16.msra.mxu0 %v249
    %1066 = vmatprep.subr.bf16.mxu0 %v254
    %1067 = vmatpush1.bf16.msra.mxu0 %v253
    %1068 = vmatprep.subr.bf16.mxu0 %v258
    %1069 = vmatpush1.bf16.msra.mxu0 %v257
    %1070 = vmatprep.subr.bf16.mxu0 %v262
    %1071 = vmatpush1.bf16.msra.mxu0 %v261
    %1072 = vmatprep.subr.bf16.mxu0 %v266
    %1073 = vmatpush1.bf16.msra.mxu0 %v265
    %1074 = vmatprep.subr.bf16.mxu0 0
    %1075 = vmatpush1.bf16.msra.mxu0 0
    %1076 = vmatprep.subr.bf16.mxu0 0
    %1077 = vmatpush1.bf16.msra.mxu0 0
    %1078 = vmatprep.subr.bf16.mxu0 0
    %1079 = vmatpush1.bf16.msra.mxu0 0
    %1080 = vmatprep.subr.bf16.mxu0 0
    %1081 = vmatpush1.bf16.msra.mxu0 0
    %1082 = vmatprep.subr.bf16.mxu0 0
    %1083 = vmatpush1.bf16.msra.mxu0 0
    %1084 = vmatprep.subr.bf16.mxu0 0
    %1085 = vmatpush1.bf16.msra.mxu0 0
    %1086 = vmatprep.subr.bf16.mxu0 0
    %1087 = vmatpush1.bf16.msra.mxu0 0
    %1088 = vmatprep.subr.bf16.mxu0 0
    %1089 = vmatpush1.bf16.msra.mxu0 0
    %1090 = vmatprep.mubr.bf16.mxu0 0
    %1091 = vmatmul.mubr.bf16.gmra.mrb[0].mxu0 %v410
    %v1092 = vpop.f32.mrb[0].mxu0
    %v1093 = vadd.f32 0.0, %v1092
    %v1094 = vpop.f32.mrb[0].mxu0
    %v1095 = vadd.f32 0.0, %v1094
    %v1096 = vpop.f32.mrb[0].mxu0
    %v1097 = vpop.f32.mrb[0].mxu0
    %1098 = vdwg.mxu0
    %v1099 = vadd.f32 %v1013, %v1052
    %v1100 = vadd.f32 %v1014, %v1054
    %v1101 = vadd.f32 %v1015, %v1093
    %v1102 = vadd.f32 %v1016, %v1095
    %v1103 = vxor.u32 %v1099, 2147483648
    %v1104 = vmul.f32 %v1103, 1.442695
    %v1105 = vpow.pop %v1104
    %v1106 = vadd.f32 %v1105, 1.0
    %v1107 = vrcp.pop %v1106
    %v1108 = vmul.f32 1.0, %v1107
    %v1109 = vxor.u32 %v1100, 2147483648
    %v1110 = vmul.f32 %v1109, 1.442695
    %v1111 = vpow.pop %v1110
    %v1112 = vadd.f32 %v1111, 1.0
    %v1113 = vrcp.pop %v1112
    %v1114 = vmul.f32 1.0, %v1113
    %v1115 = vtanh.pop %v1101
    %v1116 = vxor.u32 %v1102, 2147483648
    %v1117 = vmul.f32 %v1116, 1.442695
    %v1118 = vpow.pop %v1117
    %v1119 = vadd.f32 %v1118, 1.0
    %v1120 = vrcp.pop %v1119
    %v1121 = vmul.f32 1.0, %v1120
    %v1122 = vmul.f32 %v1114, %v406
    %v1123 = vmul.f32 %v1108, %v1115
    %v1124 = vadd.f32 %v1122, %v1123
    %v1125 = vtanh.pop %v1124
    %v1126 = vmul.f32 %v1121, %v1125
    %v1127 = vpack.c.bf16 %v1126, %v1126
    %1128 = vmatprep.subr.bf16.mxu0 %v540
    %1129 = vmatpush1.bf16.msra.mxu0 %v539
    %1130 = vmatprep.subr.bf16.mxu0 %v544
    %1131 = vmatpush1.bf16.msra.mxu0 %v543
    %1132 = vmatprep.subr.bf16.mxu0 %v548
    %1133 = vmatpush1.bf16.msra.mxu0 %v547
    %1134 = vmatprep.subr.bf16.mxu0 %v552
    %1135 = vmatpush1.bf16.msra.mxu0 %v551
    %1136 = vmatprep.subr.bf16.mxu0 %v556
    %1137 = vmatpush1.bf16.msra.mxu0 %v555
    %1138 = vmatprep.subr.bf16.mxu0 %v560
    %1139 = vmatpush1.bf16.msra.mxu0 %v559
    %1140 = vmatprep.subr.bf16.mxu0 %v564
    %1141 = vmatpush1.bf16.msra.mxu0 %v563
    %1142 = vmatprep.subr.bf16.mxu0 %v568
    %1143 = vmatpush1.bf16.msra.mxu0 %v567
    %1144 = vmatprep.subr.bf16.mxu0 0
    %1145 = vmatpush1.bf16.msra.mxu0 0
    %1146 = vmatprep.subr.bf16.mxu0 0
    %1147 = vmatpush1.bf16.msra.mxu0 0
    %1148 = vmatprep.subr.bf16.mxu0 0
    %1149 = vmatpush1.bf16.msra.mxu0 0
    %1150 = vmatprep.subr.bf16.mxu0 0
    %1151 = vmatpush1.bf16.msra.mxu0 0
    %1152 = vmatprep.subr.bf16.mxu0 0
    %1153 = vmatpush1.bf16.msra.mxu0 0
    %1154 = vmatprep.subr.bf16.mxu0 0
    %1155 = vmatpush1.bf16.msra.mxu0 0
    %1156 = vmatprep.subr.bf16.mxu0 0
    %1157 = vmatpush1.bf16.msra.mxu0 0
    %1158 = vmatprep.subr.bf16.mxu0 0
    %1159 = vmatpush1.bf16.msra.mxu0 0
    %1160 = vmatprep.mubr.bf16.mxu0 0
    %1161 = vmatmul.mubr.bf16.gmra.mrb[0].mxu0 %v1127
    %v1162 = vpop.f32.mrb[0].mxu0
    %v1163 = vadd.f32 0.0, %v1162
    %v1164 = vpop.f32.mrb[0].mxu0
    %v1165 = vadd.f32 0.0, %v1164
    %v1166 = vpop.f32.mrb[0].mxu0
    %v1167 = vpop.f32.mrb[0].mxu0
    %1168 = vdwg.mxu0
    %1169 = vmatprep.subr.bf16.mxu0 %v542
    %1170 = vmatpush1.bf16.msra.mxu0 %v541
    %1171 = vmatprep.subr.bf16.mxu0 %v546
    %1172 = vmatpush1.bf16.msra.mxu0 %v545
    %1173 = vmatprep.subr.bf16.mxu0 %v550
    %1174 = vmatpush1.bf16.msra.mxu0 %v549
    %1175 = vmatprep.subr.bf16.mxu0 %v554
    %1176 = vmatpush1.bf16.msra.mxu0 %v553
    %1177 = vmatprep.subr.bf16.mxu0 %v558
    %1178 = vmatpush1.bf16.msra.mxu0 %v557
    %1179 = vmatprep.subr.bf16.mxu0 %v562
    %1180 = vmatpush1.bf16.msra.mxu0 %v561
    %1181 = vmatprep.subr.bf16.mxu0 %v566
    %1182 = vmatpush1.bf16.msra.mxu0 %v565
    %1183 = vmatprep.subr.bf16.mxu0 %v570
    %1184 = vmatpush1.bf16.msra.mxu0 %v569
    %1185 = vmatprep.subr.bf16.mxu0 0
    %1186 = vmatpush1.bf16.msra.mxu0 0
    %1187 = vmatprep.subr.bf16.mxu0 0
    %1188 = vmatpush1.bf16.msra.mxu0 0
    %1189 = vmatprep.subr.bf16.mxu0 0
    %1190 = vmatpush1.bf16.msra.mxu0 0
    %1191 = vmatprep.subr.bf16.mxu0 0
    %1192 = vmatpush1.bf16.msra.mxu0 0
    %1193 = vmatprep.subr.bf16.mxu0 0
    %1194 = vmatpush1.bf16.msra.mxu0 0
    %1195 = vmatprep.subr.bf16.mxu0 0
    %1196 = vmatpush1.bf16.msra.mxu0 0
    %1197 = vmatprep.subr.bf16.mxu0 0
    %1198 = vmatpush1.bf16.msra.mxu0 0
    %1199 = vmatprep.subr.bf16.mxu0 0
    %1200 = vmatpush1.bf16.msra.mxu0 0
    %1201 = vmatprep.mubr.bf16.mxu0 0
    %1202 = vmatmul.mubr.bf16.gmra.mrb[0].mxu0 %v1127
    %v1203 = vpop.f32.mrb[0].mxu0
    %v1204 = vadd.f32 0.0, %v1203
    %v1205 = vpop.f32.mrb[0].mxu0
    %v1206 = vadd.f32 0.0, %v1205
    %v1207 = vpop.f32.mrb[0].mxu0
    %v1208 = vpop.f32.mrb[0].mxu0
    %1209 = vdwg.mxu0
    %v1210 = vadd.f32 %v689, %v1163
    %v1211 = vadd.f32 %v693, %v1165
    %v1212 = vadd.f32 %v697, %v1204
    %v1213 = vadd.f32 %v701, %v1206
    %v1214 = vpack.c.bf16 %v1011, %v1011
    %1215 = vmatprep.subr.bf16.mxu0 %v839
    %1216 = vmatpush1.bf16.msra.mxu0 %v838
    %1217 = vmatprep.subr.bf16.mxu0 %v843
    %1218 = vmatpush1.bf16.msra.mxu0 %v842
    %1219 = vmatprep.subr.bf16.mxu0 %v847
    %1220 = vmatpush1.bf16.msra.mxu0 %v846
    %1221 = vmatprep.subr.bf16.mxu0 %v851
    %1222 = vmatpush1.bf16.msra.mxu0 %v850
    %1223 = vmatprep.subr.bf16.mxu0 %v855
    %1224 = vmatpush1.bf16.msra.mxu0 %v854
    %1225 = vmatprep.subr.bf16.mxu0 %v859
    %1226 = vmatpush1.bf16.msra.mxu0 %v858
    %1227 = vmatprep.subr.bf16.mxu0 %v863
    %1228 = vmatpush1.bf16.msra.mxu0 %v862
    %1229 = vmatprep.subr.bf16.mxu0 %v867
    %1230 = vmatpush1.bf16.msra.mxu0 %v866
    %1231 = vmatprep.subr.bf16.mxu0 0
    %1232 = vmatpush1.bf16.msra.mxu0 0
    %1233 = vmatprep.subr.bf16.mxu0 0
    %1234 = vmatpush1.bf16.msra.mxu0 0
    %1235 = vmatprep.subr.bf16.mxu0 0
    %1236 = vmatpush1.bf16.msra.mxu0 0
    %1237 = vmatprep.subr.bf16.mxu0 0
    %1238 = vmatpush1.bf16.msra.mxu0 0
    %1239 = vmatprep.subr.bf16.mxu0 0
    %1240 = vmatpush1.bf16.msra.mxu0 0
    %1241 = vmatprep.subr.bf16.mxu0 0
    %1242 = vmatpush1.bf16.msra.mxu0 0
    %1243 = vmatprep.subr.bf16.mxu0 0
    %1244 = vmatpush1.bf16.msra.mxu0 0
    %1245 = vmatprep.subr.bf16.mxu0 0
    %1246 = vmatpush1.bf16.msra.mxu0 0
    %1247 = vmatprep.mubr.bf16.mxu0 0
    %1248 = vmatmul.mubr.bf16.gmra.mrb[0].mxu0 %v1214
    %v1249 = vpop.f32.mrb[0].mxu0
    %v1250 = vadd.f32 0.0, %v1249
    %v1251 = vpop.f32.mrb[0].mxu0
    %v1252 = vadd.f32 0.0, %v1251
    %v1253 = vpop.f32.mrb[0].mxu0
    %v1254 = vpop.f32.mrb[0].mxu0
    %1255 = vdwg.mxu0
    %1256 = vmatprep.subr.bf16.mxu0 %v841
    %1257 = vmatpush1.bf16.msra.mxu0 %v840
    %1258 = vmatprep.subr.bf16.mxu0 %v845
    %1259 = vmatpush1.bf16.msra.mxu0 %v844
    %1260 = vmatprep.subr.bf16.mxu0 %v849
    %1261 = vmatpush1.bf16.msra.mxu0 %v848
    %1262 = vmatprep.subr.bf16.mxu0 %v853
    %1263 = vmatpush1.bf16.msra.mxu0 %v852
    %1264 = vmatprep.subr.bf16.mxu0 %v857
    %1265 = vmatpush1.bf16.msra.mxu0 %v856
    %1266 = vmatprep.subr.bf16.mxu0 %v861
    %1267 = vmatpush1.bf16.msra.mxu0 %v860
    %1268 = vmatprep.subr.bf16.mxu0 %v865
    %1269 = vmatpush1.bf16.msra.mxu0 %v864
    %1270 = vmatprep.subr.bf16.mxu0 %v869
    %1271 = vmatpush1.bf16.msra.mxu0 %v868
    %1272 = vmatprep.subr.bf16.mxu0 0
    %1273 = vmatpush1.bf16.msra.mxu0 0
    %1274 = vmatprep.subr.bf16.mxu0 0
    %1275 = vmatpush1.bf16.msra.mxu0 0
    %1276 = vmatprep.subr.bf16.mxu0 0
    %1277 = vmatpush1.bf16.msra.mxu0 0
    %1278 = vmatprep.subr.bf16.mxu0 0
    %1279 = vmatpush1.bf16.msra.mxu0 0
    %1280 = vmatprep.subr.bf16.mxu0 0
    %1281 = vmatpush1.bf16.msra.mxu0 0
    %1282 = vmatprep.subr.bf16.mxu0 0
    %1283 = vmatpush1.bf16.msra.mxu0 0
    %1284 = vmatprep.subr.bf16.mxu0 0
    %1285 = vmatpush1.bf16.msra.mxu0 0
    %1286 = vmatprep.subr.bf16.mxu0 0
    %1287 = vmatpush1.bf16.msra.mxu0 0
    %1288 = vmatprep.mubr.bf16.mxu0 0
    %1289 = vmatmul.mubr.bf16.gmra.mrb[0].mxu0 %v1214
    %v1290 = vpop.f32.mrb[0].mxu0
    %v1291 = vadd.f32 0.0, %v1290
    %v1292 = vpop.f32.mrb[0].mxu0
    %v1293 = vadd.f32 0.0, %v1292
    %v1294 = vpop.f32.mrb[0].mxu0
    %v1295 = vpop.f32.mrb[0].mxu0
    %1296 = vdwg.mxu0
    %v1297 = vadd.f32 %v1210, %v1250
    %v1298 = vadd.f32 %v1211, %v1252
    %v1299 = vadd.f32 %v1212, %v1291
    %v1300 = vadd.f32 %v1213, %v1293
    %v1301 = vxor.u32 %v1297, 2147483648
    %v1302 = vmul.f32 %v1301, 1.442695
    %v1303 = vpow.pop %v1302
    %v1304 = vadd.f32 %v1303, 1.0
    %v1305 = vrcp.pop %v1304
    %v1306 = vmul.f32 1.0, %v1305
    %v1307 = vxor.u32 %v1298, 2147483648
    %v1308 = vmul.f32 %v1307, 1.442695
    %v1309 = vpow.pop %v1308
    %v1310 = vadd.f32 %v1309, 1.0
    %v1311 = vrcp.pop %v1310
    %v1312 = vmul.f32 1.0, %v1311
    %v1313 = vtanh.pop %v1299
    %v1314 = vxor.u32 %v1300, 2147483648
    %v1315 = vmul.f32 %v1314, 1.442695
    %v1316 = vpow.pop %v1315
    %v1317 = vadd.f32 %v1316, 1.0
    %v1318 = vrcp.pop %v1317
    %v1319 = vmul.f32 1.0, %v1318
    %v1320 = vmul.f32 %v1312, %v1009
    %v1321 = vmul.f32 %v1306, %v1313
    %v1322 = vadd.f32 %v1320, %v1321
    %v1323 = vtanh.pop %v1322
    %v1324 = vmul.f32 %v1319, %v1323
    %s1325 = scalar_lea.vmem %s0, 64
    %v1326 = vld [vmem:[%s1325] sm:$0xff]
    %v1327 = vld [vmem:[%s1325 + $0x8] sm:$0xff]
    %v1328 = vld [vmem:[%s1325 + $0x10] sm:$0xff]
    %v1329 = vld [vmem:[%s1325 + $0x18] sm:$0xff]
    %1330 = vmatprep.subr.bf16.mxu0 %v236
    %1331 = vmatpush1.bf16.msra.mxu0 %v235
    %1332 = vmatprep.subr.bf16.mxu0 %v240
    %1333 = vmatpush1.bf16.msra.mxu0 %v239
    %1334 = vmatprep.subr.bf16.mxu0 %v244
    %1335 = vmatpush1.bf16.msra.mxu0 %v243
    %1336 = vmatprep.subr.bf16.mxu0 %v248
    %1337 = vmatpush1.bf16.msra.mxu0 %v247
    %1338 = vmatprep.subr.bf16.mxu0 %v252
    %1339 = vmatpush1.bf16.msra.mxu0 %v251
    %1340 = vmatprep.subr.bf16.mxu0 %v256
    %1341 = vmatpush1.bf16.msra.mxu0 %v255
    %1342 = vmatprep.subr.bf16.mxu0 %v260
    %1343 = vmatpush1.bf16.msra.mxu0 %v259
    %1344 = vmatprep.subr.bf16.mxu0 %v264
    %1345 = vmatpush1.bf16.msra.mxu0 %v263
    %1346 = vmatprep.subr.bf16.mxu0 0
    %1347 = vmatpush1.bf16.msra.mxu0 0
    %1348 = vmatprep.subr.bf16.mxu0 0
    %1349 = vmatpush1.bf16.msra.mxu0 0
    %1350 = vmatprep.subr.bf16.mxu0 0
    %1351 = vmatpush1.bf16.msra.mxu0 0
    %1352 = vmatprep.subr.bf16.mxu0 0
    %1353 = vmatpush1.bf16.msra.mxu0 0
    %1354 = vmatprep.subr.bf16.mxu0 0
    %1355 = vmatpush1.bf16.msra.mxu0 0
    %1356 = vmatprep.subr.bf16.mxu0 0
    %1357 = vmatpush1.bf16.msra.mxu0 0
    %1358 = vmatprep.subr.bf16.mxu0 0
    %1359 = vmatpush1.bf16.msra.mxu0 0
    %1360 = vmatprep.subr.bf16.mxu0 0
    %1361 = vmatpush1.bf16.msra.mxu0 0
    %1362 = vmatprep.mubr.bf16.mxu0 0
    %1363 = vmatmul.mubr.bf16.gmra.mrb[0].mxu0 %v1127
    %v1364 = vpop.f32.mrb[0].mxu0
    %v1365 = vadd.f32 0.0, %v1364
    %v1366 = vpop.f32.mrb[0].mxu0
    %v1367 = vadd.f32 0.0, %v1366
    %v1368 = vpop.f32.mrb[0].mxu0
    %v1369 = vpop.f32.mrb[0].mxu0
    %1370 = vdwg.mxu0
    %1371 = vmatprep.subr.bf16.mxu0 %v238
    %1372 = vmatpush1.bf16.msra.mxu0 %v237
    %1373 = vmatprep.subr.bf16.mxu0 %v242
    %1374 = vmatpush1.bf16.msra.mxu0 %v241
    %1375 = vmatprep.subr.bf16.mxu0 %v246
    %1376 = vmatpush1.bf16.msra.mxu0 %v245
    %1377 = vmatprep.subr.bf16.mxu0 %v250
    %1378 = vmatpush1.bf16.msra.mxu0 %v249
    %1379 = vmatprep.subr.bf16.mxu0 %v254
    %1380 = vmatpush1.bf16.msra.mxu0 %v253
    %1381 = vmatprep.subr.bf16.mxu0 %v258
    %1382 = vmatpush1.bf16.msra.mxu0 %v257
    %1383 = vmatprep.subr.bf16.mxu0 %v262
    %1384 = vmatpush1.bf16.msra.mxu0 %v261
    %1385 = vmatprep.subr.bf16.mxu0 %v266
    %1386 = vmatpush1.bf16.msra.mxu0 %v265
    %1387 = vmatprep.subr.bf16.mxu0 0
    %1388 = vmatpush1.bf16.msra.mxu0 0
    %1389 = vmatprep.subr.bf16.mxu0 0
    %1390 = vmatpush1.bf16.msra.mxu0 0
    %1391 = vmatprep.subr.bf16.mxu0 0
    %1392 = vmatpush1.bf16.msra.mxu0 0
    %1393 = vmatprep.subr.bf16.mxu0 0
    %1394 = vmatpush1.bf16.msra.mxu0 0
    %1395 = vmatprep.subr.bf16.mxu0 0
    %1396 = vmatpush1.bf16.msra.mxu0 0
    %1397 = vmatprep.subr.bf16.mxu0 0
    %1398 = vmatpush1.bf16.msra.mxu0 0
    %1399 = vmatprep.subr.bf16.mxu0 0
    %1400 = vmatpush1.bf16.msra.mxu0 0
    %1401 = vmatprep.subr.bf16.mxu0 0
    %1402 = vmatpush1.bf16.msra.mxu0 0
    %1403 = vmatprep.mubr.bf16.mxu0 0
    %1404 = vmatmul.mubr.bf16.gmra.mrb[0].mxu0 %v1127
    %v1405 = vpop.f32.mrb[0].mxu0
    %v1406 = vadd.f32 0.0, %v1405
    %v1407 = vpop.f32.mrb[0].mxu0
    %v1408 = vadd.f32 0.0, %v1407
    %v1409 = vpop.f32.mrb[0].mxu0
    %v1410 = vpop.f32.mrb[0].mxu0
    %1411 = vdwg.mxu0
    %v1412 = vadd.f32 %v1326, %v1365
    %v1413 = vadd.f32 %v1327, %v1367
    %v1414 = vadd.f32 %v1328, %v1406
    %v1415 = vadd.f32 %v1329, %v1408
    %v1416 = vxor.u32 %v1412, 2147483648
    %v1417 = vmul.f32 %v1416, 1.442695
    %v1418 = vpow.pop %v1417
    %v1419 = vadd.f32 %v1418, 1.0
    %v1420 = vrcp.pop %v1419
    %v1421 = vmul.f32 1.0, %v1420
    %v1422 = vxor.u32 %v1413, 2147483648
    %v1423 = vmul.f32 %v1422, 1.442695
    %v1424 = vpow.pop %v1423
    %v1425 = vadd.f32 %v1424, 1.0
    %v1426 = vrcp.pop %v1425
    %v1427 = vmul.f32 1.0, %v1426
    %v1428 = vtanh.pop %v1414
    %v1429 = vxor.u32 %v1415, 2147483648
    %v1430 = vmul.f32 %v1429, 1.442695
    %v1431 = vpow.pop %v1430
    %v1432 = vadd.f32 %v1431, 1.0
    %v1433 = vrcp.pop %v1432
    %v1434 = vmul.f32 1.0, %v1433
    %v1435 = vmul.f32 %v1427, %v1124
    %v1436 = vmul.f32 %v1421, %v1428
    %v1437 = vadd.f32 %v1435, %v1436
    %v1438 = vtanh.pop %v1437
    %v1439 = vmul.f32 %v1434, %v1438
    %v1440 = vpack.c.bf16 %v1439, %v1439
    %1441 = vmatprep.subr.bf16.mxu0 %v540
    %1442 = vmatpush1.bf16.msra.mxu0 %v539
    %1443 = vmatprep.subr.bf16.mxu0 %v544
    %1444 = vmatpush1.bf16.msra.mxu0 %v543
    %1445 = vmatprep.subr.bf16.mxu0 %v548
    %1446 = vmatpush1.bf16.msra.mxu0 %v547
    %1447 = vmatprep.subr.bf16.mxu0 %v552
    %1448 = vmatpush1.bf16.msra.mxu0 %v551
    %1449 = vmatprep.subr.bf16.mxu0 %v556
    %1450 = vmatpush1.bf16.msra.mxu0 %v555
    %1451 = vmatprep.subr.bf16.mxu0 %v560
    %1452 = vmatpush1.bf16.msra.mxu0 %v559
    %1453 = vmatprep.subr.bf16.mxu0 %v564
    %1454 = vmatpush1.bf16.msra.mxu0 %v563
    %1455 = vmatprep.subr.bf16.mxu0 %v568
    %1456 = vmatpush1.bf16.msra.mxu0 %v567
    %1457 = vmatprep.subr.bf16.mxu0 0
    %1458 = vmatpush1.bf16.msra.mxu0 0
    %1459 = vmatprep.subr.bf16.mxu0 0
    %1460 = vmatpush1.bf16.msra.mxu0 0
    %1461 = vmatprep.subr.bf16.mxu0 0
    %1462 = vmatpush1.bf16.msra.mxu0 0
    %1463 = vmatprep.subr.bf16.mxu0 0
    %1464 = vmatpush1.bf16.msra.mxu0 0
    %1465 = vmatprep.subr.bf16.mxu0 0
    %1466 = vmatpush1.bf16.msra.mxu0 0
    %1467 = vmatprep.subr.bf16.mxu0 0
    %1468 = vmatpush1.bf16.msra.mxu0 0
    %1469 = vmatprep.subr.bf16.mxu0 0
    %1470 = vmatpush1.bf16.msra.mxu0 0
    %1471 = vmatprep.subr.bf16.mxu0 0
    %1472 = vmatpush1.bf16.msra.mxu0 0
    %1473 = vmatprep.mubr.bf16.mxu0 0
    %1474 = vmatmul.mubr.bf16.gmra.mrb[0].mxu0 %v1440
    %v1475 = vpop.f32.mrb[0].mxu0
    %v1476 = vadd.f32 0.0, %v1475
    %v1477 = vpop.f32.mrb[0].mxu0
    %v1478 = vadd.f32 0.0, %v1477
    %v1479 = vpop.f32.mrb[0].mxu0
    %v1480 = vpop.f32.mrb[0].mxu0
    %1481 = vdwg.mxu0
    %1482 = vmatprep.subr.bf16.mxu0 %v542
    %1483 = vmatpush1.bf16.msra.mxu0 %v541
    %1484 = vmatprep.subr.bf16.mxu0 %v546
    %1485 = vmatpush1.bf16.msra.mxu0 %v545
    %1486 = vmatprep.subr.bf16.mxu0 %v550
    %1487 = vmatpush1.bf16.msra.mxu0 %v549
    %1488 = vmatprep.subr.bf16.mxu0 %v554
    %1489 = vmatpush1.bf16.msra.mxu0 %v553
    %1490 = vmatprep.subr.bf16.mxu0 %v558
    %1491 = vmatpush1.bf16.msra.mxu0 %v557
    %1492 = vmatprep.subr.bf16.mxu0 %v562
    %1493 = vmatpush1.bf16.msra.mxu0 %v561
    %1494 = vmatprep.subr.bf16.mxu0 %v566
    %1495 = vmatpush1.bf16.msra.mxu0 %v565
    %1496 = vmatprep.subr.bf16.mxu0 %v570
    %1497 = vmatpush1.bf16.msra.mxu0 %v569
    %1498 = vmatprep.subr.bf16.mxu0 0
    %1499 = vmatpush1.bf16.msra.mxu0 0
    %1500 = vmatprep.subr.bf16.mxu0 0
    %1501 = vmatpush1.bf16.msra.mxu0 0
    %1502 = vmatprep.subr.bf16.mxu0 0
    %1503 = vmatpush1.bf16.msra.mxu0 0
    %1504 = vmatprep.subr.bf16.mxu0 0
    %1505 = vmatpush1.bf16.msra.mxu0 0
    %1506 = vmatprep.subr.bf16.mxu0 0
    %1507 = vmatpush1.bf16.msra.mxu0 0
    %1508 = vmatprep.subr.bf16.mxu0 0
    %1509 = vmatpush1.bf16.msra.mxu0 0
    %1510 = vmatprep.subr.bf16.mxu0 0
    %1511 = vmatpush1.bf16.msra.mxu0 0
    %1512 = vmatprep.subr.bf16.mxu0 0
    %1513 = vmatpush1.bf16.msra.mxu0 0
    %1514 = vmatprep.mubr.bf16.mxu0 0
    %1515 = vmatmul.mubr.bf16.gmra.mrb[0].mxu0 %v1440
    %v1516 = vpop.f32.mrb[0].mxu0
    %v1517 = vadd.f32 0.0, %v1516
    %v1518 = vpop.f32.mrb[0].mxu0
    %v1519 = vadd.f32 0.0, %v1518
    %v1520 = vpop.f32.mrb[0].mxu0
    %v1521 = vpop.f32.mrb[0].mxu0
    %1522 = vdwg.mxu0
    %v1523 = vadd.f32 %v689, %v1476
    %v1524 = vadd.f32 %v693, %v1478
    %v1525 = vadd.f32 %v697, %v1517
    %v1526 = vadd.f32 %v701, %v1519
    %v1527 = vpack.c.bf16 %v1324, %v1324
    %1528 = vmatprep.subr.bf16.mxu0 %v839
    %1529 = vmatpush1.bf16.msra.mxu0 %v838
    %1530 = vmatprep.subr.bf16.mxu0 %v843
    %1531 = vmatpush1.bf16.msra.mxu0 %v842
    %1532 = vmatprep.subr.bf16.mxu0 %v847
    %1533 = vmatpush1.bf16.msra.mxu0 %v846
    %1534 = vmatprep.subr.bf16.mxu0 %v851
    %1535 = vmatpush1.bf16.msra.mxu0 %v850
    %1536 = vmatprep.subr.bf16.mxu0 %v855
    %1537 = vmatpush1.bf16.msra.mxu0 %v854
    %1538 = vmatprep.subr.bf16.mxu0 %v859
    %1539 = vmatpush1.bf16.msra.mxu0 %v858
    %1540 = vmatprep.subr.bf16.mxu0 %v863
    %1541 = vmatpush1.bf16.msra.mxu0 %v862
    %1542 = vmatprep.subr.bf16.mxu0 %v867
    %1543 = vmatpush1.bf16.msra.mxu0 %v866
    %1544 = vmatprep.subr.bf16.mxu0 0
    %1545 = vmatpush1.bf16.msra.mxu0 0
    %1546 = vmatprep.subr.bf16.mxu0 0
    %1547 = vmatpush1.bf16.msra.mxu0 0
    %1548 = vmatprep.subr.bf16.mxu0 0
    %1549 = vmatpush1.bf16.msra.mxu0 0
    %1550 = vmatprep.subr.bf16.mxu0 0
    %1551 = vmatpush1.bf16.msra.mxu0 0
    %1552 = vmatprep.subr.bf16.mxu0 0
    %1553 = vmatpush1.bf16.msra.mxu0 0
    %1554 = vmatprep.subr.bf16.mxu0 0
    %1555 = vmatpush1.bf16.msra.mxu0 0
    %1556 = vmatprep.subr.bf16.mxu0 0
    %1557 = vmatpush1.bf16.msra.mxu0 0
    %1558 = vmatprep.subr.bf16.mxu0 0
    %1559 = vmatpush1.bf16.msra.mxu0 0
    %1560 = vmatprep.mubr.bf16.mxu0 0
    %1561 = vmatmul.mubr.bf16.gmra.mrb[0].mxu0 %v1527
    %v1562 = vpop.f32.mrb[0].mxu0
    %v1563 = vadd.f32 0.0, %v1562
    %v1564 = vpop.f32.mrb[0].mxu0
    %v1565 = vadd.f32 0.0, %v1564
    %v1566 = vpop.f32.mrb[0].mxu0
    %v1567 = vpop.f32.mrb[0].mxu0
    %1568 = vdwg.mxu0
    %1569 = vmatprep.subr.bf16.mxu0 %v841
    %1570 = vmatpush1.bf16.msra.mxu0 %v840
    %1571 = vmatprep.subr.bf16.mxu0 %v845
    %1572 = vmatpush1.bf16.msra.mxu0 %v844
    %1573 = vmatprep.subr.bf16.mxu0 %v849
    %1574 = vmatpush1.bf16.msra.mxu0 %v848
    %1575 = vmatprep.subr.bf16.mxu0 %v853
    %1576 = vmatpush1.bf16.msra.mxu0 %v852
    %1577 = vmatprep.subr.bf16.mxu0 %v857
    %1578 = vmatpush1.bf16.msra.mxu0 %v856
    %1579 = vmatprep.subr.bf16.mxu0 %v861
    %1580 = vmatpush1.bf16.msra.mxu0 %v860
    %1581 = vmatprep.subr.bf16.mxu0 %v865
    %1582 = vmatpush1.bf16.msra.mxu0 %v864
    %1583 = vmatprep.subr.bf16.mxu0 %v869
    %1584 = vmatpush1.bf16.msra.mxu0 %v868
    %1585 = vmatprep.subr.bf16.mxu0 0
    %1586 = vmatpush1.bf16.msra.mxu0 0
    %1587 = vmatprep.subr.bf16.mxu0 0
    %1588 = vmatpush1.bf16.msra.mxu0 0
    %1589 = vmatprep.subr.bf16.mxu0 0
    %1590 = vmatpush1.bf16.msra.mxu0 0
    %1591 = vmatprep.subr.bf16.mxu0 0
    %1592 = vmatpush1.bf16.msra.mxu0 0
    %1593 = vmatprep.subr.bf16.mxu0 0
    %1594 = vmatpush1.bf16.msra.mxu0 0
    %1595 = vmatprep.subr.bf16.mxu0 0
    %1596 = vmatpush1.bf16.msra.mxu0 0
    %1597 = vmatprep.subr.bf16.mxu0 0
    %1598 = vmatpush1.bf16.msra.mxu0 0
    %1599 = vmatprep.subr.bf16.mxu0 0
    %1600 = vmatpush1.bf16.msra.mxu0 0
    %1601 = vmatprep.mubr.bf16.mxu0 0
    %1602 = vmatmul.mubr.bf16.gmra.mrb[0].mxu0 %v1527
    %v1603 = vpop.f32.mrb[0].mxu0
    %v1604 = vadd.f32 0.0, %v1603
    %v1605 = vpop.f32.mrb[0].mxu0
    %v1606 = vadd.f32 0.0, %v1605
    %v1607 = vpop.f32.mrb[0].mxu0
    %v1608 = vpop.f32.mrb[0].mxu0
    %1609 = vdwg.mxu0
    %v1610 = vadd.f32 %v1523, %v1563
    %v1611 = vadd.f32 %v1524, %v1565
    %v1612 = vadd.f32 %v1525, %v1604
    %v1613 = vadd.f32 %v1526, %v1606
    %v1614 = vxor.u32 %v1610, 2147483648
    %v1615 = vmul.f32 %v1614, 1.442695
    %v1616 = vpow.pop %v1615
    %v1617 = vadd.f32 %v1616, 1.0
    %v1618 = vrcp.pop %v1617
    %v1619 = vmul.f32 1.0, %v1618
    %v1620 = vxor.u32 %v1611, 2147483648
    %v1621 = vmul.f32 %v1620, 1.442695
    %v1622 = vpow.pop %v1621
    %v1623 = vadd.f32 %v1622, 1.0
    %v1624 = vrcp.pop %v1623
    %v1625 = vmul.f32 1.0, %v1624
    %v1626 = vtanh.pop %v1612
    %v1627 = vxor.u32 %v1613, 2147483648
    %v1628 = vmul.f32 %v1627, 1.442695
    %v1629 = vpow.pop %v1628
    %v1630 = vadd.f32 %v1629, 1.0
    %v1631 = vrcp.pop %v1630
    %v1632 = vmul.f32 1.0, %v1631
    %v1633 = vmul.f32 %v1625, %v1322
    %v1634 = vmul.f32 %v1619, %v1626
    %v1635 = vadd.f32 %v1633, %v1634
    %v1636 = vtanh.pop %v1635
    %v1637 = vmul.f32 %v1632, %v1636
    %s1638 = scalar_lea.vmem %s0, 96
    %v1639 = vld [vmem:[%s1638] sm:$0xff]
    %v1640 = vld [vmem:[%s1638 + $0x8] sm:$0xff]
    %v1641 = vld [vmem:[%s1638 + $0x10] sm:$0xff]
    %v1642 = vld [vmem:[%s1638 + $0x18] sm:$0xff]
    %1643 = vmatprep.subr.bf16.mxu0 %v236
    %1644 = vmatpush1.bf16.msra.mxu0 %v235
    %1645 = vmatprep.subr.bf16.mxu0 %v240
    %1646 = vmatpush1.bf16.msra.mxu0 %v239
    %1647 = vmatprep.subr.bf16.mxu0 %v244
    %1648 = vmatpush1.bf16.msra.mxu0 %v243
    %1649 = vmatprep.subr.bf16.mxu0 %v248
    %1650 = vmatpush1.bf16.msra.mxu0 %v247
    %1651 = vmatprep.subr.bf16.mxu0 %v252
    %1652 = vmatpush1.bf16.msra.mxu0 %v251
    %1653 = vmatprep.subr.bf16.mxu0 %v256
    %1654 = vmatpush1.bf16.msra.mxu0 %v255
    %1655 = vmatprep.subr.bf16.mxu0 %v260
    %1656 = vmatpush1.bf16.msra.mxu0 %v259
    %1657 = vmatprep.subr.bf16.mxu0 %v264
    %1658 = vmatpush1.bf16.msra.mxu0 %v263
    %1659 = vmatprep.subr.bf16.mxu0 0
    %1660 = vmatpush1.bf16.msra.mxu0 0
    %1661 = vmatprep.subr.bf16.mxu0 0
    %1662 = vmatpush1.bf16.msra.mxu0 0
    %1663 = vmatprep.subr.bf16.mxu0 0
    %1664 = vmatpush1.bf16.msra.mxu0 0
    %1665 = vmatprep.subr.bf16.mxu0 0
    %1666 = vmatpush1.bf16.msra.mxu0 0
    %1667 = vmatprep.subr.bf16.mxu0 0
    %1668 = vmatpush1.bf16.msra.mxu0 0
    %1669 = vmatprep.subr.bf16.mxu0 0
    %1670 = vmatpush1.bf16.msra.mxu0 0
    %1671 = vmatprep.subr.bf16.mxu0 0
    %1672 = vmatpush1.bf16.msra.mxu0 0
    %1673 = vmatprep.subr.bf16.mxu0 0
    %1674 = vmatpush1.bf16.msra.mxu0 0
    %1675 = vmatprep.mubr.bf16.mxu0 0
    %1676 = vmatmul.mubr.bf16.gmra.mrb[0].mxu0 %v1440
    %v1677 = vpop.f32.mrb[0].mxu0
    %v1678 = vadd.f32 0.0, %v1677
    %v1679 = vpop.f32.mrb[0].mxu0
    %v1680 = vadd.f32 0.0, %v1679
    %v1681 = vpop.f32.mrb[0].mxu0
    %v1682 = vpop.f32.mrb[0].mxu0
    %1683 = vdwg.mxu0
    %1684 = vmatprep.subr.bf16.mxu0 %v238
    %1685 = vmatpush1.bf16.msra.mxu0 %v237
    %1686 = vmatprep.subr.bf16.mxu0 %v242
    %1687 = vmatpush1.bf16.msra.mxu0 %v241
    %1688 = vmatprep.subr.bf16.mxu0 %v246
    %1689 = vmatpush1.bf16.msra.mxu0 %v245
    %1690 = vmatprep.subr.bf16.mxu0 %v250
    %1691 = vmatpush1.bf16.msra.mxu0 %v249
    %1692 = vmatprep.subr.bf16.mxu0 %v254
    %1693 = vmatpush1.bf16.msra.mxu0 %v253
    %1694 = vmatprep.subr.bf16.mxu0 %v258
    %1695 = vmatpush1.bf16.msra.mxu0 %v257
    %1696 = vmatprep.subr.bf16.mxu0 %v262
    %1697 = vmatpush1.bf16.msra.mxu0 %v261
    %1698 = vmatprep.subr.bf16.mxu0 %v266
    %1699 = vmatpush1.bf16.msra.mxu0 %v265
    %1700 = vmatprep.subr.bf16.mxu0 0
    %1701 = vmatpush1.bf16.msra.mxu0 0
    %1702 = vmatprep.subr.bf16.mxu0 0
    %1703 = vmatpush1.bf16.msra.mxu0 0
    %1704 = vmatprep.subr.bf16.mxu0 0
    %1705 = vmatpush1.bf16.msra.mxu0 0
    %1706 = vmatprep.subr.bf16.mxu0 0
    %1707 = vmatpush1.bf16.msra.mxu0 0
    %1708 = vmatprep.subr.bf16.mxu0 0
    %1709 = vmatpush1.bf16.msra.mxu0 0
    %1710 = vmatprep.subr.bf16.mxu0 0
    %1711 = vmatpush1.bf16.msra.mxu0 0
    %1712 = vmatprep.subr.bf16.mxu0 0
    %1713 = vmatpush1.bf16.msra.mxu0 0
    %1714 = vmatprep.subr.bf16.mxu0 0
    %1715 = vmatpush1.bf16.msra.mxu0 0
    %1716 = vmatprep.mubr.bf16.mxu0 0
    %1717 = vmatmul.mubr.bf16.gmra.mrb[0].mxu0 %v1440
    %v1718 = vpop.f32.mrb[0].mxu0
    %v1719 = vadd.f32 0.0, %v1718
    %v1720 = vpop.f32.mrb[0].mxu0
    %v1721 = vadd.f32 0.0, %v1720
    %v1722 = vpop.f32.mrb[0].mxu0
    %v1723 = vpop.f32.mrb[0].mxu0
    %1724 = vdwg.mxu0
    %v1725 = vadd.f32 %v1639, %v1678
    %v1726 = vadd.f32 %v1640, %v1680
    %v1727 = vadd.f32 %v1641, %v1719
    %v1728 = vadd.f32 %v1642, %v1721
    %v1729 = vxor.u32 %v1725, 2147483648
    %v1730 = vmul.f32 %v1729, 1.442695
    %v1731 = vpow.pop %v1730
    %v1732 = vadd.f32 %v1731, 1.0
    %v1733 = vrcp.pop %v1732
    %v1734 = vmul.f32 1.0, %v1733
    %v1735 = vxor.u32 %v1726, 2147483648
    %v1736 = vmul.f32 %v1735, 1.442695
    %v1737 = vpow.pop %v1736
    %v1738 = vadd.f32 %v1737, 1.0
    %v1739 = vrcp.pop %v1738
    %v1740 = vmul.f32 1.0, %v1739
    %v1741 = vtanh.pop %v1727
    %v1742 = vxor.u32 %v1728, 2147483648
    %v1743 = vmul.f32 %v1742, 1.442695
    %v1744 = vpow.pop %v1743
    %v1745 = vadd.f32 %v1744, 1.0
    %v1746 = vrcp.pop %v1745
    %v1747 = vmul.f32 1.0, %v1746
    %v1748 = vmul.f32 %v1740, %v1437
    %v1749 = vmul.f32 %v1734, %v1741
    %v1750 = vadd.f32 %v1748, %v1749
    %v1751 = vtanh.pop %v1750
    %v1752 = vmul.f32 %v1747, %v1751
    %v1753 = vpack.c.bf16 %v1752, %v1752
    %1754 = vmatprep.subr.bf16.mxu0 %v540
    %1755 = vmatpush1.bf16.msra.mxu0 %v539
    %1756 = vmatprep.subr.bf16.mxu0 %v544
    %1757 = vmatpush1.bf16.msra.mxu0 %v543
    %1758 = vmatprep.subr.bf16.mxu0 %v548
    %1759 = vmatpush1.bf16.msra.mxu0 %v547
    %1760 = vmatprep.subr.bf16.mxu0 %v552
    %1761 = vmatpush1.bf16.msra.mxu0 %v551
    %1762 = vmatprep.subr.bf16.mxu0 %v556
    %1763 = vmatpush1.bf16.msra.mxu0 %v555
    %1764 = vmatprep.subr.bf16.mxu0 %v560
    %1765 = vmatpush1.bf16.msra.mxu0 %v559
    %1766 = vmatprep.subr.bf16.mxu0 %v564
    %1767 = vmatpush1.bf16.msra.mxu0 %v563
    %1768 = vmatprep.subr.bf16.mxu0 %v568
    %1769 = vmatpush1.bf16.msra.mxu0 %v567
    %1770 = vmatprep.subr.bf16.mxu0 0
    %1771 = vmatpush1.bf16.msra.mxu0 0
    %1772 = vmatprep.subr.bf16.mxu0 0
    %1773 = vmatpush1.bf16.msra.mxu0 0
    %1774 = vmatprep.subr.bf16.mxu0 0
    %1775 = vmatpush1.bf16.msra.mxu0 0
    %1776 = vmatprep.subr.bf16.mxu0 0
    %1777 = vmatpush1.bf16.msra.mxu0 0
    %1778 = vmatprep.subr.bf16.mxu0 0
    %1779 = vmatpush1.bf16.msra.mxu0 0
    %1780 = vmatprep.subr.bf16.mxu0 0
    %1781 = vmatpush1.bf16.msra.mxu0 0
    %1782 = vmatprep.subr.bf16.mxu0 0
    %1783 = vmatpush1.bf16.msra.mxu0 0
    %1784 = vmatprep.subr.bf16.mxu0 0
    %1785 = vmatpush1.bf16.msra.mxu0 0
    %1786 = vmatprep.mubr.bf16.mxu0 0
    %1787 = vmatmul.mubr.bf16.gmra.mrb[0].mxu0 %v1753
    %v1788 = vpop.f32.mrb[0].mxu0
    %v1789 = vadd.f32 0.0, %v1788
    %v1790 = vpop.f32.mrb[0].mxu0
    %v1791 = vadd.f32 0.0, %v1790
    %v1792 = vpop.f32.mrb[0].mxu0
    %v1793 = vpop.f32.mrb[0].mxu0
    %1794 = vdwg.mxu0
    %1795 = vmatprep.subr.bf16.mxu0 %v542
    %1796 = vmatpush1.bf16.msra.mxu0 %v541
    %1797 = vmatprep.subr.bf16.mxu0 %v546
    %1798 = vmatpush1.bf16.msra.mxu0 %v545
    %1799 = vmatprep.subr.bf16.mxu0 %v550
    %1800 = vmatpush1.bf16.msra.mxu0 %v549
    %1801 = vmatprep.subr.bf16.mxu0 %v554
    %1802 = vmatpush1.bf16.msra.mxu0 %v553
    %1803 = vmatprep.subr.bf16.mxu0 %v558
    %1804 = vmatpush1.bf16.msra.mxu0 %v557
    %1805 = vmatprep.subr.bf16.mxu0 %v562
    %1806 = vmatpush1.bf16.msra.mxu0 %v561
    %1807 = vmatprep.subr.bf16.mxu0 %v566
    %1808 = vmatpush1.bf16.msra.mxu0 %v565
    %1809 = vmatprep.subr.bf16.mxu0 %v570
    %1810 = vmatpush1.bf16.msra.mxu0 %v569
    %1811 = vmatprep.subr.bf16.mxu0 0
    %1812 = vmatpush1.bf16.msra.mxu0 0
    %1813 = vmatprep.subr.bf16.mxu0 0
    %1814 = vmatpush1.bf16.msra.mxu0 0
    %1815 = vmatprep.subr.bf16.mxu0 0
    %1816 = vmatpush1.bf16.msra.mxu0 0
    %1817 = vmatprep.subr.bf16.mxu0 0
    %1818 = vmatpush1.bf16.msra.mxu0 0
    %1819 = vmatprep.subr.bf16.mxu0 0
    %1820 = vmatpush1.bf16.msra.mxu0 0
    %1821 = vmatprep.subr.bf16.mxu0 0
    %1822 = vmatpush1.bf16.msra.mxu0 0
    %1823 = vmatprep.subr.bf16.mxu0 0
    %1824 = vmatpush1.bf16.msra.mxu0 0
    %1825 = vmatprep.subr.bf16.mxu0 0
    %1826 = vmatpush1.bf16.msra.mxu0 0
    %1827 = vmatprep.mubr.bf16.mxu0 0
    %1828 = vmatmul.mubr.bf16.gmra.mrb[0].mxu0 %v1753
    %v1829 = vpop.f32.mrb[0].mxu0
    %v1830 = vadd.f32 0.0, %v1829
    %v1831 = vpop.f32.mrb[0].mxu0
    %v1832 = vadd.f32 0.0, %v1831
    %v1833 = vpop.f32.mrb[0].mxu0
    %v1834 = vpop.f32.mrb[0].mxu0
    %1835 = vdwg.mxu0
    %v1836 = vadd.f32 %v689, %v1789
    %v1837 = vadd.f32 %v693, %v1791
    %v1838 = vadd.f32 %v697, %v1830
    %v1839 = vadd.f32 %v701, %v1832
    %v1840 = vpack.c.bf16 %v1637, %v1637
    %1841 = vmatprep.subr.bf16.mxu0 %v839
    %1842 = vmatpush1.bf16.msra.mxu0 %v838
    %1843 = vmatprep.subr.bf16.mxu0 %v843
    %1844 = vmatpush1.bf16.msra.mxu0 %v842
    %1845 = vmatprep.subr.bf16.mxu0 %v847
    %1846 = vmatpush1.bf16.msra.mxu0 %v846
    %1847 = vmatprep.subr.bf16.mxu0 %v851
    %1848 = vmatpush1.bf16.msra.mxu0 %v850
    %1849 = vmatprep.subr.bf16.mxu0 %v855
    %1850 = vmatpush1.bf16.msra.mxu0 %v854
    %1851 = vmatprep.subr.bf16.mxu0 %v859
    %1852 = vmatpush1.bf16.msra.mxu0 %v858
    %1853 = vmatprep.subr.bf16.mxu0 %v863
    %1854 = vmatpush1.bf16.msra.mxu0 %v862
    %1855 = vmatprep.subr.bf16.mxu0 %v867
    %1856 = vmatpush1.bf16.msra.mxu0 %v866
    %1857 = vmatprep.subr.bf16.mxu0 0
    %1858 = vmatpush1.bf16.msra.mxu0 0
    %1859 = vmatprep.subr.bf16.mxu0 0
    %1860 = vmatpush1.bf16.msra.mxu0 0
    %1861 = vmatprep.subr.bf16.mxu0 0
    %1862 = vmatpush1.bf16.msra.mxu0 0
    %1863 = vmatprep.subr.bf16.mxu0 0
    %1864 = vmatpush1.bf16.msra.mxu0 0
    %1865 = vmatprep.subr.bf16.mxu0 0
    %1866 = vmatpush1.bf16.msra.mxu0 0
    %1867 = vmatprep.subr.bf16.mxu0 0
    %1868 = vmatpush1.bf16.msra.mxu0 0
    %1869 = vmatprep.subr.bf16.mxu0 0
    %1870 = vmatpush1.bf16.msra.mxu0 0
    %1871 = vmatprep.subr.bf16.mxu0 0
    %1872 = vmatpush1.bf16.msra.mxu0 0
    %1873 = vmatprep.mubr.bf16.mxu0 0
    %1874 = vmatmul.mubr.bf16.gmra.mrb[0].mxu0 %v1840
    %v1875 = vpop.f32.mrb[0].mxu0
    %v1876 = vadd.f32 0.0, %v1875
    %v1877 = vpop.f32.mrb[0].mxu0
    %v1878 = vadd.f32 0.0, %v1877
    %v1879 = vpop.f32.mrb[0].mxu0
    %v1880 = vpop.f32.mrb[0].mxu0
    %1881 = vdwg.mxu0
    %1882 = vmatprep.subr.bf16.mxu0 %v841
    %1883 = vmatpush1.bf16.msra.mxu0 %v840
    %1884 = vmatprep.subr.bf16.mxu0 %v845
    %1885 = vmatpush1.bf16.msra.mxu0 %v844
    %1886 = vmatprep.subr.bf16.mxu0 %v849
    %1887 = vmatpush1.bf16.msra.mxu0 %v848
    %1888 = vmatprep.subr.bf16.mxu0 %v853
    %1889 = vmatpush1.bf16.msra.mxu0 %v852
    %1890 = vmatprep.subr.bf16.mxu0 %v857
    %1891 = vmatpush1.bf16.msra.mxu0 %v856
    %1892 = vmatprep.subr.bf16.mxu0 %v861
    %1893 = vmatpush1.bf16.msra.mxu0 %v860
    %1894 = vmatprep.subr.bf16.mxu0 %v865
    %1895 = vmatpush1.bf16.msra.mxu0 %v864
    %1896 = vmatprep.subr.bf16.mxu0 %v869
    %1897 = vmatpush1.bf16.msra.mxu0 %v868
    %1898 = vmatprep.subr.bf16.mxu0 0
    %1899 = vmatpush1.bf16.msra.mxu0 0
    %1900 = vmatprep.subr.bf16.mxu0 0
    %1901 = vmatpush1.bf16.msra.mxu0 0
    %1902 = vmatprep.subr.bf16.mxu0 0
    %1903 = vmatpush1.bf16.msra.mxu0 0
    %1904 = vmatprep.subr.bf16.mxu0 0
    %1905 = vmatpush1.bf16.msra.mxu0 0
    %1906 = vmatprep.subr.bf16.mxu0 0
    %1907 = vmatpush1.bf16.msra.mxu0 0
    %1908 = vmatprep.subr.bf16.mxu0 0
    %1909 = vmatpush1.bf16.msra.mxu0 0
    %1910 = vmatprep.subr.bf16.mxu0 0
    %1911 = vmatpush1.bf16.msra.mxu0 0
    %1912 = vmatprep.subr.bf16.mxu0 0
    %1913 = vmatpush1.bf16.msra.mxu0 0
    %1914 = vmatprep.mubr.bf16.mxu0 0
    %1915 = vmatmul.mubr.bf16.gmra.mrb[0].mxu0 %v1840
    %v1916 = vpop.f32.mrb[0].mxu0
    %v1917 = vadd.f32 0.0, %v1916
    %v1918 = vpop.f32.mrb[0].mxu0
    %v1919 = vadd.f32 0.0, %v1918
    %v1920 = vpop.f32.mrb[0].mxu0
    %v1921 = vpop.f32.mrb[0].mxu0
    %1922 = vdwg.mxu0
    %v1923 = vadd.f32 %v1836, %v1876
    %v1924 = vadd.f32 %v1837, %v1878
    %v1925 = vadd.f32 %v1838, %v1917
    %v1926 = vadd.f32 %v1839, %v1919
    %v1927 = vxor.u32 %v1923, 2147483648
    %v1928 = vmul.f32 %v1927, 1.442695
    %v1929 = vpow.pop %v1928
    %v1930 = vadd.f32 %v1929, 1.0
    %v1931 = vrcp.pop %v1930
    %v1932 = vmul.f32 1.0, %v1931
    %v1933 = vxor.u32 %v1924, 2147483648
    %v1934 = vmul.f32 %v1933, 1.442695
    %v1935 = vpow.pop %v1934
    %v1936 = vadd.f32 %v1935, 1.0
    %v1937 = vrcp.pop %v1936
    %v1938 = vmul.f32 1.0, %v1937
    %v1939 = vtanh.pop %v1925
    %v1940 = vxor.u32 %v1926, 2147483648
    %v1941 = vmul.f32 %v1940, 1.442695
    %v1942 = vpow.pop %v1941
    %v1943 = vadd.f32 %v1942, 1.0
    %v1944 = vrcp.pop %v1943
    %v1945 = vmul.f32 1.0, %v1944
    %v1946 = vmul.f32 %v1938, %v1635
    %v1947 = vmul.f32 %v1932, %v1939
    %v1948 = vadd.f32 %v1946, %v1947
    %v1949 = vtanh.pop %v1948
    %v1950 = vmul.f32 %v1945, %v1949
    %s1951 = scalar_lea.vmem %s0, 128
    %v1952 = vld [vmem:[%s1951] sm:$0xff]
    %v1953 = vld [vmem:[%s1951 + $0x8] sm:$0xff]
    %v1954 = vld [vmem:[%s1951 + $0x10] sm:$0xff]
    %v1955 = vld [vmem:[%s1951 + $0x18] sm:$0xff]
    %1956 = vmatprep.subr.bf16.mxu0 %v236
    %1957 = vmatpush1.bf16.msra.mxu0 %v235
    %1958 = vmatprep.subr.bf16.mxu0 %v240
    %1959 = vmatpush1.bf16.msra.mxu0 %v239
    %1960 = vmatprep.subr.bf16.mxu0 %v244
    %1961 = vmatpush1.bf16.msra.mxu0 %v243
    %1962 = vmatprep.subr.bf16.mxu0 %v248
    %1963 = vmatpush1.bf16.msra.mxu0 %v247
    %1964 = vmatprep.subr.bf16.mxu0 %v252
    %1965 = vmatpush1.bf16.msra.mxu0 %v251
    %1966 = vmatprep.subr.bf16.mxu0 %v256
    %1967 = vmatpush1.bf16.msra.mxu0 %v255
    %1968 = vmatprep.subr.bf16.mxu0 %v260
    %1969 = vmatpush1.bf16.msra.mxu0 %v259
    %1970 = vmatprep.subr.bf16.mxu0 %v264
    %1971 = vmatpush1.bf16.msra.mxu0 %v263
    %1972 = vmatprep.subr.bf16.mxu0 0
    %1973 = vmatpush1.bf16.msra.mxu0 0
    %1974 = vmatprep.subr.bf16.mxu0 0
    %1975 = vmatpush1.bf16.msra.mxu0 0
    %1976 = vmatprep.subr.bf16.mxu0 0
    %1977 = vmatpush1.bf16.msra.mxu0 0
    %1978 = vmatprep.subr.bf16.mxu0 0
    %1979 = vmatpush1.bf16.msra.mxu0 0
    %1980 = vmatprep.subr.bf16.mxu0 0
    %1981 = vmatpush1.bf16.msra.mxu0 0
    %1982 = vmatprep.subr.bf16.mxu0 0
    %1983 = vmatpush1.bf16.msra.mxu0 0
    %1984 = vmatprep.subr.bf16.mxu0 0
    %1985 = vmatpush1.bf16.msra.mxu0 0
    %1986 = vmatprep.subr.bf16.mxu0 0
    %1987 = vmatpush1.bf16.msra.mxu0 0
    %1988 = vmatprep.mubr.bf16.mxu0 0
    %1989 = vmatmul.mubr.bf16.gmra.mrb[0].mxu0 %v1753
    %v1990 = vpop.f32.mrb[0].mxu0
    %v1991 = vadd.f32 0.0, %v1990
    %v1992 = vpop.f32.mrb[0].mxu0
    %v1993 = vadd.f32 0.0, %v1992
    %v1994 = vpop.f32.mrb[0].mxu0
    %v1995 = vpop.f32.mrb[0].mxu0
    %1996 = vdwg.mxu0
    %1997 = vmatprep.subr.bf16.mxu0 %v238
    %1998 = vmatpush1.bf16.msra.mxu0 %v237
    %1999 = vmatprep.subr.bf16.mxu0 %v242
    %2000 = vmatpush1.bf16.msra.mxu0 %v241
    %2001 = vmatprep.subr.bf16.mxu0 %v246
    %2002 = vmatpush1.bf16.msra.mxu0 %v245
    %2003 = vmatprep.subr.bf16.mxu0 %v250
    %2004 = vmatpush1.bf16.msra.mxu0 %v249
    %2005 = vmatprep.subr.bf16.mxu0 %v254
    %2006 = vmatpush1.bf16.msra.mxu0 %v253
    %2007 = vmatprep.subr.bf16.mxu0 %v258
    %2008 = vmatpush1.bf16.msra.mxu0 %v257
    %2009 = vmatprep.subr.bf16.mxu0 %v262
    %2010 = vmatpush1.bf16.msra.mxu0 %v261
    %2011 = vmatprep.subr.bf16.mxu0 %v266
    %2012 = vmatpush1.bf16.msra.mxu0 %v265
    %2013 = vmatprep.subr.bf16.mxu0 0
    %2014 = vmatpush1.bf16.msra.mxu0 0
    %2015 = vmatprep.subr.bf16.mxu0 0
    %2016 = vmatpush1.bf16.msra.mxu0 0
    %2017 = vmatprep.subr.bf16.mxu0 0
    %2018 = vmatpush1.bf16.msra.mxu0 0
    %2019 = vmatprep.subr.bf16.mxu0 0
    %2020 = vmatpush1.bf16.msra.mxu0 0
    %2021 = vmatprep.subr.bf16.mxu0 0
    %2022 = vmatpush1.bf16.msra.mxu0 0
    %2023 = vmatprep.subr.bf16.mxu0 0
    %2024 = vmatpush1.bf16.msra.mxu0 0
    %2025 = vmatprep.subr.bf16.mxu0 0
    %2026 = vmatpush1.bf16.msra.mxu0 0
    %2027 = vmatprep.subr.bf16.mxu0 0
    %2028 = vmatpush1.bf16.msra.mxu0 0
    %2029 = vmatprep.mubr.bf16.mxu0 0
    %2030 = vmatmul.mubr.bf16.gmra.mrb[0].mxu0 %v1753
    %v2031 = vpop.f32.mrb[0].mxu0
    %v2032 = vadd.f32 0.0, %v2031
    %v2033 = vpop.f32.mrb[0].mxu0
    %v2034 = vadd.f32 0.0, %v2033
    %v2035 = vpop.f32.mrb[0].mxu0
    %v2036 = vpop.f32.mrb[0].mxu0
    %2037 = vdwg.mxu0
    %v2038 = vadd.f32 %v1952, %v1991
    %v2039 = vadd.f32 %v1953, %v1993
    %v2040 = vadd.f32 %v1954, %v2032
    %v2041 = vadd.f32 %v1955, %v2034
    %v2042 = vxor.u32 %v2038, 2147483648
    %v2043 = vmul.f32 %v2042, 1.442695
    %v2044 = vpow.pop %v2043
    %v2045 = vadd.f32 %v2044, 1.0
    %v2046 = vrcp.pop %v2045
    %v2047 = vmul.f32 1.0, %v2046
    %v2048 = vxor.u32 %v2039, 2147483648
    %v2049 = vmul.f32 %v2048, 1.442695
    %v2050 = vpow.pop %v2049
    %v2051 = vadd.f32 %v2050, 1.0
    %v2052 = vrcp.pop %v2051
    %v2053 = vmul.f32 1.0, %v2052
    %v2054 = vtanh.pop %v2040
    %v2055 = vxor.u32 %v2041, 2147483648
    %v2056 = vmul.f32 %v2055, 1.442695
    %v2057 = vpow.pop %v2056
    %v2058 = vadd.f32 %v2057, 1.0
    %v2059 = vrcp.pop %v2058
    %v2060 = vmul.f32 1.0, %v2059
    %v2061 = vmul.f32 %v2053, %v1750
    %v2062 = vmul.f32 %v2047, %v2054
    %v2063 = vadd.f32 %v2061, %v2062
    %v2064 = vtanh.pop %v2063
    %v2065 = vmul.f32 %v2060, %v2064
    %v2066 = vpack.c.bf16 %v2065, %v2065
    %2067 = vmatprep.subr.bf16.mxu0 %v540
    %2068 = vmatpush1.bf16.msra.mxu0 %v539
    %2069 = vmatprep.subr.bf16.mxu0 %v544
    %2070 = vmatpush1.bf16.msra.mxu0 %v543
    %2071 = vmatprep.subr.bf16.mxu0 %v548
    %2072 = vmatpush1.bf16.msra.mxu0 %v547
    %2073 = vmatprep.subr.bf16.mxu0 %v552
    %2074 = vmatpush1.bf16.msra.mxu0 %v551
    %2075 = vmatprep.subr.bf16.mxu0 %v556
    %2076 = vmatpush1.bf16.msra.mxu0 %v555
    %2077 = vmatprep.subr.bf16.mxu0 %v560
    %2078 = vmatpush1.bf16.msra.mxu0 %v559
    %2079 = vmatprep.subr.bf16.mxu0 %v564
    %2080 = vmatpush1.bf16.msra.mxu0 %v563
    %2081 = vmatprep.subr.bf16.mxu0 %v568
    %2082 = vmatpush1.bf16.msra.mxu0 %v567
    %2083 = vmatprep.subr.bf16.mxu0 0
    %2084 = vmatpush1.bf16.msra.mxu0 0
    %2085 = vmatprep.subr.bf16.mxu0 0
    %2086 = vmatpush1.bf16.msra.mxu0 0
    %2087 = vmatprep.subr.bf16.mxu0 0
    %2088 = vmatpush1.bf16.msra.mxu0 0
    %2089 = vmatprep.subr.bf16.mxu0 0
    %2090 = vmatpush1.bf16.msra.mxu0 0
    %2091 = vmatprep.subr.bf16.mxu0 0
    %2092 = vmatpush1.bf16.msra.mxu0 0
    %2093 = vmatprep.subr.bf16.mxu0 0
    %2094 = vmatpush1.bf16.msra.mxu0 0
    %2095 = vmatprep.subr.bf16.mxu0 0
    %2096 = vmatpush1.bf16.msra.mxu0 0
    %2097 = vmatprep.subr.bf16.mxu0 0
    %2098 = vmatpush1.bf16.msra.mxu0 0
    %2099 = vmatprep.mubr.bf16.mxu0 0
    %2100 = vmatmul.mubr.bf16.gmra.mrb[0].mxu0 %v2066
    %v2101 = vpop.f32.mrb[0].mxu0
    %v2102 = vadd.f32 0.0, %v2101
    %v2103 = vpop.f32.mrb[0].mxu0
    %v2104 = vadd.f32 0.0, %v2103
    %v2105 = vpop.f32.mrb[0].mxu0
    %v2106 = vpop.f32.mrb[0].mxu0
    %2107 = vdwg.mxu0
    %2108 = vmatprep.subr.bf16.mxu0 %v542
    %2109 = vmatpush1.bf16.msra.mxu0 %v541
    %2110 = vmatprep.subr.bf16.mxu0 %v546
    %2111 = vmatpush1.bf16.msra.mxu0 %v545
    %2112 = vmatprep.subr.bf16.mxu0 %v550
    %2113 = vmatpush1.bf16.msra.mxu0 %v549
    %2114 = vmatprep.subr.bf16.mxu0 %v554
    %2115 = vmatpush1.bf16.msra.mxu0 %v553
    %2116 = vmatprep.subr.bf16.mxu0 %v558
    %2117 = vmatpush1.bf16.msra.mxu0 %v557
    %2118 = vmatprep.subr.bf16.mxu0 %v562
    %2119 = vmatpush1.bf16.msra.mxu0 %v561
    %2120 = vmatprep.subr.bf16.mxu0 %v566
    %2121 = vmatpush1.bf16.msra.mxu0 %v565
    %2122 = vmatprep.subr.bf16.mxu0 %v570
    %2123 = vmatpush1.bf16.msra.mxu0 %v569
    %2124 = vmatprep.subr.bf16.mxu0 0
    %2125 = vmatpush1.bf16.msra.mxu0 0
    %2126 = vmatprep.subr.bf16.mxu0 0
    %2127 = vmatpush1.bf16.msra.mxu0 0
    %2128 = vmatprep.subr.bf16.mxu0 0
    %2129 = vmatpush1.bf16.msra.mxu0 0
    %2130 = vmatprep.subr.bf16.mxu0 0
    %2131 = vmatpush1.bf16.msra.mxu0 0
    %2132 = vmatprep.subr.bf16.mxu0 0
    %2133 = vmatpush1.bf16.msra.mxu0 0
    %2134 = vmatprep.subr.bf16.mxu0 0
    %2135 = vmatpush1.bf16.msra.mxu0 0
    %2136 = vmatprep.subr.bf16.mxu0 0
    %2137 = vmatpush1.bf16.msra.mxu0 0
    %2138 = vmatprep.subr.bf16.mxu0 0
    %2139 = vmatpush1.bf16.msra.mxu0 0
    %2140 = vmatprep.mubr.bf16.mxu0 0
    %2141 = vmatmul.mubr.bf16.gmra.mrb[0].mxu0 %v2066
    %v2142 = vpop.f32.mrb[0].mxu0
    %v2143 = vadd.f32 0.0, %v2142
    %v2144 = vpop.f32.mrb[0].mxu0
    %v2145 = vadd.f32 0.0, %v2144
    %v2146 = vpop.f32.mrb[0].mxu0
    %v2147 = vpop.f32.mrb[0].mxu0
    %2148 = vdwg.mxu0
    %v2149 = vadd.f32 %v689, %v2102
    %v2150 = vadd.f32 %v693, %v2104
    %v2151 = vadd.f32 %v697, %v2143
    %v2152 = vadd.f32 %v701, %v2145
    %v2153 = vpack.c.bf16 %v1950, %v1950
    %2154 = vmatprep.subr.bf16.mxu0 %v839
    %2155 = vmatpush1.bf16.msra.mxu0 %v838
    %2156 = vmatprep.subr.bf16.mxu0 %v843
    %2157 = vmatpush1.bf16.msra.mxu0 %v842
    %2158 = vmatprep.subr.bf16.mxu0 %v847
    %2159 = vmatpush1.bf16.msra.mxu0 %v846
    %2160 = vmatprep.subr.bf16.mxu0 %v851
    %2161 = vmatpush1.bf16.msra.mxu0 %v850
    %2162 = vmatprep.subr.bf16.mxu0 %v855
    %2163 = vmatpush1.bf16.msra.mxu0 %v854
    %2164 = vmatprep.subr.bf16.mxu0 %v859
    %2165 = vmatpush1.bf16.msra.mxu0 %v858
    %2166 = vmatprep.subr.bf16.mxu0 %v863
    %2167 = vmatpush1.bf16.msra.mxu0 %v862
    %2168 = vmatprep.subr.bf16.mxu0 %v867
    %2169 = vmatpush1.bf16.msra.mxu0 %v866
    %2170 = vmatprep.subr.bf16.mxu0 0
    %2171 = vmatpush1.bf16.msra.mxu0 0
    %2172 = vmatprep.subr.bf16.mxu0 0
    %2173 = vmatpush1.bf16.msra.mxu0 0
    %2174 = vmatprep.subr.bf16.mxu0 0
    %2175 = vmatpush1.bf16.msra.mxu0 0
    %2176 = vmatprep.subr.bf16.mxu0 0
    %2177 = vmatpush1.bf16.msra.mxu0 0
    %2178 = vmatprep.subr.bf16.mxu0 0
    %2179 = vmatpush1.bf16.msra.mxu0 0
    %2180 = vmatprep.subr.bf16.mxu0 0
    %2181 = vmatpush1.bf16.msra.mxu0 0
    %2182 = vmatprep.subr.bf16.mxu0 0
    %2183 = vmatpush1.bf16.msra.mxu0 0
    %2184 = vmatprep.subr.bf16.mxu0 0
    %2185 = vmatpush1.bf16.msra.mxu0 0
    %2186 = vmatprep.mubr.bf16.mxu0 0
    %2187 = vmatmul.mubr.bf16.gmra.mrb[0].mxu0 %v2153
    %v2188 = vpop.f32.mrb[0].mxu0
    %v2189 = vadd.f32 0.0, %v2188
    %v2190 = vpop.f32.mrb[0].mxu0
    %v2191 = vadd.f32 0.0, %v2190
    %v2192 = vpop.f32.mrb[0].mxu0
    %v2193 = vpop.f32.mrb[0].mxu0
    %2194 = vdwg.mxu0
    %2195 = vmatprep.subr.bf16.mxu0 %v841
    %2196 = vmatpush1.bf16.msra.mxu0 %v840
    %2197 = vmatprep.subr.bf16.mxu0 %v845
    %2198 = vmatpush1.bf16.msra.mxu0 %v844
    %2199 = vmatprep.subr.bf16.mxu0 %v849
    %2200 = vmatpush1.bf16.msra.mxu0 %v848
    %2201 = vmatprep.subr.bf16.mxu0 %v853
    %2202 = vmatpush1.bf16.msra.mxu0 %v852
    %2203 = vmatprep.subr.bf16.mxu0 %v857
    %2204 = vmatpush1.bf16.msra.mxu0 %v856
    %2205 = vmatprep.subr.bf16.mxu0 %v861
    %2206 = vmatpush1.bf16.msra.mxu0 %v860
    %2207 = vmatprep.subr.bf16.mxu0 %v865
    %2208 = vmatpush1.bf16.msra.mxu0 %v864
    %2209 = vmatprep.subr.bf16.mxu0 %v869
    %2210 = vmatpush1.bf16.msra.mxu0 %v868
    %2211 = vmatprep.subr.bf16.mxu0 0
    %2212 = vmatpush1.bf16.msra.mxu0 0
    %2213 = vmatprep.subr.bf16.mxu0 0
    %2214 = vmatpush1.bf16.msra.mxu0 0
    %2215 = vmatprep.subr.bf16.mxu0 0
    %2216 = vmatpush1.bf16.msra.mxu0 0
    %2217 = vmatprep.subr.bf16.mxu0 0
    %2218 = vmatpush1.bf16.msra.mxu0 0
    %2219 = vmatprep.subr.bf16.mxu0 0
    %2220 = vmatpush1.bf16.msra.mxu0 0
    %2221 = vmatprep.subr.bf16.mxu0 0
    %2222 = vmatpush1.bf16.msra.mxu0 0
    %2223 = vmatprep.subr.bf16.mxu0 0
    %2224 = vmatpush1.bf16.msra.mxu0 0
    %2225 = vmatprep.subr.bf16.mxu0 0
    %2226 = vmatpush1.bf16.msra.mxu0 0
    %2227 = vmatprep.mubr.bf16.mxu0 0
    %2228 = vmatmul.mubr.bf16.gmra.mrb[0].mxu0 %v2153
    %v2229 = vpop.f32.mrb[0].mxu0
    %v2230 = vadd.f32 0.0, %v2229
    %v2231 = vpop.f32.mrb[0].mxu0
    %v2232 = vadd.f32 0.0, %v2231
    %v2233 = vpop.f32.mrb[0].mxu0
    %v2234 = vpop.f32.mrb[0].mxu0
    %2235 = vdwg.mxu0
    %v2236 = vadd.f32 %v2149, %v2189
    %v2237 = vadd.f32 %v2150, %v2191
    %v2238 = vadd.f32 %v2151, %v2230
    %v2239 = vadd.f32 %v2152, %v2232
    %v2240 = vxor.u32 %v2236, 2147483648
    %v2241 = vmul.f32 %v2240, 1.442695
    %v2242 = vpow.pop %v2241
    %v2243 = vadd.f32 %v2242, 1.0
    %v2244 = vrcp.pop %v2243
    %v2245 = vmul.f32 1.0, %v2244
    %v2246 = vxor.u32 %v2237, 2147483648
    %v2247 = vmul.f32 %v2246, 1.442695
    %v2248 = vpow.pop %v2247
    %v2249 = vadd.f32 %v2248, 1.0
    %v2250 = vrcp.pop %v2249
    %v2251 = vmul.f32 1.0, %v2250
    %v2252 = vtanh.pop %v2238
    %v2253 = vxor.u32 %v2239, 2147483648
    %v2254 = vmul.f32 %v2253, 1.442695
    %v2255 = vpow.pop %v2254
    %v2256 = vadd.f32 %v2255, 1.0
    %v2257 = vrcp.pop %v2256
    %v2258 = vmul.f32 1.0, %v2257
    %v2259 = vmul.f32 %v2251, %v1948
    %v2260 = vmul.f32 %v2245, %v2252
    %v2261 = vadd.f32 %v2259, %v2260
    %v2262 = vtanh.pop %v2261
    %v2263 = vmul.f32 %v2258, %v2262
    %s2264 = scalar_lea.vmem %s0, 160
    %v2265 = vld [vmem:[%s2264] sm:$0xff]
    %v2266 = vld [vmem:[%s2264 + $0x8] sm:$0xff]
    %v2267 = vld [vmem:[%s2264 + $0x10] sm:$0xff]
    %v2268 = vld [vmem:[%s2264 + $0x18] sm:$0xff]
    %2269 = vmatprep.subr.bf16.mxu0 %v236
    %2270 = vmatpush1.bf16.msra.mxu0 %v235
    %2271 = vmatprep.subr.bf16.mxu0 %v240
    %2272 = vmatpush1.bf16.msra.mxu0 %v239
    %2273 = vmatprep.subr.bf16.mxu0 %v244
    %2274 = vmatpush1.bf16.msra.mxu0 %v243
    %2275 = vmatprep.subr.bf16.mxu0 %v248
    %2276 = vmatpush1.bf16.msra.mxu0 %v247
    %2277 = vmatprep.subr.bf16.mxu0 %v252
    %2278 = vmatpush1.bf16.msra.mxu0 %v251
    %2279 = vmatprep.subr.bf16.mxu0 %v256
    %2280 = vmatpush1.bf16.msra.mxu0 %v255
    %2281 = vmatprep.subr.bf16.mxu0 %v260
    %2282 = vmatpush1.bf16.msra.mxu0 %v259
    %2283 = vmatprep.subr.bf16.mxu0 %v264
    %2284 = vmatpush1.bf16.msra.mxu0 %v263
    %2285 = vmatprep.subr.bf16.mxu0 0
    %2286 = vmatpush1.bf16.msra.mxu0 0
    %2287 = vmatprep.subr.bf16.mxu0 0
    %2288 = vmatpush1.bf16.msra.mxu0 0
    %2289 = vmatprep.subr.bf16.mxu0 0
    %2290 = vmatpush1.bf16.msra.mxu0 0
    %2291 = vmatprep.subr.bf16.mxu0 0
    %2292 = vmatpush1.bf16.msra.mxu0 0
    %2293 = vmatprep.subr.bf16.mxu0 0
    %2294 = vmatpush1.bf16.msra.mxu0 0
    %2295 = vmatprep.subr.bf16.mxu0 0
    %2296 = vmatpush1.bf16.msra.mxu0 0
    %2297 = vmatprep.subr.bf16.mxu0 0
    %2298 = vmatpush1.bf16.msra.mxu0 0
    %2299 = vmatprep.subr.bf16.mxu0 0
    %2300 = vmatpush1.bf16.msra.mxu0 0
    %2301 = vmatprep.mubr.bf16.mxu0 0
    %2302 = vmatmul.mubr.bf16.gmra.mrb[0].mxu0 %v2066
    %v2303 = vpop.f32.mrb[0].mxu0
    %v2304 = vadd.f32 0.0, %v2303
    %v2305 = vpop.f32.mrb[0].mxu0
    %v2306 = vadd.f32 0.0, %v2305
    %v2307 = vpop.f32.mrb[0].mxu0
    %v2308 = vpop.f32.mrb[0].mxu0
    %2309 = vdwg.mxu0
    %2310 = vmatprep.subr.bf16.mxu0 %v238
    %2311 = vmatpush1.bf16.msra.mxu0 %v237
    %2312 = vmatprep.subr.bf16.mxu0 %v242
    %2313 = vmatpush1.bf16.msra.mxu0 %v241
    %2314 = vmatprep.subr.bf16.mxu0 %v246
    %2315 = vmatpush1.bf16.msra.mxu0 %v245
    %2316 = vmatprep.subr.bf16.mxu0 %v250
    %2317 = vmatpush1.bf16.msra.mxu0 %v249
    %2318 = vmatprep.subr.bf16.mxu0 %v254
    %2319 = vmatpush1.bf16.msra.mxu0 %v253
    %2320 = vmatprep.subr.bf16.mxu0 %v258
    %2321 = vmatpush1.bf16.msra.mxu0 %v257
    %2322 = vmatprep.subr.bf16.mxu0 %v262
    %2323 = vmatpush1.bf16.msra.mxu0 %v261
    %2324 = vmatprep.subr.bf16.mxu0 %v266
    %2325 = vmatpush1.bf16.msra.mxu0 %v265
    %2326 = vmatprep.subr.bf16.mxu0 0
    %2327 = vmatpush1.bf16.msra.mxu0 0
    %2328 = vmatprep.subr.bf16.mxu0 0
    %2329 = vmatpush1.bf16.msra.mxu0 0
    %2330 = vmatprep.subr.bf16.mxu0 0
    %2331 = vmatpush1.bf16.msra.mxu0 0
    %2332 = vmatprep.subr.bf16.mxu0 0
    %2333 = vmatpush1.bf16.msra.mxu0 0
    %2334 = vmatprep.subr.bf16.mxu0 0
    %2335 = vmatpush1.bf16.msra.mxu0 0
    %2336 = vmatprep.subr.bf16.mxu0 0
    %2337 = vmatpush1.bf16.msra.mxu0 0
    %2338 = vmatprep.subr.bf16.mxu0 0
    %2339 = vmatpush1.bf16.msra.mxu0 0
    %2340 = vmatprep.subr.bf16.mxu0 0
    %2341 = vmatpush1.bf16.msra.mxu0 0
    %2342 = vmatprep.mubr.bf16.mxu0 0
    %2343 = vmatmul.mubr.bf16.gmra.mrb[0].mxu0 %v2066
    %v2344 = vpop.f32.mrb[0].mxu0
    %v2345 = vadd.f32 0.0, %v2344
    %v2346 = vpop.f32.mrb[0].mxu0
    %v2347 = vadd.f32 0.0, %v2346
    %v2348 = vpop.f32.mrb[0].mxu0
    %v2349 = vpop.f32.mrb[0].mxu0
    %2350 = vdwg.mxu0
    %v2351 = vadd.f32 %v2265, %v2304
    %v2352 = vadd.f32 %v2266, %v2306
    %v2353 = vadd.f32 %v2267, %v2345
    %v2354 = vadd.f32 %v2268, %v2347
    %v2355 = vxor.u32 %v2351, 2147483648
    %v2356 = vmul.f32 %v2355, 1.442695
    %v2357 = vpow.pop %v2356
    %v2358 = vadd.f32 %v2357, 1.0
    %v2359 = vrcp.pop %v2358
    %v2360 = vmul.f32 1.0, %v2359
    %v2361 = vxor.u32 %v2352, 2147483648
    %v2362 = vmul.f32 %v2361, 1.442695
    %v2363 = vpow.pop %v2362
    %v2364 = vadd.f32 %v2363, 1.0
    %v2365 = vrcp.pop %v2364
    %v2366 = vmul.f32 1.0, %v2365
    %v2367 = vtanh.pop %v2353
    %v2368 = vxor.u32 %v2354, 2147483648
    %v2369 = vmul.f32 %v2368, 1.442695
    %v2370 = vpow.pop %v2369
    %v2371 = vadd.f32 %v2370, 1.0
    %v2372 = vrcp.pop %v2371
    %v2373 = vmul.f32 1.0, %v2372
    %v2374 = vmul.f32 %v2366, %v2063
    %v2375 = vmul.f32 %v2360, %v2367
    %v2376 = vadd.f32 %v2374, %v2375
    %v2377 = vtanh.pop %v2376
    %v2378 = vmul.f32 %v2373, %v2377
    %v2379 = vpack.c.bf16 %v2378, %v2378
    %2380 = vmatprep.subr.bf16.mxu0 %v540
    %2381 = vmatpush1.bf16.msra.mxu0 %v539
    %2382 = vmatprep.subr.bf16.mxu0 %v544
    %2383 = vmatpush1.bf16.msra.mxu0 %v543
    %2384 = vmatprep.subr.bf16.mxu0 %v548
    %2385 = vmatpush1.bf16.msra.mxu0 %v547
    %2386 = vmatprep.subr.bf16.mxu0 %v552
    %2387 = vmatpush1.bf16.msra.mxu0 %v551
    %2388 = vmatprep.subr.bf16.mxu0 %v556
    %2389 = vmatpush1.bf16.msra.mxu0 %v555
    %2390 = vmatprep.subr.bf16.mxu0 %v560
    %2391 = vmatpush1.bf16.msra.mxu0 %v559
    %2392 = vmatprep.subr.bf16.mxu0 %v564
    %2393 = vmatpush1.bf16.msra.mxu0 %v563
    %2394 = vmatprep.subr.bf16.mxu0 %v568
    %2395 = vmatpush1.bf16.msra.mxu0 %v567
    %2396 = vmatprep.subr.bf16.mxu0 0
    %2397 = vmatpush1.bf16.msra.mxu0 0
    %2398 = vmatprep.subr.bf16.mxu0 0
    %2399 = vmatpush1.bf16.msra.mxu0 0
    %2400 = vmatprep.subr.bf16.mxu0 0
    %2401 = vmatpush1.bf16.msra.mxu0 0
    %2402 = vmatprep.subr.bf16.mxu0 0
    %2403 = vmatpush1.bf16.msra.mxu0 0
    %2404 = vmatprep.subr.bf16.mxu0 0
    %2405 = vmatpush1.bf16.msra.mxu0 0
    %2406 = vmatprep.subr.bf16.mxu0 0
    %2407 = vmatpush1.bf16.msra.mxu0 0
    %2408 = vmatprep.subr.bf16.mxu0 0
    %2409 = vmatpush1.bf16.msra.mxu0 0
    %2410 = vmatprep.subr.bf16.mxu0 0
    %2411 = vmatpush1.bf16.msra.mxu0 0
    %2412 = vmatprep.mubr.bf16.mxu0 0
    %2413 = vmatmul.mubr.bf16.gmra.mrb[0].mxu0 %v2379
    %v2414 = vpop.f32.mrb[0].mxu0
    %v2415 = vadd.f32 0.0, %v2414
    %v2416 = vpop.f32.mrb[0].mxu0
    %v2417 = vadd.f32 0.0, %v2416
    %v2418 = vpop.f32.mrb[0].mxu0
    %v2419 = vpop.f32.mrb[0].mxu0
    %2420 = vdwg.mxu0
    %2421 = vmatprep.subr.bf16.mxu0 %v542
    %2422 = vmatpush1.bf16.msra.mxu0 %v541
    %2423 = vmatprep.subr.bf16.mxu0 %v546
    %2424 = vmatpush1.bf16.msra.mxu0 %v545
    %2425 = vmatprep.subr.bf16.mxu0 %v550
    %2426 = vmatpush1.bf16.msra.mxu0 %v549
    %2427 = vmatprep.subr.bf16.mxu0 %v554
    %2428 = vmatpush1.bf16.msra.mxu0 %v553
    %2429 = vmatprep.subr.bf16.mxu0 %v558
    %2430 = vmatpush1.bf16.msra.mxu0 %v557
    %2431 = vmatprep.subr.bf16.mxu0 %v562
    %2432 = vmatpush1.bf16.msra.mxu0 %v561
    %2433 = vmatprep.subr.bf16.mxu0 %v566
    %2434 = vmatpush1.bf16.msra.mxu0 %v565
    %2435 = vmatprep.subr.bf16.mxu0 %v570
    %2436 = vmatpush1.bf16.msra.mxu0 %v569
    %2437 = vmatprep.subr.bf16.mxu0 0
    %2438 = vmatpush1.bf16.msra.mxu0 0
    %2439 = vmatprep.subr.bf16.mxu0 0
    %2440 = vmatpush1.bf16.msra.mxu0 0
    %2441 = vmatprep.subr.bf16.mxu0 0
    %2442 = vmatpush1.bf16.msra.mxu0 0
    %2443 = vmatprep.subr.bf16.mxu0 0
    %2444 = vmatpush1.bf16.msra.mxu0 0
    %2445 = vmatprep.subr.bf16.mxu0 0
    %2446 = vmatpush1.bf16.msra.mxu0 0
    %2447 = vmatprep.subr.bf16.mxu0 0
    %2448 = vmatpush1.bf16.msra.mxu0 0
    %2449 = vmatprep.subr.bf16.mxu0 0
    %2450 = vmatpush1.bf16.msra.mxu0 0
    %2451 = vmatprep.subr.bf16.mxu0 0
    %2452 = vmatpush1.bf16.msra.mxu0 0
    %2453 = vmatprep.mubr.bf16.mxu0 0
    %2454 = vmatmul.mubr.bf16.gmra.mrb[0].mxu0 %v2379
    %v2455 = vpop.f32.mrb[0].mxu0
    %v2456 = vadd.f32 0.0, %v2455
    %v2457 = vpop.f32.mrb[0].mxu0
    %v2458 = vadd.f32 0.0, %v2457
    %v2459 = vpop.f32.mrb[0].mxu0
    %v2460 = vpop.f32.mrb[0].mxu0
    %2461 = vdwg.mxu0
    %v2462 = vadd.f32 %v689, %v2415
    %v2463 = vadd.f32 %v693, %v2417
    %v2464 = vadd.f32 %v697, %v2456
    %v2465 = vadd.f32 %v701, %v2458
    %v2466 = vpack.c.bf16 %v2263, %v2263
    %2467 = vmatprep.subr.bf16.mxu0 %v839
    %2468 = vmatpush1.bf16.msra.mxu0 %v838
    %2469 = vmatprep.subr.bf16.mxu0 %v843
    %2470 = vmatpush1.bf16.msra.mxu0 %v842
    %2471 = vmatprep.subr.bf16.mxu0 %v847
    %2472 = vmatpush1.bf16.msra.mxu0 %v846
    %2473 = vmatprep.subr.bf16.mxu0 %v851
    %2474 = vmatpush1.bf16.msra.mxu0 %v850
    %2475 = vmatprep.subr.bf16.mxu0 %v855
    %2476 = vmatpush1.bf16.msra.mxu0 %v854
    %2477 = vmatprep.subr.bf16.mxu0 %v859
    %2478 = vmatpush1.bf16.msra.mxu0 %v858
    %2479 = vmatprep.subr.bf16.mxu0 %v863
    %2480 = vmatpush1.bf16.msra.mxu0 %v862
    %2481 = vmatprep.subr.bf16.mxu0 %v867
    %2482 = vmatpush1.bf16.msra.mxu0 %v866
    %2483 = vmatprep.subr.bf16.mxu0 0
    %2484 = vmatpush1.bf16.msra.mxu0 0
    %2485 = vmatprep.subr.bf16.mxu0 0
    %2486 = vmatpush1.bf16.msra.mxu0 0
    %2487 = vmatprep.subr.bf16.mxu0 0
    %2488 = vmatpush1.bf16.msra.mxu0 0
    %2489 = vmatprep.subr.bf16.mxu0 0
    %2490 = vmatpush1.bf16.msra.mxu0 0
    %2491 = vmatprep.subr.bf16.mxu0 0
    %2492 = vmatpush1.bf16.msra.mxu0 0
    %2493 = vmatprep.subr.bf16.mxu0 0
    %2494 = vmatpush1.bf16.msra.mxu0 0
    %2495 = vmatprep.subr.bf16.mxu0 0
    %2496 = vmatpush1.bf16.msra.mxu0 0
    %2497 = vmatprep.subr.bf16.mxu0 0
    %2498 = vmatpush1.bf16.msra.mxu0 0
    %2499 = vmatprep.mubr.bf16.mxu0 0
    %2500 = vmatmul.mubr.bf16.gmra.mrb[0].mxu0 %v2466
    %v2501 = vpop.f32.mrb[0].mxu0
    %v2502 = vadd.f32 0.0, %v2501
    %v2503 = vpop.f32.mrb[0].mxu0
    %v2504 = vadd.f32 0.0, %v2503
    %v2505 = vpop.f32.mrb[0].mxu0
    %v2506 = vpop.f32.mrb[0].mxu0
    %2507 = vdwg.mxu0
    %2508 = vmatprep.subr.bf16.mxu0 %v841
    %2509 = vmatpush1.bf16.msra.mxu0 %v840
    %2510 = vmatprep.subr.bf16.mxu0 %v845
    %2511 = vmatpush1.bf16.msra.mxu0 %v844
    %2512 = vmatprep.subr.bf16.mxu0 %v849
    %2513 = vmatpush1.bf16.msra.mxu0 %v848
    %2514 = vmatprep.subr.bf16.mxu0 %v853
    %2515 = vmatpush1.bf16.msra.mxu0 %v852
    %2516 = vmatprep.subr.bf16.mxu0 %v857
    %2517 = vmatpush1.bf16.msra.mxu0 %v856
    %2518 = vmatprep.subr.bf16.mxu0 %v861
    %2519 = vmatpush1.bf16.msra.mxu0 %v860
    %2520 = vmatprep.subr.bf16.mxu0 %v865
    %2521 = vmatpush1.bf16.msra.mxu0 %v864
    %2522 = vmatprep.subr.bf16.mxu0 %v869
    %2523 = vmatpush1.bf16.msra.mxu0 %v868
    %2524 = vmatprep.subr.bf16.mxu0 0
    %2525 = vmatpush1.bf16.msra.mxu0 0
    %2526 = vmatprep.subr.bf16.mxu0 0
    %2527 = vmatpush1.bf16.msra.mxu0 0
    %2528 = vmatprep.subr.bf16.mxu0 0
    %2529 = vmatpush1.bf16.msra.mxu0 0
    %2530 = vmatprep.subr.bf16.mxu0 0
    %2531 = vmatpush1.bf16.msra.mxu0 0
    %2532 = vmatprep.subr.bf16.mxu0 0
    %2533 = vmatpush1.bf16.msra.mxu0 0
    %2534 = vmatprep.subr.bf16.mxu0 0
    %2535 = vmatpush1.bf16.msra.mxu0 0
    %2536 = vmatprep.subr.bf16.mxu0 0
    %2537 = vmatpush1.bf16.msra.mxu0 0
    %2538 = vmatprep.subr.bf16.mxu0 0
    %2539 = vmatpush1.bf16.msra.mxu0 0
    %2540 = vmatprep.mubr.bf16.mxu0 0
    %2541 = vmatmul.mubr.bf16.gmra.mrb[0].mxu0 %v2466
    %v2542 = vpop.f32.mrb[0].mxu0
    %v2543 = vadd.f32 0.0, %v2542
    %v2544 = vpop.f32.mrb[0].mxu0
    %v2545 = vadd.f32 0.0, %v2544
    %v2546 = vpop.f32.mrb[0].mxu0
    %v2547 = vpop.f32.mrb[0].mxu0
    %2548 = vdwg.mxu0
    %v2549 = vadd.f32 %v2462, %v2502
    %v2550 = vadd.f32 %v2463, %v2504
    %v2551 = vadd.f32 %v2464, %v2543
    %v2552 = vadd.f32 %v2465, %v2545
    %v2553 = vxor.u32 %v2549, 2147483648
    %v2554 = vmul.f32 %v2553, 1.442695
    %v2555 = vpow.pop %v2554
    %v2556 = vadd.f32 %v2555, 1.0
    %v2557 = vrcp.pop %v2556
    %v2558 = vmul.f32 1.0, %v2557
    %v2559 = vxor.u32 %v2550, 2147483648
    %v2560 = vmul.f32 %v2559, 1.442695
    %v2561 = vpow.pop %v2560
    %v2562 = vadd.f32 %v2561, 1.0
    %v2563 = vrcp.pop %v2562
    %v2564 = vmul.f32 1.0, %v2563
    %v2565 = vtanh.pop %v2551
    %v2566 = vxor.u32 %v2552, 2147483648
    %v2567 = vmul.f32 %v2566, 1.442695
    %v2568 = vpow.pop %v2567
    %v2569 = vadd.f32 %v2568, 1.0
    %v2570 = vrcp.pop %v2569
    %v2571 = vmul.f32 1.0, %v2570
    %v2572 = vmul.f32 %v2564, %v2261
    %v2573 = vmul.f32 %v2558, %v2565
    %v2574 = vadd.f32 %v2572, %v2573
    %v2575 = vtanh.pop %v2574
    %v2576 = vmul.f32 %v2571, %v2575
    %s2577 = scalar_lea.vmem %s0, 192
    %v2578 = vld [vmem:[%s2577] sm:$0xff]
    %v2579 = vld [vmem:[%s2577 + $0x8] sm:$0xff]
    %v2580 = vld [vmem:[%s2577 + $0x10] sm:$0xff]
    %v2581 = vld [vmem:[%s2577 + $0x18] sm:$0xff]
    %2582 = vmatprep.subr.bf16.mxu0 %v236
    %2583 = vmatpush1.bf16.msra.mxu0 %v235
    %2584 = vmatprep.subr.bf16.mxu0 %v240
    %2585 = vmatpush1.bf16.msra.mxu0 %v239
    %2586 = vmatprep.subr.bf16.mxu0 %v244
    %2587 = vmatpush1.bf16.msra.mxu0 %v243
    %2588 = vmatprep.subr.bf16.mxu0 %v248
    %2589 = vmatpush1.bf16.msra.mxu0 %v247
    %2590 = vmatprep.subr.bf16.mxu0 %v252
    %2591 = vmatpush1.bf16.msra.mxu0 %v251
    %2592 = vmatprep.subr.bf16.mxu0 %v256
    %2593 = vmatpush1.bf16.msra.mxu0 %v255
    %2594 = vmatprep.subr.bf16.mxu0 %v260
    %2595 = vmatpush1.bf16.msra.mxu0 %v259
    %2596 = vmatprep.subr.bf16.mxu0 %v264
    %2597 = vmatpush1.bf16.msra.mxu0 %v263
    %2598 = vmatprep.subr.bf16.mxu0 0
    %2599 = vmatpush1.bf16.msra.mxu0 0
    %2600 = vmatprep.subr.bf16.mxu0 0
    %2601 = vmatpush1.bf16.msra.mxu0 0
    %2602 = vmatprep.subr.bf16.mxu0 0
    %2603 = vmatpush1.bf16.msra.mxu0 0
    %2604 = vmatprep.subr.bf16.mxu0 0
    %2605 = vmatpush1.bf16.msra.mxu0 0
    %2606 = vmatprep.subr.bf16.mxu0 0
    %2607 = vmatpush1.bf16.msra.mxu0 0
    %2608 = vmatprep.subr.bf16.mxu0 0
    %2609 = vmatpush1.bf16.msra.mxu0 0
    %2610 = vmatprep.subr.bf16.mxu0 0
    %2611 = vmatpush1.bf16.msra.mxu0 0
    %2612 = vmatprep.subr.bf16.mxu0 0
    %2613 = vmatpush1.bf16.msra.mxu0 0
    %2614 = vmatprep.mubr.bf16.mxu0 0
    %2615 = vmatmul.mubr.bf16.gmra.mrb[0].mxu0 %v2379
    %v2616 = vpop.f32.mrb[0].mxu0
    %v2617 = vadd.f32 0.0, %v2616
    %v2618 = vpop.f32.mrb[0].mxu0
    %v2619 = vadd.f32 0.0, %v2618
    %v2620 = vpop.f32.mrb[0].mxu0
    %v2621 = vpop.f32.mrb[0].mxu0
    %2622 = vdwg.mxu0
    %2623 = vmatprep.subr.bf16.mxu0 %v238
    %2624 = vmatpush1.bf16.msra.mxu0 %v237
    %2625 = vmatprep.subr.bf16.mxu0 %v242
    %2626 = vmatpush1.bf16.msra.mxu0 %v241
    %2627 = vmatprep.subr.bf16.mxu0 %v246
    %2628 = vmatpush1.bf16.msra.mxu0 %v245
    %2629 = vmatprep.subr.bf16.mxu0 %v250
    %2630 = vmatpush1.bf16.msra.mxu0 %v249
    %2631 = vmatprep.subr.bf16.mxu0 %v254
    %2632 = vmatpush1.bf16.msra.mxu0 %v253
    %2633 = vmatprep.subr.bf16.mxu0 %v258
    %2634 = vmatpush1.bf16.msra.mxu0 %v257
    %2635 = vmatprep.subr.bf16.mxu0 %v262
    %2636 = vmatpush1.bf16.msra.mxu0 %v261
    %2637 = vmatprep.subr.bf16.mxu0 %v266
    %2638 = vmatpush1.bf16.msra.mxu0 %v265
    %2639 = vmatprep.subr.bf16.mxu0 0
    %2640 = vmatpush1.bf16.msra.mxu0 0
    %2641 = vmatprep.subr.bf16.mxu0 0
    %2642 = vmatpush1.bf16.msra.mxu0 0
    %2643 = vmatprep.subr.bf16.mxu0 0
    %2644 = vmatpush1.bf16.msra.mxu0 0
    %2645 = vmatprep.subr.bf16.mxu0 0
    %2646 = vmatpush1.bf16.msra.mxu0 0
    %2647 = vmatprep.subr.bf16.mxu0 0
    %2648 = vmatpush1.bf16.msra.mxu0 0
    %2649 = vmatprep.subr.bf16.mxu0 0
    %2650 = vmatpush1.bf16.msra.mxu0 0
    %2651 = vmatprep.subr.bf16.mxu0 0
    %2652 = vmatpush1.bf16.msra.mxu0 0
    %2653 = vmatprep.subr.bf16.mxu0 0
    %2654 = vmatpush1.bf16.msra.mxu0 0
    %2655 = vmatprep.mubr.bf16.mxu0 0
    %2656 = vmatmul.mubr.bf16.gmra.mrb[0].mxu0 %v2379
    %v2657 = vpop.f32.mrb[0].mxu0
    %v2658 = vadd.f32 0.0, %v2657
    %v2659 = vpop.f32.mrb[0].mxu0
    %v2660 = vadd.f32 0.0, %v2659
    %v2661 = vpop.f32.mrb[0].mxu0
    %v2662 = vpop.f32.mrb[0].mxu0
    %2663 = vdwg.mxu0
    %v2664 = vadd.f32 %v2578, %v2617
    %v2665 = vadd.f32 %v2579, %v2619
    %v2666 = vadd.f32 %v2580, %v2658
    %v2667 = vadd.f32 %v2581, %v2660
    %v2668 = vxor.u32 %v2664, 2147483648
    %v2669 = vmul.f32 %v2668, 1.442695
    %v2670 = vpow.pop %v2669
    %v2671 = vadd.f32 %v2670, 1.0
    %v2672 = vrcp.pop %v2671
    %v2673 = vmul.f32 1.0, %v2672
    %v2674 = vxor.u32 %v2665, 2147483648
    %v2675 = vmul.f32 %v2674, 1.442695
    %v2676 = vpow.pop %v2675
    %v2677 = vadd.f32 %v2676, 1.0
    %v2678 = vrcp.pop %v2677
    %v2679 = vmul.f32 1.0, %v2678
    %v2680 = vtanh.pop %v2666
    %v2681 = vxor.u32 %v2667, 2147483648
    %v2682 = vmul.f32 %v2681, 1.442695
    %v2683 = vpow.pop %v2682
    %v2684 = vadd.f32 %v2683, 1.0
    %v2685 = vrcp.pop %v2684
    %v2686 = vmul.f32 1.0, %v2685
    %v2687 = vmul.f32 %v2679, %v2376
    %v2688 = vmul.f32 %v2673, %v2680
    %v2689 = vadd.f32 %v2687, %v2688
    %v2690 = vtanh.pop %v2689
    %v2691 = vmul.f32 %v2686, %v2690
    %v2692 = vpack.c.bf16 %v2691, %v2691
    %2693 = vmatprep.subr.bf16.mxu0 %v540
    %2694 = vmatpush1.bf16.msra.mxu0 %v539
    %2695 = vmatprep.subr.bf16.mxu0 %v544
    %2696 = vmatpush1.bf16.msra.mxu0 %v543
    %2697 = vmatprep.subr.bf16.mxu0 %v548
    %2698 = vmatpush1.bf16.msra.mxu0 %v547
    %2699 = vmatprep.subr.bf16.mxu0 %v552
    %2700 = vmatpush1.bf16.msra.mxu0 %v551
    %2701 = vmatprep.subr.bf16.mxu0 %v556
    %2702 = vmatpush1.bf16.msra.mxu0 %v555
    %2703 = vmatprep.subr.bf16.mxu0 %v560
    %2704 = vmatpush1.bf16.msra.mxu0 %v559
    %2705 = vmatprep.subr.bf16.mxu0 %v564
    %2706 = vmatpush1.bf16.msra.mxu0 %v563
    %2707 = vmatprep.subr.bf16.mxu0 %v568
    %2708 = vmatpush1.bf16.msra.mxu0 %v567
    %2709 = vmatprep.subr.bf16.mxu0 0
    %2710 = vmatpush1.bf16.msra.mxu0 0
    %2711 = vmatprep.subr.bf16.mxu0 0
    %2712 = vmatpush1.bf16.msra.mxu0 0
    %2713 = vmatprep.subr.bf16.mxu0 0
    %2714 = vmatpush1.bf16.msra.mxu0 0
    %2715 = vmatprep.subr.bf16.mxu0 0
    %2716 = vmatpush1.bf16.msra.mxu0 0
    %2717 = vmatprep.subr.bf16.mxu0 0
    %2718 = vmatpush1.bf16.msra.mxu0 0
    %2719 = vmatprep.subr.bf16.mxu0 0
    %2720 = vmatpush1.bf16.msra.mxu0 0
    %2721 = vmatprep.subr.bf16.mxu0 0
    %2722 = vmatpush1.bf16.msra.mxu0 0
    %2723 = vmatprep.subr.bf16.mxu0 0
    %2724 = vmatpush1.bf16.msra.mxu0 0
    %2725 = vmatprep.mubr.bf16.mxu0 0
    %2726 = vmatmul.mubr.bf16.gmra.mrb[0].mxu0 %v2692
    %v2727 = vpop.f32.mrb[0].mxu0
    %v2728 = vadd.f32 0.0, %v2727
    %v2729 = vpop.f32.mrb[0].mxu0
    %v2730 = vadd.f32 0.0, %v2729
    %v2731 = vpop.f32.mrb[0].mxu0
    %v2732 = vpop.f32.mrb[0].mxu0
    %2733 = vdwg.mxu0
    %2734 = vmatprep.subr.bf16.mxu0 %v542
    %2735 = vmatpush1.bf16.msra.mxu0 %v541
    %2736 = vmatprep.subr.bf16.mxu0 %v546
    %2737 = vmatpush1.bf16.msra.mxu0 %v545
    %2738 = vmatprep.subr.bf16.mxu0 %v550
    %2739 = vmatpush1.bf16.msra.mxu0 %v549
    %2740 = vmatprep.subr.bf16.mxu0 %v554
    %2741 = vmatpush1.bf16.msra.mxu0 %v553
    %2742 = vmatprep.subr.bf16.mxu0 %v558
    %2743 = vmatpush1.bf16.msra.mxu0 %v557
    %2744 = vmatprep.subr.bf16.mxu0 %v562
    %2745 = vmatpush1.bf16.msra.mxu0 %v561
    %2746 = vmatprep.subr.bf16.mxu0 %v566
    %2747 = vmatpush1.bf16.msra.mxu0 %v565
    %2748 = vmatprep.subr.bf16.mxu0 %v570
    %2749 = vmatpush1.bf16.msra.mxu0 %v569
    %2750 = vmatprep.subr.bf16.mxu0 0
    %2751 = vmatpush1.bf16.msra.mxu0 0
    %2752 = vmatprep.subr.bf16.mxu0 0
    %2753 = vmatpush1.bf16.msra.mxu0 0
    %2754 = vmatprep.subr.bf16.mxu0 0
    %2755 = vmatpush1.bf16.msra.mxu0 0
    %2756 = vmatprep.subr.bf16.mxu0 0
    %2757 = vmatpush1.bf16.msra.mxu0 0
    %2758 = vmatprep.subr.bf16.mxu0 0
    %2759 = vmatpush1.bf16.msra.mxu0 0
    %2760 = vmatprep.subr.bf16.mxu0 0
    %2761 = vmatpush1.bf16.msra.mxu0 0
    %2762 = vmatprep.subr.bf16.mxu0 0
    %2763 = vmatpush1.bf16.msra.mxu0 0
    %2764 = vmatprep.subr.bf16.mxu0 0
    %2765 = vmatpush1.bf16.msra.mxu0 0
    %2766 = vmatprep.mubr.bf16.mxu0 0
    %2767 = vmatmul.mubr.bf16.gmra.mrb[0].mxu0 %v2692
    %v2768 = vpop.f32.mrb[0].mxu0
    %v2769 = vadd.f32 0.0, %v2768
    %v2770 = vpop.f32.mrb[0].mxu0
    %v2771 = vadd.f32 0.0, %v2770
    %v2772 = vpop.f32.mrb[0].mxu0
    %v2773 = vpop.f32.mrb[0].mxu0
    %2774 = vdwg.mxu0
    %v2775 = vadd.f32 %v689, %v2728
    %v2776 = vadd.f32 %v693, %v2730
    %v2777 = vadd.f32 %v697, %v2769
    %v2778 = vadd.f32 %v701, %v2771
    %v2779 = vpack.c.bf16 %v2576, %v2576
    %2780 = vmatprep.subr.bf16.mxu0 %v839
    %2781 = vmatpush1.bf16.msra.mxu0 %v838
    %2782 = vmatprep.subr.bf16.mxu0 %v843
    %2783 = vmatpush1.bf16.msra.mxu0 %v842
    %2784 = vmatprep.subr.bf16.mxu0 %v847
    %2785 = vmatpush1.bf16.msra.mxu0 %v846
    %2786 = vmatprep.subr.bf16.mxu0 %v851
    %2787 = vmatpush1.bf16.msra.mxu0 %v850
    %2788 = vmatprep.subr.bf16.mxu0 %v855
    %2789 = vmatpush1.bf16.msra.mxu0 %v854
    %2790 = vmatprep.subr.bf16.mxu0 %v859
    %2791 = vmatpush1.bf16.msra.mxu0 %v858
    %2792 = vmatprep.subr.bf16.mxu0 %v863
    %2793 = vmatpush1.bf16.msra.mxu0 %v862
    %2794 = vmatprep.subr.bf16.mxu0 %v867
    %2795 = vmatpush1.bf16.msra.mxu0 %v866
    %2796 = vmatprep.subr.bf16.mxu0 0
    %2797 = vmatpush1.bf16.msra.mxu0 0
    %2798 = vmatprep.subr.bf16.mxu0 0
    %2799 = vmatpush1.bf16.msra.mxu0 0
    %2800 = vmatprep.subr.bf16.mxu0 0
    %2801 = vmatpush1.bf16.msra.mxu0 0
    %2802 = vmatprep.subr.bf16.mxu0 0
    %2803 = vmatpush1.bf16.msra.mxu0 0
    %2804 = vmatprep.subr.bf16.mxu0 0
    %2805 = vmatpush1.bf16.msra.mxu0 0
    %2806 = vmatprep.subr.bf16.mxu0 0
    %2807 = vmatpush1.bf16.msra.mxu0 0
    %2808 = vmatprep.subr.bf16.mxu0 0
    %2809 = vmatpush1.bf16.msra.mxu0 0
    %2810 = vmatprep.subr.bf16.mxu0 0
    %2811 = vmatpush1.bf16.msra.mxu0 0
    %2812 = vmatprep.mubr.bf16.mxu0 0
    %2813 = vmatmul.mubr.bf16.gmra.mrb[0].mxu0 %v2779
    %v2814 = vpop.f32.mrb[0].mxu0
    %v2815 = vadd.f32 0.0, %v2814
    %v2816 = vpop.f32.mrb[0].mxu0
    %v2817 = vadd.f32 0.0, %v2816
    %v2818 = vpop.f32.mrb[0].mxu0
    %v2819 = vpop.f32.mrb[0].mxu0
    %2820 = vdwg.mxu0
    %2821 = vmatprep.subr.bf16.mxu0 %v841
    %2822 = vmatpush1.bf16.msra.mxu0 %v840
    %2823 = vmatprep.subr.bf16.mxu0 %v845
    %2824 = vmatpush1.bf16.msra.mxu0 %v844
    %2825 = vmatprep.subr.bf16.mxu0 %v849
    %2826 = vmatpush1.bf16.msra.mxu0 %v848
    %2827 = vmatprep.subr.bf16.mxu0 %v853
    %2828 = vmatpush1.bf16.msra.mxu0 %v852
    %2829 = vmatprep.subr.bf16.mxu0 %v857
    %2830 = vmatpush1.bf16.msra.mxu0 %v856
    %2831 = vmatprep.subr.bf16.mxu0 %v861
    %2832 = vmatpush1.bf16.msra.mxu0 %v860
    %2833 = vmatprep.subr.bf16.mxu0 %v865
    %2834 = vmatpush1.bf16.msra.mxu0 %v864
    %2835 = vmatprep.subr.bf16.mxu0 %v869
    %2836 = vmatpush1.bf16.msra.mxu0 %v868
    %2837 = vmatprep.subr.bf16.mxu0 0
    %2838 = vmatpush1.bf16.msra.mxu0 0
    %2839 = vmatprep.subr.bf16.mxu0 0
    %2840 = vmatpush1.bf16.msra.mxu0 0
    %2841 = vmatprep.subr.bf16.mxu0 0
    %2842 = vmatpush1.bf16.msra.mxu0 0
    %2843 = vmatprep.subr.bf16.mxu0 0
    %2844 = vmatpush1.bf16.msra.mxu0 0
    %2845 = vmatprep.subr.bf16.mxu0 0
    %2846 = vmatpush1.bf16.msra.mxu0 0
    %2847 = vmatprep.subr.bf16.mxu0 0
    %2848 = vmatpush1.bf16.msra.mxu0 0
    %2849 = vmatprep.subr.bf16.mxu0 0
    %2850 = vmatpush1.bf16.msra.mxu0 0
    %2851 = vmatprep.subr.bf16.mxu0 0
    %2852 = vmatpush1.bf16.msra.mxu0 0
    %2853 = vmatprep.mubr.bf16.mxu0 0
    %2854 = vmatmul.mubr.bf16.gmra.mrb[0].mxu0 %v2779
    %v2855 = vpop.f32.mrb[0].mxu0
    %v2856 = vadd.f32 0.0, %v2855
    %v2857 = vpop.f32.mrb[0].mxu0
    %v2858 = vadd.f32 0.0, %v2857
    %v2859 = vpop.f32.mrb[0].mxu0
    %v2860 = vpop.f32.mrb[0].mxu0
    %2861 = vdwg.mxu0
    %v2862 = vadd.f32 %v2775, %v2815
    %v2863 = vadd.f32 %v2776, %v2817
    %v2864 = vadd.f32 %v2777, %v2856
    %v2865 = vadd.f32 %v2778, %v2858
    %v2866 = vxor.u32 %v2862, 2147483648
    %v2867 = vmul.f32 %v2866, 1.442695
    %v2868 = vpow.pop %v2867
    %v2869 = vadd.f32 %v2868, 1.0
    %v2870 = vrcp.pop %v2869
    %v2871 = vmul.f32 1.0, %v2870
    %v2872 = vxor.u32 %v2863, 2147483648
    %v2873 = vmul.f32 %v2872, 1.442695
    %v2874 = vpow.pop %v2873
    %v2875 = vadd.f32 %v2874, 1.0
    %v2876 = vrcp.pop %v2875
    %v2877 = vmul.f32 1.0, %v2876
    %v2878 = vtanh.pop %v2864
    %v2879 = vxor.u32 %v2865, 2147483648
    %v2880 = vmul.f32 %v2879, 1.442695
    %v2881 = vpow.pop %v2880
    %v2882 = vadd.f32 %v2881, 1.0
    %v2883 = vrcp.pop %v2882
    %v2884 = vmul.f32 1.0, %v2883
    %v2885 = vmul.f32 %v2877, %v2574
    %v2886 = vmul.f32 %v2871, %v2878
    %v2887 = vadd.f32 %v2885, %v2886
    %v2888 = vtanh.pop %v2887
    %v2889 = vmul.f32 %v2884, %v2888
    %s2890 = scalar_lea.vmem %s0, 224
    %v2891 = vld [vmem:[%s2890] sm:$0xff]
    %v2892 = vld [vmem:[%s2890 + $0x8] sm:$0xff]
    %v2893 = vld [vmem:[%s2890 + $0x10] sm:$0xff]
    %v2894 = vld [vmem:[%s2890 + $0x18] sm:$0xff]
    %2895 = vmatprep.subr.bf16.mxu0 %v236
    %2896 = vmatpush1.bf16.msra.mxu0 %v235
    %2897 = vmatprep.subr.bf16.mxu0 %v240
    %2898 = vmatpush1.bf16.msra.mxu0 %v239
    %2899 = vmatprep.subr.bf16.mxu0 %v244
    %2900 = vmatpush1.bf16.msra.mxu0 %v243
    %2901 = vmatprep.subr.bf16.mxu0 %v248
    %2902 = vmatpush1.bf16.msra.mxu0 %v247
    %2903 = vmatprep.subr.bf16.mxu0 %v252
    %2904 = vmatpush1.bf16.msra.mxu0 %v251
    %2905 = vmatprep.subr.bf16.mxu0 %v256
    %2906 = vmatpush1.bf16.msra.mxu0 %v255
    %2907 = vmatprep.subr.bf16.mxu0 %v260
    %2908 = vmatpush1.bf16.msra.mxu0 %v259
    %2909 = vmatprep.subr.bf16.mxu0 %v264
    %2910 = vmatpush1.bf16.msra.mxu0 %v263
    %2911 = vmatprep.subr.bf16.mxu0 0
    %2912 = vmatpush1.bf16.msra.mxu0 0
    %2913 = vmatprep.subr.bf16.mxu0 0
    %2914 = vmatpush1.bf16.msra.mxu0 0
    %2915 = vmatprep.subr.bf16.mxu0 0
    %2916 = vmatpush1.bf16.msra.mxu0 0
    %2917 = vmatprep.subr.bf16.mxu0 0
    %2918 = vmatpush1.bf16.msra.mxu0 0
    %2919 = vmatprep.subr.bf16.mxu0 0
    %2920 = vmatpush1.bf16.msra.mxu0 0
    %2921 = vmatprep.subr.bf16.mxu0 0
    %2922 = vmatpush1.bf16.msra.mxu0 0
    %2923 = vmatprep.subr.bf16.mxu0 0
    %2924 = vmatpush1.bf16.msra.mxu0 0
    %2925 = vmatprep.subr.bf16.mxu0 0
    %2926 = vmatpush1.bf16.msra.mxu0 0
    %2927 = vmatprep.mubr.bf16.mxu0 0
    %2928 = vmatmul.mubr.bf16.gmra.mrb[0].mxu0 %v2692
    %v2929 = vpop.f32.mrb[0].mxu0
    %v2930 = vadd.f32 0.0, %v2929
    %v2931 = vpop.f32.mrb[0].mxu0
    %v2932 = vadd.f32 0.0, %v2931
    %v2933 = vpop.f32.mrb[0].mxu0
    %v2934 = vpop.f32.mrb[0].mxu0
    %2935 = vdwg.mxu0
    %2936 = vmatprep.subr.bf16.mxu0 %v238
    %2937 = vmatpush1.bf16.msra.mxu0 %v237
    %2938 = vmatprep.subr.bf16.mxu0 %v242
    %2939 = vmatpush1.bf16.msra.mxu0 %v241
    %2940 = vmatprep.subr.bf16.mxu0 %v246
    %2941 = vmatpush1.bf16.msra.mxu0 %v245
    %2942 = vmatprep.subr.bf16.mxu0 %v250
    %2943 = vmatpush1.bf16.msra.mxu0 %v249
    %2944 = vmatprep.subr.bf16.mxu0 %v254
    %2945 = vmatpush1.bf16.msra.mxu0 %v253
    %2946 = vmatprep.subr.bf16.mxu0 %v258
    %2947 = vmatpush1.bf16.msra.mxu0 %v257
    %2948 = vmatprep.subr.bf16.mxu0 %v262
    %2949 = vmatpush1.bf16.msra.mxu0 %v261
    %2950 = vmatprep.subr.bf16.mxu0 %v266
    %2951 = vmatpush1.bf16.msra.mxu0 %v265
    %2952 = vmatprep.subr.bf16.mxu0 0
    %2953 = vmatpush1.bf16.msra.mxu0 0
    %2954 = vmatprep.subr.bf16.mxu0 0
    %2955 = vmatpush1.bf16.msra.mxu0 0
    %2956 = vmatprep.subr.bf16.mxu0 0
    %2957 = vmatpush1.bf16.msra.mxu0 0
    %2958 = vmatprep.subr.bf16.mxu0 0
    %2959 = vmatpush1.bf16.msra.mxu0 0
    %2960 = vmatprep.subr.bf16.mxu0 0
    %2961 = vmatpush1.bf16.msra.mxu0 0
    %2962 = vmatprep.subr.bf16.mxu0 0
    %2963 = vmatpush1.bf16.msra.mxu0 0
    %2964 = vmatprep.subr.bf16.mxu0 0
    %2965 = vmatpush1.bf16.msra.mxu0 0
    %2966 = vmatprep.subr.bf16.mxu0 0
    %2967 = vmatpush1.bf16.msra.mxu0 0
    %2968 = vmatprep.mubr.bf16.mxu0 0
    %2969 = vmatmul.mubr.bf16.gmra.mrb[0].mxu0 %v2692
    %v2970 = vpop.f32.mrb[0].mxu0
    %v2971 = vadd.f32 0.0, %v2970
    %v2972 = vpop.f32.mrb[0].mxu0
    %v2973 = vadd.f32 0.0, %v2972
    %v2974 = vpop.f32.mrb[0].mxu0
    %v2975 = vpop.f32.mrb[0].mxu0
    %2976 = vdwg.mxu0
    %v2977 = vadd.f32 %v2891, %v2930
    %v2978 = vadd.f32 %v2892, %v2932
    %v2979 = vadd.f32 %v2893, %v2971
    %v2980 = vadd.f32 %v2894, %v2973
    %v2981 = vxor.u32 %v2977, 2147483648
    %v2982 = vmul.f32 %v2981, 1.442695
    %v2983 = vpow.pop %v2982
    %v2984 = vadd.f32 %v2983, 1.0
    %v2985 = vrcp.pop %v2984
    %v2986 = vmul.f32 1.0, %v2985
    %v2987 = vxor.u32 %v2978, 2147483648
    %v2988 = vmul.f32 %v2987, 1.442695
    %v2989 = vpow.pop %v2988
    %v2990 = vadd.f32 %v2989, 1.0
    %v2991 = vrcp.pop %v2990
    %v2992 = vmul.f32 1.0, %v2991
    %v2993 = vtanh.pop %v2979
    %v2994 = vxor.u32 %v2980, 2147483648
    %v2995 = vmul.f32 %v2994, 1.442695
    %v2996 = vpow.pop %v2995
    %v2997 = vadd.f32 %v2996, 1.0
    %v2998 = vrcp.pop %v2997
    %v2999 = vmul.f32 1.0, %v2998
    %v3000 = vmul.f32 %v2992, %v2689
    %v3001 = vmul.f32 %v2986, %v2993
    %v3002 = vadd.f32 %v3000, %v3001
    %v3003 = vtanh.pop %v3002
    %v3004 = vmul.f32 %v2999, %v3003
    %v3005 = vpack.c.bf16 %v3004, %v3004
    %3006 = vmatprep.subr.bf16.mxu0 %v540
    %3007 = vmatpush1.bf16.msra.mxu0 %v539
    %3008 = vmatprep.subr.bf16.mxu0 %v544
    %3009 = vmatpush1.bf16.msra.mxu0 %v543
    %3010 = vmatprep.subr.bf16.mxu0 %v548
    %3011 = vmatpush1.bf16.msra.mxu0 %v547
    %3012 = vmatprep.subr.bf16.mxu0 %v552
    %3013 = vmatpush1.bf16.msra.mxu0 %v551
    %3014 = vmatprep.subr.bf16.mxu0 %v556
    %3015 = vmatpush1.bf16.msra.mxu0 %v555
    %3016 = vmatprep.subr.bf16.mxu0 %v560
    %3017 = vmatpush1.bf16.msra.mxu0 %v559
    %3018 = vmatprep.subr.bf16.mxu0 %v564
    %3019 = vmatpush1.bf16.msra.mxu0 %v563
    %3020 = vmatprep.subr.bf16.mxu0 %v568
    %3021 = vmatpush1.bf16.msra.mxu0 %v567
    %3022 = vmatprep.subr.bf16.mxu0 0
    %3023 = vmatpush1.bf16.msra.mxu0 0
    %3024 = vmatprep.subr.bf16.mxu0 0
    %3025 = vmatpush1.bf16.msra.mxu0 0
    %3026 = vmatprep.subr.bf16.mxu0 0
    %3027 = vmatpush1.bf16.msra.mxu0 0
    %3028 = vmatprep.subr.bf16.mxu0 0
    %3029 = vmatpush1.bf16.msra.mxu0 0
    %3030 = vmatprep.subr.bf16.mxu0 0
    %3031 = vmatpush1.bf16.msra.mxu0 0
    %3032 = vmatprep.subr.bf16.mxu0 0
    %3033 = vmatpush1.bf16.msra.mxu0 0
    %3034 = vmatprep.subr.bf16.mxu0 0
    %3035 = vmatpush1.bf16.msra.mxu0 0
    %3036 = vmatprep.subr.bf16.mxu0 0
    %3037 = vmatpush1.bf16.msra.mxu0 0
    %3038 = vmatprep.mubr.bf16.mxu0 0
    %3039 = vmatmul.mubr.bf16.gmra.mrb[0].mxu0 %v3005
    %v3040 = vpop.f32.mrb[0].mxu0
    %v3041 = vadd.f32 0.0, %v3040
    %v3042 = vpop.f32.mrb[0].mxu0
    %v3043 = vadd.f32 0.0, %v3042
    %v3044 = vpop.f32.mrb[0].mxu0
    %v3045 = vpop.f32.mrb[0].mxu0
    %3046 = vdwg.mxu0
    %3047 = vmatprep.subr.bf16.mxu0 %v542
    %3048 = vmatpush1.bf16.msra.mxu0 %v541
    %3049 = vmatprep.subr.bf16.mxu0 %v546
    %3050 = vmatpush1.bf16.msra.mxu0 %v545
    %3051 = vmatprep.subr.bf16.mxu0 %v550
    %3052 = vmatpush1.bf16.msra.mxu0 %v549
    %3053 = vmatprep.subr.bf16.mxu0 %v554
    %3054 = vmatpush1.bf16.msra.mxu0 %v553
    %3055 = vmatprep.subr.bf16.mxu0 %v558
    %3056 = vmatpush1.bf16.msra.mxu0 %v557
    %3057 = vmatprep.subr.bf16.mxu0 %v562
    %3058 = vmatpush1.bf16.msra.mxu0 %v561
    %3059 = vmatprep.subr.bf16.mxu0 %v566
    %3060 = vmatpush1.bf16.msra.mxu0 %v565
    %3061 = vmatprep.subr.bf16.mxu0 %v570
    %3062 = vmatpush1.bf16.msra.mxu0 %v569
    %3063 = vmatprep.subr.bf16.mxu0 0
    %3064 = vmatpush1.bf16.msra.mxu0 0
    %3065 = vmatprep.subr.bf16.mxu0 0
    %3066 = vmatpush1.bf16.msra.mxu0 0
    %3067 = vmatprep.subr.bf16.mxu0 0
    %3068 = vmatpush1.bf16.msra.mxu0 0
    %3069 = vmatprep.subr.bf16.mxu0 0
    %3070 = vmatpush1.bf16.msra.mxu0 0
    %3071 = vmatprep.subr.bf16.mxu0 0
    %3072 = vmatpush1.bf16.msra.mxu0 0
    %3073 = vmatprep.subr.bf16.mxu0 0
    %3074 = vmatpush1.bf16.msra.mxu0 0
    %3075 = vmatprep.subr.bf16.mxu0 0
    %3076 = vmatpush1.bf16.msra.mxu0 0
    %3077 = vmatprep.subr.bf16.mxu0 0
    %3078 = vmatpush1.bf16.msra.mxu0 0
    %3079 = vmatprep.mubr.bf16.mxu0 0
    %3080 = vmatmul.mubr.bf16.gmra.mrb[0].mxu0 %v3005
    %v3081 = vpop.f32.mrb[0].mxu0
    %v3082 = vadd.f32 0.0, %v3081
    %v3083 = vpop.f32.mrb[0].mxu0
    %v3084 = vadd.f32 0.0, %v3083
    %v3085 = vpop.f32.mrb[0].mxu0
    %v3086 = vpop.f32.mrb[0].mxu0
    %3087 = vdwg.mxu0
    %v3088 = vadd.f32 %v689, %v3041
    %v3089 = vadd.f32 %v693, %v3043
    %v3090 = vadd.f32 %v697, %v3082
    %v3091 = vadd.f32 %v701, %v3084
    %v3092 = vpack.c.bf16 %v2889, %v2889
    %3093 = vmatprep.subr.bf16.mxu0 %v839
    %3094 = vmatpush1.bf16.msra.mxu0 %v838
    %3095 = vmatprep.subr.bf16.mxu0 %v843
    %3096 = vmatpush1.bf16.msra.mxu0 %v842
    %3097 = vmatprep.subr.bf16.mxu0 %v847
    %3098 = vmatpush1.bf16.msra.mxu0 %v846
    %3099 = vmatprep.subr.bf16.mxu0 %v851
    %3100 = vmatpush1.bf16.msra.mxu0 %v850
    %3101 = vmatprep.subr.bf16.mxu0 %v855
    %3102 = vmatpush1.bf16.msra.mxu0 %v854
    %3103 = vmatprep.subr.bf16.mxu0 %v859
    %3104 = vmatpush1.bf16.msra.mxu0 %v858
    %3105 = vmatprep.subr.bf16.mxu0 %v863
    %3106 = vmatpush1.bf16.msra.mxu0 %v862
    %3107 = vmatprep.subr.bf16.mxu0 %v867
    %3108 = vmatpush1.bf16.msra.mxu0 %v866
    %3109 = vmatprep.subr.bf16.mxu0 0
    %3110 = vmatpush1.bf16.msra.mxu0 0
    %3111 = vmatprep.subr.bf16.mxu0 0
    %3112 = vmatpush1.bf16.msra.mxu0 0
    %3113 = vmatprep.subr.bf16.mxu0 0
    %3114 = vmatpush1.bf16.msra.mxu0 0
    %3115 = vmatprep.subr.bf16.mxu0 0
    %3116 = vmatpush1.bf16.msra.mxu0 0
    %3117 = vmatprep.subr.bf16.mxu0 0
    %3118 = vmatpush1.bf16.msra.mxu0 0
    %3119 = vmatprep.subr.bf16.mxu0 0
    %3120 = vmatpush1.bf16.msra.mxu0 0
    %3121 = vmatprep.subr.bf16.mxu0 0
    %3122 = vmatpush1.bf16.msra.mxu0 0
    %3123 = vmatprep.subr.bf16.mxu0 0
    %3124 = vmatpush1.bf16.msra.mxu0 0
    %3125 = vmatprep.mubr.bf16.mxu0 0
    %3126 = vmatmul.mubr.bf16.gmra.mrb[0].mxu0 %v3092
    %v3127 = vpop.f32.mrb[0].mxu0
    %v3128 = vadd.f32 0.0, %v3127
    %v3129 = vpop.f32.mrb[0].mxu0
    %v3130 = vadd.f32 0.0, %v3129
    %v3131 = vpop.f32.mrb[0].mxu0
    %v3132 = vpop.f32.mrb[0].mxu0
    %3133 = vdwg.mxu0
    %3134 = vmatprep.subr.bf16.mxu0 %v841
    %3135 = vmatpush1.bf16.msra.mxu0 %v840
    %3136 = vmatprep.subr.bf16.mxu0 %v845
    %3137 = vmatpush1.bf16.msra.mxu0 %v844
    %3138 = vmatprep.subr.bf16.mxu0 %v849
    %3139 = vmatpush1.bf16.msra.mxu0 %v848
    %3140 = vmatprep.subr.bf16.mxu0 %v853
    %3141 = vmatpush1.bf16.msra.mxu0 %v852
    %3142 = vmatprep.subr.bf16.mxu0 %v857
    %3143 = vmatpush1.bf16.msra.mxu0 %v856
    %3144 = vmatprep.subr.bf16.mxu0 %v861
    %3145 = vmatpush1.bf16.msra.mxu0 %v860
    %3146 = vmatprep.subr.bf16.mxu0 %v865
    %3147 = vmatpush1.bf16.msra.mxu0 %v864
    %3148 = vmatprep.subr.bf16.mxu0 %v869
    %3149 = vmatpush1.bf16.msra.mxu0 %v868
    %3150 = vmatprep.subr.bf16.mxu0 0
    %3151 = vmatpush1.bf16.msra.mxu0 0
    %3152 = vmatprep.subr.bf16.mxu0 0
    %3153 = vmatpush1.bf16.msra.mxu0 0
    %3154 = vmatprep.subr.bf16.mxu0 0
    %3155 = vmatpush1.bf16.msra.mxu0 0
    %3156 = vmatprep.subr.bf16.mxu0 0
    %3157 = vmatpush1.bf16.msra.mxu0 0
    %3158 = vmatprep.subr.bf16.mxu0 0
    %3159 = vmatpush1.bf16.msra.mxu0 0
    %3160 = vmatprep.subr.bf16.mxu0 0
    %3161 = vmatpush1.bf16.msra.mxu0 0
    %3162 = vmatprep.subr.bf16.mxu0 0
    %3163 = vmatpush1.bf16.msra.mxu0 0
    %3164 = vmatprep.subr.bf16.mxu0 0
    %3165 = vmatpush1.bf16.msra.mxu0 0
    %3166 = vmatprep.mubr.bf16.mxu0 0
    %3167 = vmatmul.mubr.bf16.gmra.mrb[0].mxu0 %v3092
    %v3168 = vpop.f32.mrb[0].mxu0
    %v3169 = vadd.f32 0.0, %v3168
    %v3170 = vpop.f32.mrb[0].mxu0
    %v3171 = vadd.f32 0.0, %v3170
    %v3172 = vpop.f32.mrb[0].mxu0
    %v3173 = vpop.f32.mrb[0].mxu0
    %3174 = vdwg.mxu0
    %v3175 = vadd.f32 %v3088, %v3128
    %v3176 = vadd.f32 %v3089, %v3130
    %v3177 = vadd.f32 %v3090, %v3169
    %v3178 = vadd.f32 %v3091, %v3171
    %v3179 = vxor.u32 %v3175, 2147483648
    %v3180 = vmul.f32 %v3179, 1.442695
    %v3181 = vpow.pop %v3180
    %v3182 = vadd.f32 %v3181, 1.0
    %v3183 = vrcp.pop %v3182
    %v3184 = vmul.f32 1.0, %v3183
    %v3185 = vxor.u32 %v3176, 2147483648
    %v3186 = vmul.f32 %v3185, 1.442695
    %v3187 = vpow.pop %v3186
    %v3188 = vadd.f32 %v3187, 1.0
    %v3189 = vrcp.pop %v3188
    %v3190 = vmul.f32 1.0, %v3189
    %v3191 = vtanh.pop %v3177
    %v3192 = vxor.u32 %v3178, 2147483648
    %v3193 = vmul.f32 %v3192, 1.442695
    %v3194 = vpow.pop %v3193
    %v3195 = vadd.f32 %v3194, 1.0
    %v3196 = vrcp.pop %v3195
    %v3197 = vmul.f32 1.0, %v3196
    %v3198 = vmul.f32 %v3190, %v2887
    %v3199 = vmul.f32 %v3184, %v3191
    %v3200 = vadd.f32 %v3198, %v3199
    %v3201 = vtanh.pop %v3200
    %v3202 = vmul.f32 %v3197, %v3201
    %v3203 = vpack.c.bf16 %v3202, %v3202
    %v3204 = vld [vmem:[#allocation6] sm:$0xff]
    %v3205 = vld [vmem:[#allocation6 + $0x8] sm:$0xff]
    %v3206 = vld [vmem:[#allocation6 + $0x10] sm:$0xff]
    %v3207 = vld [vmem:[#allocation6 + $0x18] sm:$0xff]
    %v3208 = vld [vmem:[#allocation6 + $0x20] sm:$0xff]
    %v3209 = vld [vmem:[#allocation6 + $0x28] sm:$0xff]
    %v3210 = vld [vmem:[#allocation6 + $0x30] sm:$0xff]
    %v3211 = vld [vmem:[#allocation6 + $0x38] sm:$0xff]
    %v3212 = vld [vmem:[#allocation6 + $0x40] sm:$0xff]
    %v3213 = vld [vmem:[#allocation6 + $0x48] sm:$0xff]
    %v3214 = vld [vmem:[#allocation6 + $0x50] sm:$0xff]
    %v3215 = vld [vmem:[#allocation6 + $0x58] sm:$0xff]
    %v3216 = vld [vmem:[#allocation6 + $0x60] sm:$0xff]
    %v3217 = vld [vmem:[#allocation6 + $0x68] sm:$0xff]
    %v3218 = vld [vmem:[#allocation6 + $0x70] sm:$0xff]
    %v3219 = vld [vmem:[#allocation6 + $0x78] sm:$0xff]
    %v3220 = vld [vmem:[%s6] sm:$0x3]
    %v3222 = vlaneseq
    %v3223 = vshrl.u32 %v3222, 7
    %v3224 = vsub.s32 0, %v3223
    %v3225 = vrot.slane %v3220, %v3224
    %v3226 = vlaneseq
    %v3227 = vshrl.u32 %v3226, 7
    %v3228 = vsub.s32 1, %v3227
    %v3229 = vrot.slane %v3220, %v3228
    %v3248 = vunpack.c.l.b16 %v3204
    %v3249 = vunpack.c.h.b16 %v3204
    %v3250 = vunpack.c.l.b16 %v3205
    %v3251 = vunpack.c.h.b16 %v3205
    %v3252 = vunpack.c.l.b16 %v3206
    %v3253 = vunpack.c.h.b16 %v3206
    %v3254 = vunpack.c.l.b16 %v3207
    %v3255 = vunpack.c.h.b16 %v3207
    %v3256 = vunpack.c.l.b16 %v3208
    %v3257 = vunpack.c.h.b16 %v3208
    %v3258 = vunpack.c.l.b16 %v3209
    %v3259 = vunpack.c.h.b16 %v3209
    %v3260 = vunpack.c.l.b16 %v3210
    %v3261 = vunpack.c.h.b16 %v3210
    %v3262 = vunpack.c.l.b16 %v3211
    %v3263 = vunpack.c.h.b16 %v3211
    %v3264 = vunpack.c.l.b16 %v3212
    %v3265 = vunpack.c.h.b16 %v3212
    %v3266 = vunpack.c.l.b16 %v3213
    %v3267 = vunpack.c.h.b16 %v3213
    %v3268 = vunpack.c.l.b16 %v3214
    %v3269 = vunpack.c.h.b16 %v3214
    %v3270 = vunpack.c.l.b16 %v3215
    %v3271 = vunpack.c.h.b16 %v3215
    %v3272 = vunpack.c.l.b16 %v3216
    %v3273 = vunpack.c.h.b16 %v3216
    %v3274 = vunpack.c.l.b16 %v3217
    %v3275 = vunpack.c.h.b16 %v3217
    %v3276 = vunpack.c.l.b16 %v3218
    %v3277 = vunpack.c.h.b16 %v3218
    %v3278 = vunpack.c.l.b16 %v3219
    %v3279 = vunpack.c.h.b16 %v3219
    %v3280 = vpack.c.b16 %v3250, %v3248
    %v3281 = vpack.c.b16 %v3251, %v3249
    %v3282 = vpack.c.b16 %v3254, %v3252
    %v3283 = vpack.c.b16 %v3255, %v3253
    %v3284 = vpack.c.b16 %v3258, %v3256
    %v3285 = vpack.c.b16 %v3259, %v3257
    %v3286 = vpack.c.b16 %v3262, %v3260
    %v3287 = vpack.c.b16 %v3263, %v3261
    %v3288 = vpack.c.b16 %v3266, %v3264
    %v3289 = vpack.c.b16 %v3267, %v3265
    %v3290 = vpack.c.b16 %v3270, %v3268
    %v3291 = vpack.c.b16 %v3271, %v3269
    %v3292 = vpack.c.b16 %v3274, %v3272
    %v3293 = vpack.c.b16 %v3275, %v3273
    %v3294 = vpack.c.b16 %v3278, %v3276
    %v3295 = vpack.c.b16 %v3279, %v3277
    %3312 = vmatprep.subr.bf16.mxu0 %v3281
    %3313 = vmatpush1.bf16.msra.mxu0 %v3280
    %3314 = vmatprep.subr.bf16.mxu0 %v3283
    %3315 = vmatpush1.bf16.msra.mxu0 %v3282
    %3316 = vmatprep.subr.bf16.mxu0 %v3285
    %3317 = vmatpush1.bf16.msra.mxu0 %v3284
    %3318 = vmatprep.subr.bf16.mxu0 %v3287
    %3319 = vmatpush1.bf16.msra.mxu0 %v3286
    %3320 = vmatprep.subr.bf16.mxu0 %v3289
    %3321 = vmatpush1.bf16.msra.mxu0 %v3288
    %3322 = vmatprep.subr.bf16.mxu0 %v3291
    %3323 = vmatpush1.bf16.msra.mxu0 %v3290
    %3324 = vmatprep.subr.bf16.mxu0 %v3293
    %3325 = vmatpush1.bf16.msra.mxu0 %v3292
    %3326 = vmatprep.subr.bf16.mxu0 %v3295
    %3327 = vmatpush1.bf16.msra.mxu0 %v3294
    %3328 = vmatprep.subr.bf16.mxu0 0
    %3329 = vmatpush1.bf16.msra.mxu0 0
    %3330 = vmatprep.subr.bf16.mxu0 0
    %3331 = vmatpush1.bf16.msra.mxu0 0
    %3332 = vmatprep.subr.bf16.mxu0 0
    %3333 = vmatpush1.bf16.msra.mxu0 0
    %3334 = vmatprep.subr.bf16.mxu0 0
    %3335 = vmatpush1.bf16.msra.mxu0 0
    %3336 = vmatprep.subr.bf16.mxu0 0
    %3337 = vmatpush1.bf16.msra.mxu0 0
    %3338 = vmatprep.subr.bf16.mxu0 0
    %3339 = vmatpush1.bf16.msra.mxu0 0
    %3340 = vmatprep.subr.bf16.mxu0 0
    %3341 = vmatpush1.bf16.msra.mxu0 0
    %3342 = vmatprep.subr.bf16.mxu0 0
    %3343 = vmatpush1.bf16.msra.mxu0 0
    %3344 = vmatprep.mubr.bf16.mxu0 0
    %3345 = vmatmul.mubr.bf16.gmra.mrb[0].mxu0 %v3203
    %v3346 = vpop.f32.mrb[0].mxu0
    %v3347 = vadd.f32 %v3225, %v3346
    %v3348 = vpop.f32.mrb[0].mxu0
    %v3349 = vadd.f32 %v3229, %v3348
    %v3350 = vpop.f32.mrb[0].mxu0
    %v3351 = vpop.f32.mrb[0].mxu0
    %3352 = vdwg.mxu0
    %v3353 = vmax.f32 %v3347, 0.0
    %v3354 = vmax.f32 %v3349, 0.0
    %v3355 = vpack.c.bf16 %v3353, %v3353
    %v3356 = vpack.c.bf16 %v3354, %v3354
    %v3357 = vld [vmem:[#allocation7] sm:$0xf]
    %v3358 = vld [vmem:[#allocation7 + $0x4] sm:$0xf]
    %v3359 = vld [vmem:[#allocation7 + $0x8] sm:$0xf]
    %v3360 = vld [vmem:[#allocation7 + $0xc] sm:$0xf]
    %v3361 = vld [vmem:[#allocation7 + $0x10] sm:$0xf]
    %v3362 = vld [vmem:[#allocation7 + $0x14] sm:$0xf]
    %v3363 = vld [vmem:[#allocation7 + $0x18] sm:$0xf]
    %v3364 = vld [vmem:[#allocation7 + $0x1c] sm:$0xf]
    %v3365 = vld [vmem:[#allocation7 + $0x20] sm:$0xf]
    %v3366 = vld [vmem:[#allocation7 + $0x24] sm:$0xf]
    %v3367 = vld [vmem:[#allocation7 + $0x28] sm:$0xf]
    %v3368 = vld [vmem:[#allocation7 + $0x2c] sm:$0xf]
    %v3369 = vld [vmem:[#allocation7 + $0x30] sm:$0xf]
    %v3370 = vld [vmem:[#allocation7 + $0x34] sm:$0xf]
    %v3371 = vld [vmem:[#allocation7 + $0x38] sm:$0xf]
    %v3372 = vld [vmem:[#allocation7 + $0x3c] sm:$0xf]
    %v3373 = vld [vmem:[#allocation7 + $0x40] sm:$0xf]
    %v3374 = vld [vmem:[#allocation7 + $0x44] sm:$0xf]
    %v3375 = vld [vmem:[#allocation7 + $0x48] sm:$0xf]
    %v3376 = vld [vmem:[#allocation7 + $0x4c] sm:$0xf]
    %v3377 = vld [vmem:[#allocation7 + $0x50] sm:$0xf]
    %v3378 = vld [vmem:[#allocation7 + $0x54] sm:$0xf]
    %v3379 = vld [vmem:[#allocation7 + $0x58] sm:$0xf]
    %v3380 = vld [vmem:[#allocation7 + $0x5c] sm:$0xf]
    %v3381 = vld [vmem:[#allocation7 + $0x60] sm:$0xf]
    %v3382 = vld [vmem:[#allocation7 + $0x64] sm:$0xf]
    %v3383 = vld [vmem:[#allocation7 + $0x68] sm:$0xf]
    %v3384 = vld [vmem:[#allocation7 + $0x6c] sm:$0xf]
    %v3385 = vld [vmem:[#allocation7 + $0x70] sm:$0xf]
    %v3386 = vld [vmem:[#allocation7 + $0x74] sm:$0xf]
    %v3387 = vld [vmem:[#allocation7 + $0x78] sm:$0xf]
    %v3388 = vld [vmem:[#allocation7 + $0x7c] sm:$0xf]
    %v3389 = vld [vmem:[%s8] sm:$0x1]
    %v3391 = vlaneseq
    %v3392 = vshrl.u32 %v3391, 7
    %v3393 = vsub.s32 0, %v3392
    %v3394 = vrot.slane %v3389, %v3393
    %v3428 = vunpack.c.l.b16 %v3357
    %v3429 = vunpack.c.l.b16 %v3358
    %v3430 = vunpack.c.l.b16 %v3359
    %v3431 = vunpack.c.l.b16 %v3360
    %v3432 = vunpack.c.l.b16 %v3361
    %v3433 = vunpack.c.l.b16 %v3362
    %v3434 = vunpack.c.l.b16 %v3363
    %v3435 = vunpack.c.l.b16 %v3364
    %v3436 = vunpack.c.l.b16 %v3365
    %v3437 = vunpack.c.l.b16 %v3366
    %v3438 = vunpack.c.l.b16 %v3367
    %v3439 = vunpack.c.l.b16 %v3368
    %v3440 = vunpack.c.l.b16 %v3369
    %v3441 = vunpack.c.l.b16 %v3370
    %v3442 = vunpack.c.l.b16 %v3371
    %v3443 = vunpack.c.l.b16 %v3372
    %v3444 = vunpack.c.l.b16 %v3373
    %v3445 = vunpack.c.l.b16 %v3374
    %v3446 = vunpack.c.l.b16 %v3375
    %v3447 = vunpack.c.l.b16 %v3376
    %v3448 = vunpack.c.l.b16 %v3377
    %v3449 = vunpack.c.l.b16 %v3378
    %v3450 = vunpack.c.l.b16 %v3379
    %v3451 = vunpack.c.l.b16 %v3380
    %v3452 = vunpack.c.l.b16 %v3381
    %v3453 = vunpack.c.l.b16 %v3382
    %v3454 = vunpack.c.l.b16 %v3383
    %v3455 = vunpack.c.l.b16 %v3384
    %v3456 = vunpack.c.l.b16 %v3385
    %v3457 = vunpack.c.l.b16 %v3386
    %v3458 = vunpack.c.l.b16 %v3387
    %v3459 = vunpack.c.l.b16 %v3388
    %v3460 = vpack.c.b16 %v3429, %v3428
    %v3461 = vpack.c.b16 %v3431, %v3430
    %v3462 = vpack.c.b16 %v3433, %v3432
    %v3463 = vpack.c.b16 %v3435, %v3434
    %v3464 = vpack.c.b16 %v3437, %v3436
    %v3465 = vpack.c.b16 %v3439, %v3438
    %v3466 = vpack.c.b16 %v3441, %v3440
    %v3467 = vpack.c.b16 %v3443, %v3442
    %v3468 = vpack.c.b16 %v3445, %v3444
    %v3469 = vpack.c.b16 %v3447, %v3446
    %v3470 = vpack.c.b16 %v3449, %v3448
    %v3471 = vpack.c.b16 %v3451, %v3450
    %v3472 = vpack.c.b16 %v3453, %v3452
    %v3473 = vpack.c.b16 %v3455, %v3454
    %v3474 = vpack.c.b16 %v3457, %v3456
    %v3475 = vpack.c.b16 %v3459, %v3458
    %3492 = vmatprep.subr.bf16.mxu0 0
    %3493 = vmatpush1.bf16.msra.mxu0 %v3460
    %3494 = vmatprep.subr.bf16.mxu0 0
    %3495 = vmatpush1.bf16.msra.mxu0 %v3461
    %3496 = vmatprep.subr.bf16.mxu0 0
    %3497 = vmatpush1.bf16.msra.mxu0 %v3462
    %3498 = vmatprep.subr.bf16.mxu0 0
    %3499 = vmatpush1.bf16.msra.mxu0 %v3463
    %3500 = vmatprep.subr.bf16.mxu0 0
    %3501 = vmatpush1.bf16.msra.mxu0 %v3464
    %3502 = vmatprep.subr.bf16.mxu0 0
    %3503 = vmatpush1.bf16.msra.mxu0 %v3465
    %3504 = vmatprep.subr.bf16.mxu0 0
    %3505 = vmatpush1.bf16.msra.mxu0 %v3466
    %3506 = vmatprep.subr.bf16.mxu0 0
    %3507 = vmatpush1.bf16.msra.mxu0 %v3467
    %3508 = vmatprep.subr.bf16.mxu0 0
    %3509 = vmatpush1.bf16.msra.mxu0 %v3468
    %3510 = vmatprep.subr.bf16.mxu0 0
    %3511 = vmatpush1.bf16.msra.mxu0 %v3469
    %3512 = vmatprep.subr.bf16.mxu0 0
    %3513 = vmatpush1.bf16.msra.mxu0 %v3470
    %3514 = vmatprep.subr.bf16.mxu0 0
    %3515 = vmatpush1.bf16.msra.mxu0 %v3471
    %3516 = vmatprep.subr.bf16.mxu0 0
    %3517 = vmatpush1.bf16.msra.mxu0 %v3472
    %3518 = vmatprep.subr.bf16.mxu0 0
    %3519 = vmatpush1.bf16.msra.mxu0 %v3473
    %3520 = vmatprep.subr.bf16.mxu0 0
    %3521 = vmatpush1.bf16.msra.mxu0 %v3474
    %3522 = vmatprep.subr.bf16.mxu0 0
    %3523 = vmatpush1.bf16.msra.mxu0 %v3475
    %3524 = vmatprep.mubr.bf16.mxu0 %v3356
    %3525 = vmatmul.mubr.bf16.gmra.mrb[0].mxu0 %v3355
    %v3526 = vpop.f32.mrb[0].mxu0
    %v3527 = vadd.f32 %v3394, %v3526
    %v3528 = vpop.f32.mrb[0].mxu0
    %v3529 = vpop.f32.mrb[0].mxu0
    %v3530 = vpop.f32.mrb[0].mxu0
    %3531 = vdwg.mxu0
    %v3532 = vmax.f32 %v3527, 0.0
    %v3533 = vpack.c.bf16 %v3532, %v3532
    %v3534 = vld [vmem:[%s9] sm:$0xf]
    %v3535 = vld [vmem:[%s9 + $0x4] sm:$0xf]
    %v3536 = vld [vmem:[%s9 + $0x8] sm:$0xf]
    %v3537 = vld [vmem:[%s9 + $0xc] sm:$0xf]
    %v3538 = vld [vmem:[%s9 + $0x10] sm:$0xf]
    %v3539 = vld [vmem:[%s9 + $0x14] sm:$0xf]
    %v3540 = vld [vmem:[%s9 + $0x18] sm:$0xf]
    %v3541 = vld [vmem:[%s9 + $0x1c] sm:$0xf]
    %v3542 = vld [vmem:[%s9 + $0x20] sm:$0xf]
    %v3543 = vld [vmem:[%s9 + $0x24] sm:$0xf]
    %v3544 = vld [vmem:[%s9 + $0x28] sm:$0xf]
    %v3545 = vld [vmem:[%s9 + $0x2c] sm:$0xf]
    %v3546 = vld [vmem:[%s9 + $0x30] sm:$0xf]
    %v3547 = vld [vmem:[%s9 + $0x34] sm:$0xf]
    %v3548 = vld [vmem:[%s9 + $0x38] sm:$0xf]
    %v3549 = vld [vmem:[%s9 + $0x3c] sm:$0xf]
    %v3550 = vld [vmem:[#allocation9] sm:$0x1]
    %v3552 = vlaneseq
    %v3553 = vshrl.u32 %v3552, 7
    %v3554 = vsub.s32 0, %v3553
    %v3555 = vrot.slane %v3550, %v3554
    %v3573 = vunpack.c.l.b16 %v3534
    %v3574 = vunpack.c.l.b16 %v3535
    %v3575 = vunpack.c.l.b16 %v3536
    %v3576 = vunpack.c.l.b16 %v3537
    %v3577 = vunpack.c.l.b16 %v3538
    %v3578 = vunpack.c.l.b16 %v3539
    %v3579 = vunpack.c.l.b16 %v3540
    %v3580 = vunpack.c.l.b16 %v3541
    %v3581 = vunpack.c.l.b16 %v3542
    %v3582 = vunpack.c.l.b16 %v3543
    %v3583 = vunpack.c.l.b16 %v3544
    %v3584 = vunpack.c.l.b16 %v3545
    %v3585 = vunpack.c.l.b16 %v3546
    %v3586 = vunpack.c.l.b16 %v3547
    %v3587 = vunpack.c.l.b16 %v3548
    %v3588 = vunpack.c.l.b16 %v3549
    %v3589 = vpack.c.b16 %v3574, %v3573
    %v3590 = vpack.c.b16 %v3576, %v3575
    %v3591 = vpack.c.b16 %v3578, %v3577
    %v3592 = vpack.c.b16 %v3580, %v3579
    %v3593 = vpack.c.b16 %v3582, %v3581
    %v3594 = vpack.c.b16 %v3584, %v3583
    %v3595 = vpack.c.b16 %v3586, %v3585
    %v3596 = vpack.c.b16 %v3588, %v3587
    %3605 = vmatprep.subr.bf16.mxu0 0
    %3606 = vmatpush1.bf16.msra.mxu0 %v3589
    %3607 = vmatprep.subr.bf16.mxu0 0
    %3608 = vmatpush1.bf16.msra.mxu0 %v3590
    %3609 = vmatprep.subr.bf16.mxu0 0
    %3610 = vmatpush1.bf16.msra.mxu0 %v3591
    %3611 = vmatprep.subr.bf16.mxu0 0
    %3612 = vmatpush1.bf16.msra.mxu0 %v3592
    %3613 = vmatprep.subr.bf16.mxu0 0
    %3614 = vmatpush1.bf16.msra.mxu0 %v3593
    %3615 = vmatprep.subr.bf16.mxu0 0
    %3616 = vmatpush1.bf16.msra.mxu0 %v3594
    %3617 = vmatprep.subr.bf16.mxu0 0
    %3618 = vmatpush1.bf16.msra.mxu0 %v3595
    %3619 = vmatprep.subr.bf16.mxu0 0
    %3620 = vmatpush1.bf16.msra.mxu0 %v3596
    %3621 = vmatprep.subr.bf16.mxu0 0
    %3622 = vmatpush1.bf16.msra.mxu0 0
    %3623 = vmatprep.subr.bf16.mxu0 0
    %3624 = vmatpush1.bf16.msra.mxu0 0
    %3625 = vmatprep.subr.bf16.mxu0 0
    %3626 = vmatpush1.bf16.msra.mxu0 0
    %3627 = vmatprep.subr.bf16.mxu0 0
    %3628 = vmatpush1.bf16.msra.mxu0 0
    %3629 = vmatprep.subr.bf16.mxu0 0
    %3630 = vmatpush1.bf16.msra.mxu0 0
    %3631 = vmatprep.subr.bf16.mxu0 0
    %3632 = vmatpush1.bf16.msra.mxu0 0
    %3633 = vmatprep.subr.bf16.mxu0 0
    %3634 = vmatpush1.bf16.msra.mxu0 0
    %3635 = vmatprep.subr.bf16.mxu0 0
    %3636 = vmatpush1.bf16.msra.mxu0 0
    %3637 = vmatprep.mubr.bf16.mxu0 0
    %3638 = vmatmul.mubr.bf16.gmra.mrb[0].mxu0 %v3533
    %v3639 = vpop.f32.mrb[0].mxu0
    %v3640 = vadd.f32 %v3555, %v3639
    %v3641 = vpop.f32.mrb[0].mxu0
    %v3642 = vpop.f32.mrb[0].mxu0
    %v3643 = vpop.f32.mrb[0].mxu0
    %3644 = vdwg.mxu0
    %v3645 = vxor.u32 %v3640, 2147483648
    %v3646 = vmul.f32 %v3645, 1.442695
    %v3647 = vpow.pop %v3646
    %v3648 = vadd.f32 %v3647, 1.0
    %v3649 = vrcp.pop %v3648
    %v3650 = vmul.f32 1.0, %v3649
    %3651 = vst [vmem:[%s11] sm:$0xff] %v3650
    // Predicated region
    $region66: #{network_forward.1} parent=1 // pred_check
      _
    $region67: #{network_forward.1} parent=1 // pred_check_branch
      %3653 = sbr.rel (0) target = $region69
    $region68: #{network_forward.1} parent=1 // pred_region
      _
    $region69: #{network_forward.1} parent=1 // pred_fallthru
      _
    // Predicated region
    $region70: #{network_forward.1} parent=1 // pred_check
      _
    $region71: #{network_forward.1} parent=1 // pred_check_branch
      %3655 = sbr.rel (0) target = $region73
    $region72: #{network_forward.1} parent=1 // pred_region
      _
    $region73: #{network_forward.1} parent=1 // pred_fallthru
      _
    %3656 = vsyncpa [#allocation3], 1
    %3657 = vsyncpa [#allocation5], 1
    %3658 = vsyncpa [#allocation8], 1

</llo_original>
